<compile_context>
chip_gen: v5e
topology: v5e:2x2
jax: 0.10.0
libtpu: 0.0.40
codegen_flags: <defaults>
</compile_context>

<pallas_src>
import math
from functools import partial

import jax
import jax.numpy as jnp
from jax.experimental import pallas as pl
from jax.experimental.pallas import tpu as pltpu


# ---------------------------------------------------------------------------
# Hardware detection helpers (best effort, safe fallbacks)
# ---------------------------------------------------------------------------
def _physical_vmem_bytes():
    try:
        return int(getattr(pltpu.get_tpu_info(), "vmem_capacity_bytes", 128 << 20))
    except Exception:
        return 128 << 20


def _num_tensorcores():
    """Best-effort TensorCores-per-chip detection (2 on v7x / megacore chips)."""
    try:
        info = pltpu.get_tpu_info()
        for attr in ("num_cores", "tensorcore_count", "num_tensorcores"):
            n = getattr(info, attr, None)
            if isinstance(n, int) and n > 0:
                return n
    except Exception:
        pass
    try:
        n = getattr(jax.devices()[0], "num_cores", None)
        if isinstance(n, int) and n > 0:
            return n
    except Exception:
        pass
    return 1


def _default_batch_tiles(batch):
    tiles = max(1, min(_num_tensorcores(), batch))
    while batch % tiles:
        tiles -= 1
    return tiles


# ---------------------------------------------------------------------------
# Pallas kernels
# ---------------------------------------------------------------------------
def fused_decoder_kernel(x_ref, mem_ref,
                         sa_wq, sa_wk, sa_wv, sa_wo,
                         ca_wq, ca_wk, ca_wv, ca_wo,
                         l1_w, l2_w, l1_b, vec_ref,
                         out_ref, *, nhead, compute_dtype):
    """Grid = (batch_tile, layer). out_ref is the resident activation carry."""
    layer = pl.program_id(1)
    cdt = compute_dtype

    @pl.when(layer == 0)
    def _():
        out_ref[...] = x_ref[...]          # load embedded input into the carry

    Bt, S, D = out_ref.shape
    Sm = mem_ref.shape[1]
    H = nhead
    dh = D // H

    x = out_ref[...].astype(jnp.float32).reshape(Bt * S, D)      # (Bt*S, D) f32
    mem = mem_ref[...].reshape(Bt * Sm, D)                       # bf16

    vec = vec_ref[...]                                           # (16, D) f32
    # packed rows: 0 sa_bq 1 sa_bk 2 sa_bv 3 sa_bo 4 ca_bq 5 ca_bk 6 ca_bv
    #              7 ca_bo 8 l2_b 9 n1_g 10 n1_b 11 n2_g 12 n2_b 13 n3_g 14 n3_b

    def attend(q_src, kv_src, Sk, wq, wk, wv, wo, bq, bk, bv, bo):
        # 1/sqrt(dh) is pre-folded into wq / bq on the host.
        q = jnp.dot(q_src.astype(cdt), wq[...],
                    preferred_element_type=jnp.float32) + bq      # (Bt*S, D)
        k = jnp.dot(kv_src.astype(cdt), wk[...],
                    preferred_element_type=jnp.float32) + bk      # (Bt*Sk, D)
        v = jnp.dot(kv_src.astype(cdt), wv[...],
                    preferred_element_type=jnp.float32) + bv      # (Bt*Sk, D)
        # split heads -> single leading batch dim (Bt*H) for the MXU einsums
        qh = jnp.swapaxes(q.reshape(Bt, S, H, dh), 1, 2).reshape(Bt * H, S, dh)
        kh = jnp.swapaxes(k.reshape(Bt, Sk, H, dh), 1, 2).reshape(Bt * H, Sk, dh)
        vh = jnp.swapaxes(v.reshape(Bt, Sk, H, dh), 1, 2).reshape(Bt * H, Sk, dh)

        s = jnp.einsum("bqd,bkd->bqk", qh.astype(cdt), kh.astype(cdt),
                       preferred_element_type=jnp.float32)        # (Bt*H, S, Sk)
        s = s - jnp.max(s, axis=-1, keepdims=True)
        p = jnp.exp(s)
        p = p * pl.reciprocal(jnp.sum(p, axis=-1, keepdims=True),
                              approx=True)                         # EUP slot

        o = jnp.einsum("bqk,bkd->bqd", p.astype(cdt), vh.astype(cdt),
                       preferred_element_type=jnp.float32)        # (Bt*H, S, dh)
        o = jnp.swapaxes(o.reshape(Bt, H, S, dh), 1, 2).reshape(Bt * S, D)
        return jnp.dot(o.astype(cdt), wo[...],
                       preferred_element_type=jnp.float32) + bo

    def ln(v, g, b, eps=1e-5):
        mu = jnp.mean(v, axis=-1, keepdims=True)
        var = jnp.mean((v - mu) ** 2, axis=-1, keepdims=True)
        return (v - mu) * jax.lax.rsqrt(var + eps) * g + b

    # self-attention block + post-norm
    sa = attend(x, x, S, sa_wq, sa_wk, sa_wv, sa_wo,
                vec[0:1, :], vec[1:2, :], vec[2:3, :], vec[3:4, :])
    x = ln(x + sa, vec[9:10, :], vec[10:11, :])

    # cross-attention block + post-norm
    ca = attend(x, mem, Sm, ca_wq, ca_wk, ca_wv, ca_wo,
                vec[4:5, :], vec[5:6, :], vec[6:7, :], vec[7:8, :])
    x = ln(x + ca, vec[11:12, :], vec[12:13, :])

    # feed-forward (ReLU) block + post-norm
    h = jnp.maximum(
        jnp.dot(x.astype(cdt), l1_w[...],
                preferred_element_type=jnp.float32) + l1_b[...], 0.0)
    ff = jnp.dot(h.astype(cdt), l2_w[...],
                 preferred_element_type=jnp.float32) + vec[8:9, :]
    x = ln(x + ff, vec[13:14, :], vec[14:15, :])

    out_ref[...] = x.reshape(Bt, S, D).astype(out_ref.dtype)


def linear_kernel(x_ref, w_ref, b_ref, o_ref, *, compute_dtype):
    o_ref[...] = (jnp.dot(x_ref[...].astype(compute_dtype), w_ref[...],
                          preferred_element_type=jnp.float32)
                  + b_ref[...]).astype(o_ref.dtype)


# ---------------------------------------------------------------------------
# Wrappers
# ---------------------------------------------------------------------------
def transformer_decoder_layers(x, memory, layers, nhead,
                               compute_dtype=jnp.bfloat16, batch_tiles=None):
    """Run all decoder layers in a single fused pallas_call."""
    B, S, D = x.shape
    Sm = memory.shape[1]
    L = layers["sa_wq"].shape[0]
    dff = layers["l1_w"].shape[-1]
    dh = D // nhead
    scale = 1.0 / math.sqrt(dh)

    if batch_tiles is None:
        batch_tiles = _default_batch_tiles(B)
    batch_tiles = max(1, min(batch_tiles, B))
    while B % batch_tiles:
        batch_tiles -= 1
    Bt = B // batch_tiles

    # matmul weights in bf16 (MXU peak, halved weight DMA); scale folded into wq
    sa_wq = (layers["sa_wq"] * scale).astype(compute_dtype)
    ca_wq = (layers["ca_wq"] * scale).astype(compute_dtype)
    sa_wk = layers["sa_wk"].astype(compute_dtype)
    sa_wv = layers["sa_wv"].astype(compute_dtype)
    sa_wo = layers["sa_wo"].astype(compute_dtype)
    ca_wk = layers["ca_wk"].astype(compute_dtype)
    ca_wv = layers["ca_wv"].astype(compute_dtype)
    ca_wo = layers["ca_wo"].astype(compute_dtype)
    l1_w = layers["l1_w"].astype(compute_dtype)
    l2_w = layers["l2_w"].astype(compute_dtype)
    l1_b = layers["l1_b"].astype(jnp.float32)                    # (L, 1, dff)

    # pack the 15 (1, D) bias / LayerNorm vectors into one (L, 16, D) f32 slab
    zpad = jnp.zeros((L, 1, D), jnp.float32)
    vecs = jnp.concatenate([
        layers["sa_bq"] * scale, layers["sa_bk"], layers["sa_bv"], layers["sa_bo"],
        layers["ca_bq"] * scale, layers["ca_bk"], layers["ca_bv"], layers["ca_bo"],
        layers["l2_b"],
        layers["n1_g"], layers["n1_b"], layers["n2_g"], layers["n2_b"],
        layers["n3_g"], layers["n3_b"], zpad,
    ], axis=1).astype(jnp.float32)                               # (L, 16, D)

    mem_bf16 = memory.astype(compute_dtype)

    # VMEM budget: double-buffered blocks + in-kernel f32 temporaries + headroom,
    # clamped to 75% of physical VMEM (~48 MiB on v7x, ~96 MiB on v5e/v6e).
    w_bytes = (8 * D * D + 2 * D * dff) * 2 + 16 * D * 4 + dff * 4
    act_bytes = 2 * Bt * S * D * 4 + Bt * Sm * D * 2
    tmp_bytes = 4 * (3 * Bt * S * D + 2 * Bt * Sm * D
                     + 2 * Bt * nhead * S * max(S, Sm)
                     + Bt * S * dff)
    needed = 2 * (w_bytes + act_bytes) + tmp_bytes + (8 << 20)
    cap = (_physical_vmem_bytes() * 3) // 4
    vmem_limit = int(min(max(needed, 32 << 20), cap))

    w_dd = pl.BlockSpec((None, D, D), lambda b, l: (l, 0, 0))
    in_specs = [
        pl.BlockSpec((Bt, S, D), lambda b, l: (b, 0, 0)),
        pl.BlockSpec((Bt, Sm, D), lambda b, l: (b, 0, 0)),
        w_dd, w_dd, w_dd, w_dd,            # self-attn q/k/v/o weights
        w_dd, w_dd, w_dd, w_dd,            # cross-attn q/k/v/o weights
        pl.BlockSpec((None, D, dff), lambda b, l: (l, 0, 0)),
        pl.BlockSpec((None, dff, D), lambda b, l: (l, 0, 0)),
        pl.BlockSpec((None, 1, dff), lambda b, l: (l, 0, 0)),
        pl.BlockSpec((None, 16, D), lambda b, l: (l, 0, 0)),
    ]

    return pl.pallas_call(
        partial(fused_decoder_kernel, nhead=nhead, compute_dtype=compute_dtype),
        out_shape=jax.ShapeDtypeStruct((B, S, D), x.dtype),
        grid=(batch_tiles, L),
        in_specs=in_specs,
        out_specs=pl.BlockSpec((Bt, S, D), lambda b, l: (b, 0, 0)),
        input_output_aliases={0: 0},
        compiler_params=pltpu.CompilerParams(
            dimension_semantics=("parallel", "arbitrary"),
            vmem_limit_bytes=vmem_limit),
    )(x, mem_bf16, sa_wq, sa_wk, sa_wv, sa_wo,
      ca_wq, ca_wk, ca_wv, ca_wo, l1_w, l2_w, l1_b, vecs)


def output_projection(x2d, w_t, b, compute_dtype=jnp.bfloat16,
                      tile_m=512, tile_n=512):
    """y = x @ W + b, tiled over rows and a lane-dense (128-padded) vocab."""
    M, K = x2d.shape
    V = w_t.shape[1]
    tn = min(tile_n, ((V + 127) // 128) * 128)       # multiple of 128
    Vp = pl.cdiv(V, tn) * tn
    tm = min(tile_m, ((M + 7) // 8) * 8)             # multiple of 8
    Mp = pl.cdiv(M, tm) * tm
    if Vp != V:
        w_t = jnp.pad(w_t, ((0, 0), (0, Vp - V)))
        b = jnp.pad(b, ((0, 0), (0, Vp - V)))
    if Mp != M:
        x2d = jnp.pad(x2d, ((0, Mp - M), (0, 0)))

    out = pl.pallas_call(
        partial(linear_kernel, compute_dtype=compute_dtype),
        out_shape=jax.ShapeDtypeStruct((Mp, Vp), x2d.dtype),
        grid=(Mp // tm, Vp // tn),
        in_specs=[pl.BlockSpec((tm, K), lambda i, j: (i, 0)),
                  pl.BlockSpec((K, tn), lambda i, j: (0, j)),
                  pl.BlockSpec((1, tn), lambda i, j: (0, j))],
        out_specs=pl.BlockSpec((tm, tn), lambda i, j: (i, j)),
        compiler_params=pltpu.CompilerParams(
            dimension_semantics=("parallel", "parallel")),
    )(x2d, w_t.astype(compute_dtype), b)
    return out[:M, :V]


def positional_encoding(max_len, d_model):
    assert d_model % 2 == 0, "sinusoidal positional encoding needs even d_model"
    pos = jnp.arange(max_len, dtype=jnp.float32)[:, None]
    div = jnp.exp(jnp.arange(0, d_model, 2, dtype=jnp.float32)
                  * -(math.log(10000.0) / d_model))
    enc = jnp.zeros((max_len, d_model), jnp.float32)
    enc = enc.at[:, 0::2].set(jnp.sin(pos * div))
    enc = enc.at[:, 1::2].set(jnp.cos(pos * div))
    return enc


def transformer_decoder_forward(trg, memory, params, nhead,
                                compute_dtype=jnp.bfloat16):
    d_model = params["emb"].shape[1]
    # embedding lookup + scaling + positional encoding (glue, plain JAX)
    x = params["emb"][trg] * math.sqrt(d_model)
    x = x + params["pos"][: trg.shape[1]][None, :, :]
    x = transformer_decoder_layers(x, memory, params["layers"], nhead,
                                   compute_dtype)
    B, S, D = x.shape
    out = output_projection(x.reshape(B * S, D), params["out_w"],
                            params["out_b"], compute_dtype)
    return out.reshape(B, S, -1)


def init_params(key, vocab, d_model, nhead, nlayers, dff):
    assert d_model % nhead == 0
    keys = jax.random.split(key, 2 + nlayers)

    def nrm(k, shape, scale=0.02):
        return scale * jax.random.normal(k, shape, jnp.float32)

    params = {
        "emb": nrm(keys[0], (vocab, d_model)),
        "pos": positional_encoding(5000, d_model),
        # output projection weight pre-transposed: (d_model, vocab)
        "out_w": nrm(keys[1], (d_model, vocab)),
        "out_b": jnp.zeros((1, vocab), jnp.float32),
    }

    layer_list = []
    for i in range(nlayers):
        lk = jax.random.split(keys[2 + i], 10)
        lp = {
            # all matmul weights stored pre-transposed: (in_features, out_features)
            "sa_wq": nrm(lk[0], (d_model, d_model)),
            "sa_wk": nrm(lk[1], (d_model, d_model)),
            "sa_wv": nrm(lk[2], (d_model, d_model)),
            "sa_wo": nrm(lk[3], (d_model, d_model)),
            "sa_bq": jnp.zeros((1, d_model), jnp.float32),
            "sa_bk": jnp.zeros((1, d_model), jnp.float32),
            "sa_bv": jnp.zeros((1, d_model), jnp.float32),
            "sa_bo": jnp.zeros((1, d_model), jnp.float32),
            "ca_wq": nrm(lk[4], (d_model, d_model)),
            "ca_wk": nrm(lk[5], (d_model, d_model)),
            "ca_wv": nrm(lk[6], (d_model, d_model)),
            "ca_wo": nrm(lk[7], (d_model, d_model)),
            "ca_bq": jnp.zeros((1, d_model), jnp.float32),
            "ca_bk": jnp.zeros((1, d_model), jnp.float32),
            "ca_bv": jnp.zeros((1, d_model), jnp.float32),
            "ca_bo": jnp.zeros((1, d_model), jnp.float32),
            "l1_w": nrm(lk[8], (d_model, dff)),
            "l1_b": jnp.zeros((1, dff), jnp.float32),
            "l2_w": nrm(lk[9], (dff, d_model)),
            "l2_b": jnp.zeros((1, d_model), jnp.float32),
            "n1_g": jnp.ones((1, d_model), jnp.float32),
            "n1_b": jnp.zeros((1, d_model), jnp.float32),
            "n2_g": jnp.ones((1, d_model), jnp.float32),
            "n2_b": jnp.zeros((1, d_model), jnp.float32),
            "n3_g": jnp.ones((1, d_model), jnp.float32),
            "n3_b": jnp.zeros((1, d_model), jnp.float32),
        }
        layer_list.append(lp)

    # stack per-layer params along a leading layer axis for the fused kernel
    params["layers"] = {k: jnp.stack([lp[k] for lp in layer_list], axis=0)
                        for k in layer_list[0]}
    return params


if __name__ == "__main__":
    # small but lane-friendly shapes: d_model a multiple of 128
    vocab_size, d_model, nhead, num_layers, dim_ff = 50, 128, 4, 2, 256
    B, S_tgt, S_mem = 2, 8, 16

    key = jax.random.PRNGKey(0)
    k_trg, k_mem, k_par = jax.random.split(key, 3)
    trg = jax.random.randint(k_trg, (B, S_tgt), 0, vocab_size, dtype=jnp.int32)
    memory = jax.random.normal(k_mem, (B, S_mem, d_model), jnp.float32)
    params = init_params(k_par, vocab_size, d_model, nhead, num_layers, dim_ff)

    out = transformer_decoder_forward(trg, memory, params, nhead)
    out = jax.block_until_ready(out)
    assert out.shape == (B, S_tgt, vocab_size)
    assert bool(jnp.all(jnp.isfinite(out)))
    print("KERNEL_OK")
</pallas_src>

<mosaic_0001>
module attributes {stable_mosaic.version = 11 : i64} {
  func.func @fused_decoder_kernel(%arg0: i32, %arg1: i32, %arg2: memref<2x8x128xf32, #tpu.memory_space<vmem>>, %arg3: memref<2x16x128xbf16, #tpu.memory_space<vmem>>, %arg4: memref<1x128x128xbf16, #tpu.memory_space<vmem>>, %arg5: memref<1x128x128xbf16, #tpu.memory_space<vmem>>, %arg6: memref<1x128x128xbf16, #tpu.memory_space<vmem>>, %arg7: memref<1x128x128xbf16, #tpu.memory_space<vmem>>, %arg8: memref<1x128x128xbf16, #tpu.memory_space<vmem>>, %arg9: memref<1x128x128xbf16, #tpu.memory_space<vmem>>, %arg10: memref<1x128x128xbf16, #tpu.memory_space<vmem>>, %arg11: memref<1x128x128xbf16, #tpu.memory_space<vmem>>, %arg12: memref<1x128x256xbf16, #tpu.memory_space<vmem>>, %arg13: memref<1x256x128xbf16, #tpu.memory_space<vmem>>, %arg14: memref<1x1x256xf32, #tpu.memory_space<vmem>>, %arg15: memref<1x16x128xf32, #tpu.memory_space<vmem>>, %arg16: memref<2x8x128xf32, #tpu.memory_space<vmem>>) attributes {dimension_semantics = [#tpu.dimension_semantics<parallel>, #tpu.dimension_semantics<arbitrary>], iteration_bounds = array<i64: 1, 2>, scalar_prefetch = 0 : i64, scratch_operands = 0 : i64, tpu.core_type = #tpu.core_type<tc>, window_params = [{transform_indices = @transform_0, window_bounds = array<i64: 2, 8, 128>}, {transform_indices = @transform_1, window_bounds = array<i64: 2, 16, 128>}, {transform_indices = @transform_2, window_bounds = array<i64: 1, 128, 128>}, {transform_indices = @transform_3, window_bounds = array<i64: 1, 128, 128>}, {transform_indices = @transform_4, window_bounds = array<i64: 1, 128, 128>}, {transform_indices = @transform_5, window_bounds = array<i64: 1, 128, 128>}, {transform_indices = @transform_6, window_bounds = array<i64: 1, 128, 128>}, {transform_indices = @transform_7, window_bounds = array<i64: 1, 128, 128>}, {transform_indices = @transform_8, window_bounds = array<i64: 1, 128, 128>}, {transform_indices = @transform_9, window_bounds = array<i64: 1, 128, 128>}, {transform_indices = @transform_10, window_bounds = array<i64: 1, 128, 256>}, {transform_indices = @transform_11, window_bounds = array<i64: 1, 256, 128>}, {transform_indices = @transform_12, window_bounds = array<i64: 1, 1, 256>}, {transform_indices = @transform_13, window_bounds = array<i64: 1, 16, 128>}, {transform_indices = @transform_14, window_bounds = array<i64: 2, 8, 128>}]} {
    %c0_i32 = arith.constant 0 : i32
    %0 = arith.cmpi eq, %arg1, %c0_i32 : i32
    %1 = arith.extui %0 : i1 to i32
    %c0_i32_0 = arith.constant 0 : i32
    %2 = arith.cmpi ne, %1, %c0_i32_0 : i32
    scf.if %2 {
      %c0_78 = arith.constant 0 : index
      %c0_79 = arith.constant 0 : index
      %c0_80 = arith.constant 0 : index
      %213 = vector.load %arg2[%c0_78, %c0_79, %c0_80] : memref<2x8x128xf32, #tpu.memory_space<vmem>>, vector<2x8x128xf32>
      %c0_81 = arith.constant 0 : index
      %c0_82 = arith.constant 0 : index
      %c0_83 = arith.constant 0 : index
      %214 = vector.load %arg16[%c0_81, %c0_82, %c0_83] : memref<2x8x128xf32, #tpu.memory_space<vmem>>, vector<2x8x128xf32>
      tpu.vector_store %arg16[%c0_81, %c0_82, %c0_83], %213 {strides = array<i32>} : memref<2x8x128xf32, #tpu.memory_space<vmem>>, vector<2x8x128xf32>,
    } else {
    }
    %c0 = arith.constant 0 : index
    %c0_1 = arith.constant 0 : index
    %c0_2 = arith.constant 0 : index
    %3 = vector.load %arg16[%c0, %c0_1, %c0_2] : memref<2x8x128xf32, #tpu.memory_space<vmem>>, vector<2x8x128xf32>
    %4 = vector.shape_cast %3 : vector<2x8x128xf32> to vector<16x128xf32>
    %c0_3 = arith.constant 0 : index
    %c0_4 = arith.constant 0 : index
    %c0_5 = arith.constant 0 : index
    %5 = vector.load %arg3[%c0_3, %c0_4, %c0_5] : memref<2x16x128xbf16, #tpu.memory_space<vmem>>, vector<2x16x128xbf16>
    %6 = vector.shape_cast %5 : vector<2x16x128xbf16> to vector<32x128xbf16>
    %c0_6 = arith.constant 0 : index
    %c0_7 = arith.constant 0 : index
    %c0_8 = arith.constant 0 : index
    %7 = vector.load %arg15[%c0_6, %c0_7, %c0_8] : memref<1x16x128xf32, #tpu.memory_space<vmem>>, vector<1x16x128xf32>
    %8 = vector.shape_cast %7 : vector<1x16x128xf32> to vector<16x128xf32>
    %9 = vector.extract_strided_slice %8 {offsets = [0, 0], sizes = [1, 128], strides = [1, 1]} : vector<16x128xf32> to vector<1x128xf32>
    %10 = vector.extract_strided_slice %8 {offsets = [1, 0], sizes = [1, 128], strides = [1, 1]} : vector<16x128xf32> to vector<1x128xf32>
    %11 = vector.extract_strided_slice %8 {offsets = [2, 0], sizes = [1, 128], strides = [1, 1]} : vector<16x128xf32> to vector<1x128xf32>
    %12 = vector.extract_strided_slice %8 {offsets = [3, 0], sizes = [1, 128], strides = [1, 1]} : vector<16x128xf32> to vector<1x128xf32>
    %13 = arith.truncf %4 : vector<16x128xf32> to vector<16x128xbf16>
    %c0_9 = arith.constant 0 : index
    %c0_10 = arith.constant 0 : index
    %c0_11 = arith.constant 0 : index
    %14 = vector.load %arg4[%c0_9, %c0_10, %c0_11] : memref<1x128x128xbf16, #tpu.memory_space<vmem>>, vector<1x128x128xbf16>
    %15 = vector.shape_cast %14 : vector<1x128x128xbf16> to vector<128x128xbf16>
    %cst = arith.constant dense<0.000000e+00> : vector<16x128xf32>
    %16 = tpu.matmul %13, %15, %cst {dimension_numbers = #tpu.dot_dimension_numbers<[1], [0], [0], [1], [0, 0, 1, 1], [], []>} : vector<16x128xbf16>, vector<128x128xbf16>, vector<16x128xf32> -> vector<16x128xf32>
    %17 = vector.broadcast %9 : vector<1x128xf32> to vector<16x128xf32>
    %18 = arith.addf %16, %17 : vector<16x128xf32>
    %19 = arith.truncf %4 : vector<16x128xf32> to vector<16x128xbf16>
    %c0_12 = arith.constant 0 : index
    %c0_13 = arith.constant 0 : index
    %c0_14 = arith.constant 0 : index
    %20 = vector.load %arg5[%c0_12, %c0_13, %c0_14] : memref<1x128x128xbf16, #tpu.memory_space<vmem>>, vector<1x128x128xbf16>
    %21 = vector.shape_cast %20 : vector<1x128x128xbf16> to vector<128x128xbf16>
    %cst_15 = arith.constant dense<0.000000e+00> : vector<16x128xf32>
    %22 = tpu.matmul %19, %21, %cst_15 {dimension_numbers = #tpu.dot_dimension_numbers<[1], [0], [0], [1], [0, 0, 1, 1], [], []>} : vector<16x128xbf16>, vector<128x128xbf16>, vector<16x128xf32> -> vector<16x128xf32>
    %23 = vector.broadcast %10 : vector<1x128xf32> to vector<16x128xf32>
    %24 = arith.addf %22, %23 : vector<16x128xf32>
    %25 = arith.truncf %4 : vector<16x128xf32> to vector<16x128xbf16>
    %c0_16 = arith.constant 0 : index
    %c0_17 = arith.constant 0 : index
    %c0_18 = arith.constant 0 : index
    %26 = vector.load %arg6[%c0_16, %c0_17, %c0_18] : memref<1x128x128xbf16, #tpu.memory_space<vmem>>, vector<1x128x128xbf16>
    %27 = vector.shape_cast %26 : vector<1x128x128xbf16> to vector<128x128xbf16>
    %cst_19 = arith.constant dense<0.000000e+00> : vector<16x128xf32>
    %28 = tpu.matmul %25, %27, %cst_19 {dimension_numbers = #tpu.dot_dimension_numbers<[1], [0], [0], [1], [0, 0, 1, 1], [], []>} : vector<16x128xbf16>, vector<128x128xbf16>, vector<16x128xf32> -> vector<16x128xf32>
    %29 = vector.broadcast %11 : vector<1x128xf32> to vector<16x128xf32>
    %30 = arith.addf %28, %29 : vector<16x128xf32>
    %31 = vector.shape_cast %18 : vector<16x128xf32> to vector<2x8x4x32xf32>
    %32 = tpu.transpose %31, [0, 2, 1, 3] : vector<2x8x4x32xf32> -> vector<2x4x8x32xf32>
    %33 = vector.shape_cast %32 : vector<2x4x8x32xf32> to vector<8x8x32xf32>
    %34 = vector.shape_cast %24 : vector<16x128xf32> to vector<2x8x4x32xf32>
    %35 = tpu.transpose %34, [0, 2, 1, 3] : vector<2x8x4x32xf32> -> vector<2x4x8x32xf32>
    %36 = vector.shape_cast %35 : vector<2x4x8x32xf32> to vector<8x8x32xf32>
    %37 = vector.shape_cast %30 : vector<16x128xf32> to vector<2x8x4x32xf32>
    %38 = tpu.transpose %37, [0, 2, 1, 3] : vector<2x8x4x32xf32> -> vector<2x4x8x32xf32>
    %39 = vector.shape_cast %38 : vector<2x4x8x32xf32> to vector<8x8x32xf32>
    %40 = arith.truncf %33 : vector<8x8x32xf32> to vector<8x8x32xbf16>
    %41 = arith.truncf %36 : vector<8x8x32xf32> to vector<8x8x32xbf16>
    "tpu.trace_start"() <{level = 10 : i32, message = "bqd,bkd->bqk"}> : () -> ()
    %cst_20 = arith.constant dense<0.000000e+00> : vector<8x8x8xf32>
    %42 = tpu.matmul %40, %41, %cst_20 {dimension_numbers = #tpu.dot_dimension_numbers<[2], [2], [1], [1], [0, 0, 0, 1, 1, 1], [0], [0]>} : vector<8x8x32xbf16>, vector<8x8x32xbf16>, vector<8x8x8xf32> -> vector<8x8x8xf32>
    "tpu.trace_stop"() : () -> ()
    %cst_21 = arith.constant dense<0xFF800000> : vector<8x8xf32>
    %43 = vector.multi_reduction <maximumf>, %42, %cst_21 [2] : vector<8x8x8xf32> to vector<8x8xf32>
    %44 = vector.shape_cast %43 : vector<8x8xf32> to vector<8x8x1xf32>
    %45 = vector.broadcast %44 : vector<8x8x1xf32> to vector<8x8x8xf32>
    %46 = arith.subf %42, %45 : vector<8x8x8xf32>
    %47 = math.exp %46 : vector<8x8x8xf32>
    %cst_22 = arith.constant dense<0.000000e+00> : vector<8x8xf32>
    %48 = vector.multi_reduction <add>, %47, %cst_22 [2] : vector<8x8x8xf32> to vector<8x8xf32>
    %49 = vector.shape_cast %48 : vector<8x8xf32> to vector<8x8x1xf32>
    %50 = tpu.reciprocal %49 {approx = true} : vector<8x8x1xf32> -> vector<8x8x1xf32>
    %51 = vector.broadcast %50 : vector<8x8x1xf32> to vector<8x8x8xf32>
    %52 = arith.mulf %47, %51 : vector<8x8x8xf32>
    %53 = arith.truncf %52 : vector<8x8x8xf32> to vector<8x8x8xbf16>
    %54 = arith.truncf %39 : vector<8x8x32xf32> to vector<8x8x32xbf16>
    "tpu.trace_start"() <{level = 10 : i32, message = "bqk,bkd->bqd"}> : () -> ()
    %cst_23 = arith.constant dense<0.000000e+00> : vector<8x8x32xf32>
    %55 = tpu.matmul %53, %54, %cst_23 {dimension_numbers = #tpu.dot_dimension_numbers<[2], [1], [1], [2], [0, 0, 0, 1, 1, 2], [0], [0]>} : vector<8x8x8xbf16>, vector<8x8x32xbf16>, vector<8x8x32xf32> -> vector<8x8x32xf32>
    "tpu.trace_stop"() : () -> ()
    %56 = vector.shape_cast %55 : vector<8x8x32xf32> to vector<2x4x8x32xf32>
    %57 = tpu.transpose %56, [0, 2, 1, 3] : vector<2x4x8x32xf32> -> vector<2x8x4x32xf32>
    %58 = vector.shape_cast %57 : vector<2x8x4x32xf32> to vector<16x128xf32>
    %59 = arith.truncf %58 : vector<16x128xf32> to vector<16x128xbf16>
    %c0_24 = arith.constant 0 : index
    %c0_25 = arith.constant 0 : index
    %c0_26 = arith.constant 0 : index
    %60 = vector.load %arg7[%c0_24, %c0_25, %c0_26] : memref<1x128x128xbf16, #tpu.memory_space<vmem>>, vector<1x128x128xbf16>
    %61 = vector.shape_cast %60 : vector<1x128x128xbf16> to vector<128x128xbf16>
    %cst_27 = arith.constant dense<0.000000e+00> : vector<16x128xf32>
    %62 = tpu.matmul %59, %61, %cst_27 {dimension_numbers = #tpu.dot_dimension_numbers<[1], [0], [0], [1], [0, 0, 1, 1], [], []>} : vector<16x128xbf16>, vector<128x128xbf16>, vector<16x128xf32> -> vector<16x128xf32>
    %63 = vector.broadcast %12 : vector<1x128xf32> to vector<16x128xf32>
    %64 = arith.addf %62, %63 : vector<16x128xf32>
    %65 = arith.addf %4, %64 : vector<16x128xf32>
    %66 = vector.extract_strided_slice %8 {offsets = [9, 0], sizes = [1, 128], strides = [1, 1]} : vector<16x128xf32> to vector<1x128xf32>
    %67 = vector.extract_strided_slice %8 {offsets = [10, 0], sizes = [1, 128], strides = [1, 1]} : vector<16x128xf32> to vector<1x128xf32>
    %cst_28 = arith.constant dense<0.000000e+00> : vector<16xf32>
    %68 = vector.multi_reduction <add>, %65, %cst_28 [1] : vector<16x128xf32> to vector<16xf32>
    %69 = vector.shape_cast %68 : vector<16xf32> to vector<16x1xf32>
    %cst_29 = arith.constant 1.280000e+02 : f32
    %70 = vector.broadcast %cst_29 : f32 to vector<16x1xf32>
    %71 = arith.divf %69, %70 : vector<16x1xf32>
    %72 = vector.broadcast %71 : vector<16x1xf32> to vector<16x128xf32>
    %73 = arith.subf %65, %72 : vector<16x128xf32>
    %74 = arith.mulf %73, %73 : vector<16x128xf32>
    %cst_30 = arith.constant dense<0.000000e+00> : vector<16xf32>
    %75 = vector.multi_reduction <add>, %74, %cst_30 [1] : vector<16x128xf32> to vector<16xf32>
    %76 = vector.shape_cast %75 : vector<16xf32> to vector<16x1xf32>
    %cst_31 = arith.constant 1.280000e+02 : f32
    %77 = vector.broadcast %cst_31 : f32 to vector<16x1xf32>
    %78 = arith.divf %76, %77 : vector<16x1xf32>
    %79 = vector.broadcast %71 : vector<16x1xf32> to vector<16x128xf32>
    %80 = arith.subf %65, %79 : vector<16x128xf32>
    %cst_32 = arith.constant 9.99999974E-6 : f32
    %81 = vector.broadcast %cst_32 : f32 to vector<16x1xf32>
    %82 = arith.addf %78, %81 : vector<16x1xf32>
    %83 = math.rsqrt %82 : vector<16x1xf32>
    %84 = vector.broadcast %83 : vector<16x1xf32> to vector<16x128xf32>
    %85 = arith.mulf %80, %84 : vector<16x128xf32>
    %86 = vector.broadcast %66 : vector<1x128xf32> to vector<16x128xf32>
    %87 = arith.mulf %85, %86 : vector<16x128xf32>
    %88 = vector.broadcast %67 : vector<1x128xf32> to vector<16x128xf32>
    %89 = arith.addf %87, %88 : vector<16x128xf32>
    %90 = vector.extract_strided_slice %8 {offsets = [4, 0], sizes = [1, 128], strides = [1, 1]} : vector<16x128xf32> to vector<1x128xf32>
    %91 = vector.extract_strided_slice %8 {offsets = [5, 0], sizes = [1, 128], strides = [1, 1]} : vector<16x128xf32> to vector<1x128xf32>
    %92 = vector.extract_strided_slice %8 {offsets = [6, 0], sizes = [1, 128], strides = [1, 1]} : vector<16x128xf32> to vector<1x128xf32>
    %93 = vector.extract_strided_slice %8 {offsets = [7, 0], sizes = [1, 128], strides = [1, 1]} : vector<16x128xf32> to vector<1x128xf32>
    %94 = arith.truncf %89 : vector<16x128xf32> to vector<16x128xbf16>
    %c0_33 = arith.constant 0 : index
    %c0_34 = arith.constant 0 : index
    %c0_35 = arith.constant 0 : index
    %95 = vector.load %arg8[%c0_33, %c0_34, %c0_35] : memref<1x128x128xbf16, #tpu.memory_space<vmem>>, vector<1x128x128xbf16>
    %96 = vector.shape_cast %95 : vector<1x128x128xbf16> to vector<128x128xbf16>
    %cst_36 = arith.constant dense<0.000000e+00> : vector<16x128xf32>
    %97 = tpu.matmul %94, %96, %cst_36 {dimension_numbers = #tpu.dot_dimension_numbers<[1], [0], [0], [1], [0, 0, 1, 1], [], []>} : vector<16x128xbf16>, vector<128x128xbf16>, vector<16x128xf32> -> vector<16x128xf32>
    %98 = vector.broadcast %90 : vector<1x128xf32> to vector<16x128xf32>
    %99 = arith.addf %97, %98 : vector<16x128xf32>
    %c0_37 = arith.constant 0 : index
    %c0_38 = arith.constant 0 : index
    %c0_39 = arith.constant 0 : index
    %100 = vector.load %arg9[%c0_37, %c0_38, %c0_39] : memref<1x128x128xbf16, #tpu.memory_space<vmem>>, vector<1x128x128xbf16>
    %101 = vector.shape_cast %100 : vector<1x128x128xbf16> to vector<128x128xbf16>
    %cst_40 = arith.constant dense<0.000000e+00> : vector<32x128xf32>
    %102 = tpu.matmul %6, %101, %cst_40 {dimension_numbers = #tpu.dot_dimension_numbers<[1], [0], [0], [1], [0, 0, 1, 1], [], []>} : vector<32x128xbf16>, vector<128x128xbf16>, vector<32x128xf32> -> vector<32x128xf32>
    %103 = vector.broadcast %91 : vector<1x128xf32> to vector<32x128xf32>
    %104 = arith.addf %102, %103 : vector<32x128xf32>
    %c0_41 = arith.constant 0 : index
    %c0_42 = arith.constant 0 : index
    %c0_43 = arith.constant 0 : index
    %105 = vector.load %arg10[%c0_41, %c0_42, %c0_43] : memref<1x128x128xbf16, #tpu.memory_space<vmem>>, vector<1x128x128xbf16>
    %106 = vector.shape_cast %105 : vector<1x128x128xbf16> to vector<128x128xbf16>
    %cst_44 = arith.constant dense<0.000000e+00> : vector<32x128xf32>
    %107 = tpu.matmul %6, %106, %cst_44 {dimension_numbers = #tpu.dot_dimension_numbers<[1], [0], [0], [1], [0, 0, 1, 1], [], []>} : vector<32x128xbf16>, vector<128x128xbf16>, vector<32x128xf32> -> vector<32x128xf32>
    %108 = vector.broadcast %92 : vector<1x128xf32> to vector<32x128xf32>
    %109 = arith.addf %107, %108 : vector<32x128xf32>
    %110 = vector.shape_cast %99 : vector<16x128xf32> to vector<2x8x4x32xf32>
    %111 = tpu.transpose %110, [0, 2, 1, 3] : vector<2x8x4x32xf32> -> vector<2x4x8x32xf32>
    %112 = vector.shape_cast %111 : vector<2x4x8x32xf32> to vector<8x8x32xf32>
    %113 = vector.shape_cast %104 : vector<32x128xf32> to vector<2x16x4x32xf32>
    %114 = tpu.transpose %113, [0, 2, 1, 3] : vector<2x16x4x32xf32> -> vector<2x4x16x32xf32>
    %115 = vector.shape_cast %114 : vector<2x4x16x32xf32> to vector<8x16x32xf32>
    %116 = vector.shape_cast %109 : vector<32x128xf32> to vector<2x16x4x32xf32>
    %117 = tpu.transpose %116, [0, 2, 1, 3] : vector<2x16x4x32xf32> -> vector<2x4x16x32xf32>
    %118 = vector.shape_cast %117 : vector<2x4x16x32xf32> to vector<8x16x32xf32>
    %119 = arith.truncf %112 : vector<8x8x32xf32> to vector<8x8x32xbf16>
    %120 = arith.truncf %115 : vector<8x16x32xf32> to vector<8x16x32xbf16>
    "tpu.trace_start"() <{level = 10 : i32, message = "bqd,bkd->bqk"}> : () -> ()
    %cst_45 = arith.constant dense<0.000000e+00> : vector<8x8x16xf32>
    %121 = tpu.matmul %119, %120, %cst_45 {dimension_numbers = #tpu.dot_dimension_numbers<[2], [2], [1], [1], [0, 0, 0, 1, 1, 1], [0], [0]>} : vector<8x8x32xbf16>, vector<8x16x32xbf16>, vector<8x8x16xf32> -> vector<8x8x16xf32>
    "tpu.trace_stop"() : () -> ()
    %cst_46 = arith.constant dense<0xFF800000> : vector<8x8xf32>
    %122 = vector.multi_reduction <maximumf>, %121, %cst_46 [2] : vector<8x8x16xf32> to vector<8x8xf32>
    %123 = vector.shape_cast %122 : vector<8x8xf32> to vector<8x8x1xf32>
    %124 = vector.broadcast %123 : vector<8x8x1xf32> to vector<8x8x16xf32>
    %125 = arith.subf %121, %124 : vector<8x8x16xf32>
    %126 = math.exp %125 : vector<8x8x16xf32>
    %cst_47 = arith.constant dense<0.000000e+00> : vector<8x8xf32>
    %127 = vector.multi_reduction <add>, %126, %cst_47 [2] : vector<8x8x16xf32> to vector<8x8xf32>
    %128 = vector.shape_cast %127 : vector<8x8xf32> to vector<8x8x1xf32>
    %129 = tpu.reciprocal %128 {approx = true} : vector<8x8x1xf32> -> vector<8x8x1xf32>
    %130 = vector.broadcast %129 : vector<8x8x1xf32> to vector<8x8x16xf32>
    %131 = arith.mulf %126, %130 : vector<8x8x16xf32>
    %132 = arith.truncf %131 : vector<8x8x16xf32> to vector<8x8x16xbf16>
    %133 = arith.truncf %118 : vector<8x16x32xf32> to vector<8x16x32xbf16>
    "tpu.trace_start"() <{level = 10 : i32, message = "bqk,bkd->bqd"}> : () -> ()
    %cst_48 = arith.constant dense<0.000000e+00> : vector<8x8x32xf32>
    %134 = tpu.matmul %132, %133, %cst_48 {dimension_numbers = #tpu.dot_dimension_numbers<[2], [1], [1], [2], [0, 0, 0, 1, 1, 2], [0], [0]>} : vector<8x8x16xbf16>, vector<8x16x32xbf16>, vector<8x8x32xf32> -> vector<8x8x32xf32>
    "tpu.trace_stop"() : () -> ()
    %135 = vector.shape_cast %134 : vector<8x8x32xf32> to vector<2x4x8x32xf32>
    %136 = tpu.transpose %135, [0, 2, 1, 3] : vector<2x4x8x32xf32> -> vector<2x8x4x32xf32>
    %137 = vector.shape_cast %136 : vector<2x8x4x32xf32> to vector<16x128xf32>
    %138 = arith.truncf %137 : vector<16x128xf32> to vector<16x128xbf16>
    %c0_49 = arith.constant 0 : index
    %c0_50 = arith.constant 0 : index
    %c0_51 = arith.constant 0 : index
    %139 = vector.load %arg11[%c0_49, %c0_50, %c0_51] : memref<1x128x128xbf16, #tpu.memory_space<vmem>>, vector<1x128x128xbf16>
    %140 = vector.shape_cast %139 : vector<1x128x128xbf16> to vector<128x128xbf16>
    %cst_52 = arith.constant dense<0.000000e+00> : vector<16x128xf32>
    %141 = tpu.matmul %138, %140, %cst_52 {dimension_numbers = #tpu.dot_dimension_numbers<[1], [0], [0], [1], [0, 0, 1, 1], [], []>} : vector<16x128xbf16>, vector<128x128xbf16>, vector<16x128xf32> -> vector<16x128xf32>
    %142 = vector.broadcast %93 : vector<1x128xf32> to vector<16x128xf32>
    %143 = arith.addf %141, %142 : vector<16x128xf32>
    %144 = arith.addf %89, %143 : vector<16x128xf32>
    %145 = vector.extract_strided_slice %8 {offsets = [11, 0], sizes = [1, 128], strides = [1, 1]} : vector<16x128xf32> to vector<1x128xf32>
    %146 = vector.extract_strided_slice %8 {offsets = [12, 0], sizes = [1, 128], strides = [1, 1]} : vector<16x128xf32> to vector<1x128xf32>
    %cst_53 = arith.constant dense<0.000000e+00> : vector<16xf32>
    %147 = vector.multi_reduction <add>, %144, %cst_53 [1] : vector<16x128xf32> to vector<16xf32>
    %148 = vector.shape_cast %147 : vector<16xf32> to vector<16x1xf32>
    %cst_54 = arith.constant 1.280000e+02 : f32
    %149 = vector.broadcast %cst_54 : f32 to vector<16x1xf32>
    %150 = arith.divf %148, %149 : vector<16x1xf32>
    %151 = vector.broadcast %150 : vector<16x1xf32> to vector<16x128xf32>
    %152 = arith.subf %144, %151 : vector<16x128xf32>
    %153 = arith.mulf %152, %152 : vector<16x128xf32>
    %cst_55 = arith.constant dense<0.000000e+00> : vector<16xf32>
    %154 = vector.multi_reduction <add>, %153, %cst_55 [1] : vector<16x128xf32> to vector<16xf32>
    %155 = vector.shape_cast %154 : vector<16xf32> to vector<16x1xf32>
    %cst_56 = arith.constant 1.280000e+02 : f32
    %156 = vector.broadcast %cst_56 : f32 to vector<16x1xf32>
    %157 = arith.divf %155, %156 : vector<16x1xf32>
    %158 = vector.broadcast %150 : vector<16x1xf32> to vector<16x128xf32>
    %159 = arith.subf %144, %158 : vector<16x128xf32>
    %cst_57 = arith.constant 9.99999974E-6 : f32
    %160 = vector.broadcast %cst_57 : f32 to vector<16x1xf32>
    %161 = arith.addf %157, %160 : vector<16x1xf32>
    %162 = math.rsqrt %161 : vector<16x1xf32>
    %163 = vector.broadcast %162 : vector<16x1xf32> to vector<16x128xf32>
    %164 = arith.mulf %159, %163 : vector<16x128xf32>
    %165 = vector.broadcast %145 : vector<1x128xf32> to vector<16x128xf32>
    %166 = arith.mulf %164, %165 : vector<16x128xf32>
    %167 = vector.broadcast %146 : vector<1x128xf32> to vector<16x128xf32>
    %168 = arith.addf %166, %167 : vector<16x128xf32>
    %169 = arith.truncf %168 : vector<16x128xf32> to vector<16x128xbf16>
    %c0_58 = arith.constant 0 : index
    %c0_59 = arith.constant 0 : index
    %c0_60 = arith.constant 0 : index
    %170 = vector.load %arg12[%c0_58, %c0_59, %c0_60] : memref<1x128x256xbf16, #tpu.memory_space<vmem>>, vector<1x128x256xbf16>
    %171 = vector.shape_cast %170 : vector<1x128x256xbf16> to vector<128x256xbf16>
    %cst_61 = arith.constant dense<0.000000e+00> : vector<16x256xf32>
    %172 = tpu.matmul %169, %171, %cst_61 {dimension_numbers = #tpu.dot_dimension_numbers<[1], [0], [0], [1], [0, 0, 1, 1], [], []>} : vector<16x128xbf16>, vector<128x256xbf16>, vector<16x256xf32> -> vector<16x256xf32>
    %c0_62 = arith.constant 0 : index
    %c0_63 = arith.constant 0 : index
    %c0_64 = arith.constant 0 : index
    %173 = vector.load %arg14[%c0_62, %c0_63, %c0_64] : memref<1x1x256xf32, #tpu.memory_space<vmem>>, vector<1x1x256xf32>
    %174 = vector.shape_cast %173 : vector<1x1x256xf32> to vector<1x256xf32>
    %175 = vector.broadcast %174 : vector<1x256xf32> to vector<16x256xf32>
    %176 = arith.addf %172, %175 : vector<16x256xf32>
    %cst_65 = arith.constant 0.000000e+00 : f32
    %177 = vector.broadcast %cst_65 : f32 to vector<16x256xf32>
    %178 = arith.maximumf %176, %177 : vector<16x256xf32>
    %179 = arith.truncf %178 : vector<16x256xf32> to vector<16x256xbf16>
    %c0_66 = arith.constant 0 : index
    %c0_67 = arith.constant 0 : index
    %c0_68 = arith.constant 0 : index
    %180 = vector.load %arg13[%c0_66, %c0_67, %c0_68] : memref<1x256x128xbf16, #tpu.memory_space<vmem>>, vector<1x256x128xbf16>
    %181 = vector.shape_cast %180 : vector<1x256x128xbf16> to vector<256x128xbf16>
    %cst_69 = arith.constant dense<0.000000e+00> : vector<16x128xf32>
    %182 = tpu.matmul %179, %181, %cst_69 {dimension_numbers = #tpu.dot_dimension_numbers<[1], [0], [0], [1], [0, 0, 1, 1], [], []>} : vector<16x256xbf16>, vector<256x128xbf16>, vector<16x128xf32> -> vector<16x128xf32>
    %183 = vector.extract_strided_slice %8 {offsets = [8, 0], sizes = [1, 128], strides = [1, 1]} : vector<16x128xf32> to vector<1x128xf32>
    %184 = vector.broadcast %183 : vector<1x128xf32> to vector<16x128xf32>
    %185 = arith.addf %182, %184 : vector<16x128xf32>
    %186 = arith.addf %168, %185 : vector<16x128xf32>
    %187 = vector.extract_strided_slice %8 {offsets = [13, 0], sizes = [1, 128], strides = [1, 1]} : vector<16x128xf32> to vector<1x128xf32>
    %188 = vector.extract_strided_slice %8 {offsets = [14, 0], sizes = [1, 128], strides = [1, 1]} : vector<16x128xf32> to vector<1x128xf32>
    %cst_70 = arith.constant dense<0.000000e+00> : vector<16xf32>
    %189 = vector.multi_reduction <add>, %186, %cst_70 [1] : vector<16x128xf32> to vector<16xf32>
    %190 = vector.shape_cast %189 : vector<16xf32> to vector<16x1xf32>
    %cst_71 = arith.constant 1.280000e+02 : f32
    %191 = vector.broadcast %cst_71 : f32 to vector<16x1xf32>
    %192 = arith.divf %190, %191 : vector<16x1xf32>
    %193 = vector.broadcast %192 : vector<16x1xf32> to vector<16x128xf32>
    %194 = arith.subf %186, %193 : vector<16x128xf32>
    %195 = arith.mulf %194, %194 : vector<16x128xf32>
    %cst_72 = arith.constant dense<0.000000e+00> : vector<16xf32>
    %196 = vector.multi_reduction <add>, %195, %cst_72 [1] : vector<16x128xf32> to vector<16xf32>
    %197 = vector.shape_cast %196 : vector<16xf32> to vector<16x1xf32>
    %cst_73 = arith.constant 1.280000e+02 : f32
    %198 = vector.broadcast %cst_73 : f32 to vector<16x1xf32>
    %199 = arith.divf %197, %198 : vector<16x1xf32>
    %200 = vector.broadcast %192 : vector<16x1xf32> to vector<16x128xf32>
    %201 = arith.subf %186, %200 : vector<16x128xf32>
    %cst_74 = arith.constant 9.99999974E-6 : f32
    %202 = vector.broadcast %cst_74 : f32 to vector<16x1xf32>
    %203 = arith.addf %199, %202 : vector<16x1xf32>
    %204 = math.rsqrt %203 : vector<16x1xf32>
    %205 = vector.broadcast %204 : vector<16x1xf32> to vector<16x128xf32>
    %206 = arith.mulf %201, %205 : vector<16x128xf32>
    %207 = vector.broadcast %187 : vector<1x128xf32> to vector<16x128xf32>
    %208 = arith.mulf %206, %207 : vector<16x128xf32>
    %209 = vector.broadcast %188 : vector<1x128xf32> to vector<16x128xf32>
    %210 = arith.addf %208, %209 : vector<16x128xf32>
    %211 = vector.shape_cast %210 : vector<16x128xf32> to vector<2x8x128xf32>
    %c0_75 = arith.constant 0 : index
    %c0_76 = arith.constant 0 : index
    %c0_77 = arith.constant 0 : index
    %212 = vector.load %arg16[%c0_75, %c0_76, %c0_77] : memref<2x8x128xf32, #tpu.memory_space<vmem>>, vector<2x8x128xf32>
    tpu.vector_store %arg16[%c0_75, %c0_76, %c0_77], %211 {strides = array<i32>} : memref<2x8x128xf32, #tpu.memory_space<vmem>>, vector<2x8x128xf32>,
    return
  }
  func.func @transform_0(%arg0: i32, %arg1: i32) -> (i32, i32, i32) {
    %c0_i32 = arith.constant 0 : i32
    %c0_i32_0 = arith.constant 0 : i32
    %c0_i32_1 = arith.constant 0 : i32
    return %arg0, %c0_i32, %c0_i32_0 : i32, i32, i32
  }
  func.func @transform_1(%arg0: i32, %arg1: i32) -> (i32, i32, i32) {
    %c0_i32 = arith.constant 0 : i32
    %c0_i32_0 = arith.constant 0 : i32
    %c0_i32_1 = arith.constant 0 : i32
    return %arg0, %c0_i32, %c0_i32_0 : i32, i32, i32
  }
  func.func @transform_2(%arg0: i32, %arg1: i32) -> (i32, i32, i32) {
    %c0_i32 = arith.constant 0 : i32
    %c0_i32_0 = arith.constant 0 : i32
    %c0_i32_1 = arith.constant 0 : i32
    return %arg1, %c0_i32, %c0_i32_0 : i32, i32, i32
  }
  func.func @transform_3(%arg0: i32, %arg1: i32) -> (i32, i32, i32) {
    %c0_i32 = arith.constant 0 : i32
    %c0_i32_0 = arith.constant 0 : i32
    %c0_i32_1 = arith.constant 0 : i32
    return %arg1, %c0_i32, %c0_i32_0 : i32, i32, i32
  }
  func.func @transform_4(%arg0: i32, %arg1: i32) -> (i32, i32, i32) {
    %c0_i32 = arith.constant 0 : i32
    %c0_i32_0 = arith.constant 0 : i32
    %c0_i32_1 = arith.constant 0 : i32
    return %arg1, %c0_i32, %c0_i32_0 : i32, i32, i32
  }
  func.func @transform_5(%arg0: i32, %arg1: i32) -> (i32, i32, i32) {
    %c0_i32 = arith.constant 0 : i32
    %c0_i32_0 = arith.constant 0 : i32
    %c0_i32_1 = arith.constant 0 : i32
    return %arg1, %c0_i32, %c0_i32_0 : i32, i32, i32
  }
  func.func @transform_6(%arg0: i32, %arg1: i32) -> (i32, i32, i32) {
    %c0_i32 = arith.constant 0 : i32
    %c0_i32_0 = arith.constant 0 : i32
    %c0_i32_1 = arith.constant 0 : i32
    return %arg1, %c0_i32, %c0_i32_0 : i32, i32, i32
  }
  func.func @transform_7(%arg0: i32, %arg1: i32) -> (i32, i32, i32) {
    %c0_i32 = arith.constant 0 : i32
    %c0_i32_0 = arith.constant 0 : i32
    %c0_i32_1 = arith.constant 0 : i32
    return %arg1, %c0_i32, %c0_i32_0 : i32, i32, i32
  }
  func.func @transform_8(%arg0: i32, %arg1: i32) -> (i32, i32, i32) {
    %c0_i32 = arith.constant 0 : i32
    %c0_i32_0 = arith.constant 0 : i32
    %c0_i32_1 = arith.constant 0 : i32
    return %arg1, %c0_i32, %c0_i32_0 : i32, i32, i32
  }
  func.func @transform_9(%arg0: i32, %arg1: i32) -> (i32, i32, i32) {
    %c0_i32 = arith.constant 0 : i32
    %c0_i32_0 = arith.constant 0 : i32
    %c0_i32_1 = arith.constant 0 : i32
    return %arg1, %c0_i32, %c0_i32_0 : i32, i32, i32
  }
  func.func @transform_10(%arg0: i32, %arg1: i32) -> (i32, i32, i32) {
    %c0_i32 = arith.constant 0 : i32
    %c0_i32_0 = arith.constant 0 : i32
    %c0_i32_1 = arith.constant 0 : i32
    return %arg1, %c0_i32, %c0_i32_0 : i32, i32, i32
  }
  func.func @transform_11(%arg0: i32, %arg1: i32) -> (i32, i32, i32) {
    %c0_i32 = arith.constant 0 : i32
    %c0_i32_0 = arith.constant 0 : i32
    %c0_i32_1 = arith.constant 0 : i32
    return %arg1, %c0_i32, %c0_i32_0 : i32, i32, i32
  }
  func.func @transform_12(%arg0: i32, %arg1: i32) -> (i32, i32, i32) {
    %c0_i32 = arith.constant 0 : i32
    %c0_i32_0 = arith.constant 0 : i32
    %c0_i32_1 = arith.constant 0 : i32
    return %arg1, %c0_i32, %c0_i32_0 : i32, i32, i32
  }
  func.func @transform_13(%arg0: i32, %arg1: i32) -> (i32, i32, i32) {
    %c0_i32 = arith.constant 0 : i32
    %c0_i32_0 = arith.constant 0 : i32
    %c0_i32_1 = arith.constant 0 : i32
    return %arg1, %c0_i32, %c0_i32_0 : i32, i32, i32
  }
  func.func @transform_14(%arg0: i32, %arg1: i32) -> (i32, i32, i32) {
    %c0_i32 = arith.constant 0 : i32
    %c0_i32_0 = arith.constant 0 : i32
    %c0_i32_1 = arith.constant 0 : i32
    return %arg0, %c0_i32, %c0_i32_0 : i32, i32, i32
  }
}

</mosaic_0001>

<llo_original>
// kernel: tpu_custom_call.1
$region0: #{tpu_custom_call.1}
  #allocation0 [shape = 'u32[]', space=smem, size = 0x4, offset = 0x4, fixed_abs, tag = 'smem constant byte address 0x4 - core index']
  #allocation1 [shape = 'u32[72,128]{1,0:T(1,128)}', space=vmem, size = 0x9000, scoped, tag = 'internal scratch']
  %s0 = inlined_call_operand.hbm [shape: f32[2,8,128], index: 0, kind: input, shape index: {}, may-alias: {0,14}]
  %s1 = inlined_call_operand.hbm [shape: bf16[2,16,128], index: 1, kind: input, shape index: {}]
  %s2 = inlined_call_operand.hbm [shape: bf16[2,128,128], index: 2, kind: input, shape index: {}]
  %s3 = inlined_call_operand.hbm [shape: bf16[2,128,128], index: 3, kind: input, shape index: {}]
  %s4 = inlined_call_operand.hbm [shape: bf16[2,128,128], index: 4, kind: input, shape index: {}]
  %s5 = inlined_call_operand.hbm [shape: bf16[2,128,128], index: 5, kind: input, shape index: {}]
  %s6 = inlined_call_operand.hbm [shape: bf16[2,128,128], index: 6, kind: input, shape index: {}]
  %s7 = inlined_call_operand.hbm [shape: bf16[2,128,128], index: 7, kind: input, shape index: {}]
  %s8 = inlined_call_operand.hbm [shape: bf16[2,128,128], index: 8, kind: input, shape index: {}]
  %s9 = inlined_call_operand.hbm [shape: bf16[2,128,128], index: 9, kind: input, shape index: {}]
  %s10 = inlined_call_operand.hbm [shape: bf16[2,128,256], index: 10, kind: input, shape index: {}]
  %s11 = inlined_call_operand.hbm [shape: bf16[2,256,128], index: 11, kind: input, shape index: {}]
  %s12 = inlined_call_operand.vmem [shape: f32[2,1,256], index: 12, kind: input, shape index: {}]
  %s13 = inlined_call_operand.vmem [shape: f32[2,16,128], index: 13, kind: input, shape index: {}]
  %s14 = inlined_call_operand.hbm [shape: f32[2,8,128], index: 14, kind: output, shape index: {}, may-alias: {0,14}]
  %s15 = sld [smem:[#allocation0]]
  $region141: #{tpu_custom_call.1} parent=0
    _
  %s17 = ssub.s32 1, %s15
  %s18 = scalar_select 0, %s17, %s15
  $region1: #{tpu_custom_call.1} parent=0
    #allocation2 [shape = 'u8[8192]{0}', space=vmem, size = 0x2000, scoped, tag = 'input window, operand 0, single buffered']
    #allocation3 [shape = 's32[2]{0}', space=sflag, size = 0x8, scoped, tag = 'scoped memory for tpu_custom_call.1']
    #allocation4 [shape = 's32[2]{0}', space=sflag, size = 0x8, scoped, tag = 'scoped memory for tpu_custom_call.1']
    #allocation5 [shape = 'u8[8192]{0}', space=vmem, size = 0x2000, scoped, tag = 'input window, operand 1, single buffered']
    #allocation6 [shape = 's32[1]{0}', space=sflag, size = 0x4, scoped, tag = 'scoped memory for tpu_custom_call.1']
    #allocation7 [shape = 'u8[65536]{0}', space=vmem, size = 0x10000, scoped, tag = 'input window, operand 2']
    #allocation8 [shape = 'u8[65536]{0}', space=vmem, size = 0x10000, scoped, tag = 'input window, operand 3']
    #allocation9 [shape = 'u8[65536]{0}', space=vmem, size = 0x10000, scoped, tag = 'input window, operand 4']
    #allocation10 [shape = 'u8[65536]{0}', space=vmem, size = 0x10000, scoped, tag = 'input window, operand 5']
    #allocation11 [shape = 'u8[65536]{0}', space=vmem, size = 0x10000, scoped, tag = 'input window, operand 6']
    #allocation12 [shape = 'u8[65536]{0}', space=vmem, size = 0x10000, scoped, tag = 'input window, operand 7']
    #allocation13 [shape = 'u8[65536]{0}', space=vmem, size = 0x10000, scoped, tag = 'input window, operand 8']
    #allocation14 [shape = 'u8[65536]{0}', space=vmem, size = 0x10000, scoped, tag = 'input window, operand 9']
    #allocation15 [shape = 'u8[131072]{0}', space=vmem, size = 0x20000, scoped, tag = 'input window, operand 10']
    #allocation16 [shape = 'u8[131072]{0}', space=vmem, size = 0x20000, scoped, tag = 'input window, operand 11']
    #allocation17 [shape = 'u8[8192]{0}', space=vmem, size = 0x2000, scoped, tag = 'output window, operand 0, single buffered']
    %19 = vsyncpa [#allocation3], 0
    %20 = vsyncpa [#allocation6], 0
    %21 = vsyncpa [#allocation4], 0
    loop: start=0, step=1, limit=4
    $region2: #{tpu_custom_call.1} parent=1 // loop_pre_header
      _
    $region3: #{tpu_custom_call.1} parent=1 // loop_header
      %s23 = sphi 0, %s27
      %p24 = scmp.ge.s32.totalorder %s23, 4
      %s30 = sphi 0, %s42
      %s31 = sphi 0, %s38
      %s32 = sphi 0, %s30
      %s33 = sphi 0, %s31
      %s34 = sphi 0, %s32
      %s35 = sphi 0, %s33
      %s45 = sphi 0, %s47
      %s48 = sphi 0, %s45
      %s49 = sphi 0, %s48
      %s65 = sphi 0, %s49
      %s71 = sphi 0, %s73
      %s74 = sphi 0, %s71
      %s75 = sphi 0, %s74
      %s91 = sphi 0, %s75
      %s97 = sphi 0, %s99
      %s100 = sphi 0, %s97
      %s101 = sphi 0, %s100
      %s117 = sphi 0, %s101
      %s123 = sphi 0, %s125
      %s126 = sphi 0, %s123
      %s127 = sphi 0, %s126
      %s143 = sphi 0, %s127
      %s149 = sphi 0, %s151
      %s152 = sphi 0, %s149
      %s153 = sphi 0, %s152
      %s169 = sphi 0, %s153
      %s175 = sphi 0, %s177
      %s178 = sphi 0, %s175
      %s179 = sphi 0, %s178
      %s195 = sphi 0, %s179
      %s201 = sphi 0, %s203
      %s204 = sphi 0, %s201
      %s205 = sphi 0, %s204
      %s221 = sphi 0, %s205
      %s227 = sphi 0, %s229
      %s230 = sphi 0, %s227
      %s231 = sphi 0, %s230
      %s247 = sphi 0, %s231
      %s253 = sphi 0, %s255
      %s256 = sphi 0, %s253
      %s257 = sphi 0, %s256
      %s273 = sphi 0, %s257
      %s279 = sphi 0, %s281
      %s282 = sphi 0, %s279
      %s283 = sphi 0, %s282
      %s299 = sphi 0, %s283
      %s305 = sphi 0, %s307
      %s308 = sphi 0, %s305
      %s309 = sphi 0, %s308
      %s325 = sphi 0, %s309
      %s331 = sphi 0, %s333
      %s334 = sphi 0, %s331
      %s335 = sphi 0, %s334
      %s351 = sphi 0, %s335
      %s357 = sphi 0, %s359
      %s360 = sphi 0, %s357
      %s361 = sphi 0, %s360
      %s377 = sphi 0, %s361
      %s383 = sphi 0, %s385
      %s386 = sphi 0, %s383
      %s387 = sphi 0, %s386
      %s403 = sphi 0, %s387
      %s409 = sphi 0, %s411
      %s412 = sphi 0, %s409
      %s413 = sphi 0, %s412
      %s429 = sphi 0, %s413
    $region4: #{tpu_custom_call.1} parent=1 // loop_header_branch
      %26 = sbr.rel (%p24) target = $region8
    $region5: #{tpu_custom_call.1} parent=1 // loop_body
      %s28 = ssub.s32 %s23, 1
      %s29 = ssub.s32 %s23, 2
      %s36 = sadd.s32 1, %s31
      %p37 = scmp.ge.s32.totalorder %s36, 2
      %s38 = scalar_select %p37, 0, %s36
      %s39 = sadd.s32 1, %s30
      %s40 = scalar_select %p37, %s39, %s30
      %p41 = scmp.ge.s32.totalorder %s40, 1
      %s42 = scalar_select %p41, 0, %s40
      %s43 = ssub.s32 %s30, %s42
      %p44 = scmp.eq.s32.totalorder %s43, 0
      %s46 = sadd.s32 %s45, 1
      %s47 = scalar_select %p44, %s45, %s46
      %p50 = pneg %p44
      %p51 = scmp.eq.s32.totalorder %s23, 1
      %p52 = por %p50, %p51
      %p53 = scmp.ne.s32.totalorder %s45, %s48
      %p54 = scmp.eq.s32.totalorder %s23, 0
      %p55 = por %p53, %p54
      %p56 = scmp.ne.s32.totalorder %s45, %s48
      %p57 = scmp.eq.s32.totalorder %s28, 1
      %p58 = por %p56, %p57
      %p59 = scmp.ne.s32.totalorder %s48, %s49
      %p60 = scmp.eq.s32.totalorder %s28, 0
      %p61 = por %p59, %p60
      %p62 = scmp.ne.s32.totalorder %s48, %s49
      %p63 = scmp.eq.s32.totalorder %s29, 1
      %p64 = por %p62, %p63
      %p66 = scmp.ne.s32.totalorder %s49, %s65
      %p67 = scmp.eq.s32.totalorder %s29, 0
      %p68 = por %p66, %p67
      %s69 = ssub.s32 %s30, %s42
      %p70 = scmp.eq.s32.totalorder %s69, 0
      %s72 = sadd.s32 %s71, 1
      %s73 = scalar_select %p70, %s71, %s72
      %p76 = pneg %p70
      %p77 = scmp.eq.s32.totalorder %s23, 1
      %p78 = por %p76, %p77
      %p79 = scmp.ne.s32.totalorder %s71, %s74
      %p80 = scmp.eq.s32.totalorder %s23, 0
      %p81 = por %p79, %p80
      %p82 = scmp.ne.s32.totalorder %s71, %s74
      %p83 = scmp.eq.s32.totalorder %s28, 1
      %p84 = por %p82, %p83
      %p85 = scmp.ne.s32.totalorder %s74, %s75
      %p86 = scmp.eq.s32.totalorder %s28, 0
      %p87 = por %p85, %p86
      %p88 = scmp.ne.s32.totalorder %s74, %s75
      %p89 = scmp.eq.s32.totalorder %s29, 1
      %p90 = por %p88, %p89
      %p92 = scmp.ne.s32.totalorder %s75, %s91
      %p93 = scmp.eq.s32.totalorder %s29, 0
      %p94 = por %p92, %p93
      %s95 = ssub.s32 %s31, %s38
      %p96 = scmp.eq.s32.totalorder %s95, 0
      %s98 = sadd.s32 %s97, 1
      %s99 = scalar_select %p96, %s97, %s98
      %p102 = pneg %p96
      %p103 = scmp.eq.s32.totalorder %s23, 1
      %p104 = por %p102, %p103
      %p105 = scmp.ne.s32.totalorder %s97, %s100
      %p106 = scmp.eq.s32.totalorder %s23, 0
      %p107 = por %p105, %p106
      %p108 = scmp.ne.s32.totalorder %s97, %s100
      %p109 = scmp.eq.s32.totalorder %s28, 1
      %p110 = por %p108, %p109
      %p111 = scmp.ne.s32.totalorder %s100, %s101
      %p112 = scmp.eq.s32.totalorder %s28, 0
      %p113 = por %p111, %p112
      %p114 = scmp.ne.s32.totalorder %s100, %s101
      %p115 = scmp.eq.s32.totalorder %s29, 1
      %p116 = por %p114, %p115
      %p118 = scmp.ne.s32.totalorder %s101, %s117
      %p119 = scmp.eq.s32.totalorder %s29, 0
      %p120 = por %p118, %p119
      %s121 = ssub.s32 %s31, %s38
      %p122 = scmp.eq.s32.totalorder %s121, 0
      %s124 = sadd.s32 %s123, 1
      %s125 = scalar_select %p122, %s123, %s124
      %p128 = pneg %p122
      %p129 = scmp.eq.s32.totalorder %s23, 1
      %p130 = por %p128, %p129
      %p131 = scmp.ne.s32.totalorder %s123, %s126
      %p132 = scmp.eq.s32.totalorder %s23, 0
      %p133 = por %p131, %p132
      %p134 = scmp.ne.s32.totalorder %s123, %s126
      %p135 = scmp.eq.s32.totalorder %s28, 1
      %p136 = por %p134, %p135
      %p137 = scmp.ne.s32.totalorder %s126, %s127
      %p138 = scmp.eq.s32.totalorder %s28, 0
      %p139 = por %p137, %p138
      %p140 = scmp.ne.s32.totalorder %s126, %s127
      %p141 = scmp.eq.s32.totalorder %s29, 1
      %p142 = por %p140, %p141
      %p144 = scmp.ne.s32.totalorder %s127, %s143
      %p145 = scmp.eq.s32.totalorder %s29, 0
      %p146 = por %p144, %p145
      %s147 = ssub.s32 %s31, %s38
      %p148 = scmp.eq.s32.totalorder %s147, 0
      %s150 = sadd.s32 %s149, 1
      %s151 = scalar_select %p148, %s149, %s150
      %p154 = pneg %p148
      %p155 = scmp.eq.s32.totalorder %s23, 1
      %p156 = por %p154, %p155
      %p157 = scmp.ne.s32.totalorder %s149, %s152
      %p158 = scmp.eq.s32.totalorder %s23, 0
      %p159 = por %p157, %p158
      %p160 = scmp.ne.s32.totalorder %s149, %s152
      %p161 = scmp.eq.s32.totalorder %s28, 1
      %p162 = por %p160, %p161
      %p163 = scmp.ne.s32.totalorder %s152, %s153
      %p164 = scmp.eq.s32.totalorder %s28, 0
      %p165 = por %p163, %p164
      %p166 = scmp.ne.s32.totalorder %s152, %s153
      %p167 = scmp.eq.s32.totalorder %s29, 1
      %p168 = por %p166, %p167
      %p170 = scmp.ne.s32.totalorder %s153, %s169
      %p171 = scmp.eq.s32.totalorder %s29, 0
      %p172 = por %p170, %p171
      %s173 = ssub.s32 %s31, %s38
      %p174 = scmp.eq.s32.totalorder %s173, 0
      %s176 = sadd.s32 %s175, 1
      %s177 = scalar_select %p174, %s175, %s176
      %p180 = pneg %p174
      %p181 = scmp.eq.s32.totalorder %s23, 1
      %p182 = por %p180, %p181
      %p183 = scmp.ne.s32.totalorder %s175, %s178
      %p184 = scmp.eq.s32.totalorder %s23, 0
      %p185 = por %p183, %p184
      %p186 = scmp.ne.s32.totalorder %s175, %s178
      %p187 = scmp.eq.s32.totalorder %s28, 1
      %p188 = por %p186, %p187
      %p189 = scmp.ne.s32.totalorder %s178, %s179
      %p190 = scmp.eq.s32.totalorder %s28, 0
      %p191 = por %p189, %p190
      %p192 = scmp.ne.s32.totalorder %s178, %s179
      %p193 = scmp.eq.s32.totalorder %s29, 1
      %p194 = por %p192, %p193
      %p196 = scmp.ne.s32.totalorder %s179, %s195
      %p197 = scmp.eq.s32.totalorder %s29, 0
      %p198 = por %p196, %p197
      %s199 = ssub.s32 %s31, %s38
      %p200 = scmp.eq.s32.totalorder %s199, 0
      %s202 = sadd.s32 %s201, 1
      %s203 = scalar_select %p200, %s201, %s202
      %p206 = pneg %p200
      %p207 = scmp.eq.s32.totalorder %s23, 1
      %p208 = por %p206, %p207
      %p209 = scmp.ne.s32.totalorder %s201, %s204
      %p210 = scmp.eq.s32.totalorder %s23, 0
      %p211 = por %p209, %p210
      %p212 = scmp.ne.s32.totalorder %s201, %s204
      %p213 = scmp.eq.s32.totalorder %s28, 1
      %p214 = por %p212, %p213
      %p215 = scmp.ne.s32.totalorder %s204, %s205
      %p216 = scmp.eq.s32.totalorder %s28, 0
      %p217 = por %p215, %p216
      %p218 = scmp.ne.s32.totalorder %s204, %s205
      %p219 = scmp.eq.s32.totalorder %s29, 1
      %p220 = por %p218, %p219
      %p222 = scmp.ne.s32.totalorder %s205, %s221
      %p223 = scmp.eq.s32.totalorder %s29, 0
      %p224 = por %p222, %p223
      %s225 = ssub.s32 %s31, %s38
      %p226 = scmp.eq.s32.totalorder %s225, 0
      %s228 = sadd.s32 %s227, 1
      %s229 = scalar_select %p226, %s227, %s228
      %p232 = pneg %p226
      %p233 = scmp.eq.s32.totalorder %s23, 1
      %p234 = por %p232, %p233
      %p235 = scmp.ne.s32.totalorder %s227, %s230
      %p236 = scmp.eq.s32.totalorder %s23, 0
      %p237 = por %p235, %p236
      %p238 = scmp.ne.s32.totalorder %s227, %s230
      %p239 = scmp.eq.s32.totalorder %s28, 1
      %p240 = por %p238, %p239
      %p241 = scmp.ne.s32.totalorder %s230, %s231
      %p242 = scmp.eq.s32.totalorder %s28, 0
      %p243 = por %p241, %p242
      %p244 = scmp.ne.s32.totalorder %s230, %s231
      %p245 = scmp.eq.s32.totalorder %s29, 1
      %p246 = por %p244, %p245
      %p248 = scmp.ne.s32.totalorder %s231, %s247
      %p249 = scmp.eq.s32.totalorder %s29, 0
      %p250 = por %p248, %p249
      %s251 = ssub.s32 %s31, %s38
      %p252 = scmp.eq.s32.totalorder %s251, 0
      %s254 = sadd.s32 %s253, 1
      %s255 = scalar_select %p252, %s253, %s254
      %p258 = pneg %p252
      %p259 = scmp.eq.s32.totalorder %s23, 1
      %p260 = por %p258, %p259
      %p261 = scmp.ne.s32.totalorder %s253, %s256
      %p262 = scmp.eq.s32.totalorder %s23, 0
      %p263 = por %p261, %p262
      %p264 = scmp.ne.s32.totalorder %s253, %s256
      %p265 = scmp.eq.s32.totalorder %s28, 1
      %p266 = por %p264, %p265
      %p267 = scmp.ne.s32.totalorder %s256, %s257
      %p268 = scmp.eq.s32.totalorder %s28, 0
      %p269 = por %p267, %p268
      %p270 = scmp.ne.s32.totalorder %s256, %s257
      %p271 = scmp.eq.s32.totalorder %s29, 1
      %p272 = por %p270, %p271
      %p274 = scmp.ne.s32.totalorder %s257, %s273
      %p275 = scmp.eq.s32.totalorder %s29, 0
      %p276 = por %p274, %p275
      %s277 = ssub.s32 %s31, %s38
      %p278 = scmp.eq.s32.totalorder %s277, 0
      %s280 = sadd.s32 %s279, 1
      %s281 = scalar_select %p278, %s279, %s280
      %p284 = pneg %p278
      %p285 = scmp.eq.s32.totalorder %s23, 1
      %p286 = por %p284, %p285
      %p287 = scmp.ne.s32.totalorder %s279, %s282
      %p288 = scmp.eq.s32.totalorder %s23, 0
      %p289 = por %p287, %p288
      %p290 = scmp.ne.s32.totalorder %s279, %s282
      %p291 = scmp.eq.s32.totalorder %s28, 1
      %p292 = por %p290, %p291
      %p293 = scmp.ne.s32.totalorder %s282, %s283
      %p294 = scmp.eq.s32.totalorder %s28, 0
      %p295 = por %p293, %p294
      %p296 = scmp.ne.s32.totalorder %s282, %s283
      %p297 = scmp.eq.s32.totalorder %s29, 1
      %p298 = por %p296, %p297
      %p300 = scmp.ne.s32.totalorder %s283, %s299
      %p301 = scmp.eq.s32.totalorder %s29, 0
      %p302 = por %p300, %p301
      %s303 = ssub.s32 %s31, %s38
      %p304 = scmp.eq.s32.totalorder %s303, 0
      %s306 = sadd.s32 %s305, 1
      %s307 = scalar_select %p304, %s305, %s306
      %p310 = pneg %p304
      %p311 = scmp.eq.s32.totalorder %s23, 1
      %p312 = por %p310, %p311
      %p313 = scmp.ne.s32.totalorder %s305, %s308
      %p314 = scmp.eq.s32.totalorder %s23, 0
      %p315 = por %p313, %p314
      %p316 = scmp.ne.s32.totalorder %s305, %s308
      %p317 = scmp.eq.s32.totalorder %s28, 1
      %p318 = por %p316, %p317
      %p319 = scmp.ne.s32.totalorder %s308, %s309
      %p320 = scmp.eq.s32.totalorder %s28, 0
      %p321 = por %p319, %p320
      %p322 = scmp.ne.s32.totalorder %s308, %s309
      %p323 = scmp.eq.s32.totalorder %s29, 1
      %p324 = por %p322, %p323
      %p326 = scmp.ne.s32.totalorder %s309, %s325
      %p327 = scmp.eq.s32.totalorder %s29, 0
      %p328 = por %p326, %p327
      %s329 = ssub.s32 %s31, %s38
      %p330 = scmp.eq.s32.totalorder %s329, 0
      %s332 = sadd.s32 %s331, 1
      %s333 = scalar_select %p330, %s331, %s332
      %p336 = pneg %p330
      %p337 = scmp.eq.s32.totalorder %s23, 1
      %p338 = por %p336, %p337
      %p339 = scmp.ne.s32.totalorder %s331, %s334
      %p340 = scmp.eq.s32.totalorder %s23, 0
      %p341 = por %p339, %p340
      %p342 = scmp.ne.s32.totalorder %s331, %s334
      %p343 = scmp.eq.s32.totalorder %s28, 1
      %p344 = por %p342, %p343
      %p345 = scmp.ne.s32.totalorder %s334, %s335
      %p346 = scmp.eq.s32.totalorder %s28, 0
      %p347 = por %p345, %p346
      %p348 = scmp.ne.s32.totalorder %s334, %s335
      %p349 = scmp.eq.s32.totalorder %s29, 1
      %p350 = por %p348, %p349
      %p352 = scmp.ne.s32.totalorder %s335, %s351
      %p353 = scmp.eq.s32.totalorder %s29, 0
      %p354 = por %p352, %p353
      %s355 = ssub.s32 %s31, %s38
      %p356 = scmp.eq.s32.totalorder %s355, 0
      %s358 = sadd.s32 %s357, 1
      %s359 = scalar_select %p356, %s357, %s358
      %p362 = pneg %p356
      %p363 = scmp.eq.s32.totalorder %s23, 1
      %p364 = por %p362, %p363
      %p365 = scmp.ne.s32.totalorder %s357, %s360
      %p366 = scmp.eq.s32.totalorder %s23, 0
      %p367 = por %p365, %p366
      %p368 = scmp.ne.s32.totalorder %s357, %s360
      %p369 = scmp.eq.s32.totalorder %s28, 1
      %p370 = por %p368, %p369
      %p371 = scmp.ne.s32.totalorder %s360, %s361
      %p372 = scmp.eq.s32.totalorder %s28, 0
      %p373 = por %p371, %p372
      %p374 = scmp.ne.s32.totalorder %s360, %s361
      %p375 = scmp.eq.s32.totalorder %s29, 1
      %p376 = por %p374, %p375
      %p378 = scmp.ne.s32.totalorder %s361, %s377
      %p379 = scmp.eq.s32.totalorder %s29, 0
      %p380 = por %p378, %p379
      %s381 = ssub.s32 %s31, %s38
      %p382 = scmp.eq.s32.totalorder %s381, 0
      %s384 = sadd.s32 %s383, 1
      %s385 = scalar_select %p382, %s383, %s384
      %p388 = pneg %p382
      %p389 = scmp.eq.s32.totalorder %s23, 1
      %p390 = por %p388, %p389
      %p391 = scmp.ne.s32.totalorder %s383, %s386
      %p392 = scmp.eq.s32.totalorder %s23, 0
      %p393 = por %p391, %p392
      %p394 = scmp.ne.s32.totalorder %s383, %s386
      %p395 = scmp.eq.s32.totalorder %s28, 1
      %p396 = por %p394, %p395
      %p397 = scmp.ne.s32.totalorder %s386, %s387
      %p398 = scmp.eq.s32.totalorder %s28, 0
      %p399 = por %p397, %p398
      %p400 = scmp.ne.s32.totalorder %s386, %s387
      %p401 = scmp.eq.s32.totalorder %s29, 1
      %p402 = por %p400, %p401
      %p404 = scmp.ne.s32.totalorder %s387, %s403
      %p405 = scmp.eq.s32.totalorder %s29, 0
      %p406 = por %p404, %p405
      %s407 = ssub.s32 %s30, %s42
      %p408 = scmp.eq.s32.totalorder %s407, 0
      %s410 = sadd.s32 %s409, 1
      %s411 = scalar_select %p408, %s409, %s410
      %p414 = pneg %p408
      %p415 = scmp.eq.s32.totalorder %s23, 1
      %p416 = por %p414, %p415
      %p417 = scmp.ne.s32.totalorder %s409, %s412
      %p418 = scmp.eq.s32.totalorder %s23, 0
      %p419 = por %p417, %p418
      %p420 = scmp.ne.s32.totalorder %s409, %s412
      %p421 = scmp.eq.s32.totalorder %s28, 1
      %p422 = por %p420, %p421
      %p423 = scmp.ne.s32.totalorder %s412, %s413
      %p424 = scmp.eq.s32.totalorder %s28, 0
      %p425 = por %p423, %p424
      %p426 = scmp.ne.s32.totalorder %s412, %s413
      %p427 = scmp.eq.s32.totalorder %s29, 1
      %p428 = por %p426, %p427
      %p430 = scmp.ne.s32.totalorder %s413, %s429
      %p431 = scmp.eq.s32.totalorder %s29, 0
      %p432 = por %p430, %p431
      %p433 = scmp.le.s32.totalorder 1, %s23
      %p434 = scmp.lt.s32.totalorder %s23, 3
      %p435 = pnand %p433, %p434
      %p436 = pneg %p435
      // Predicated region
      $region9: #{tpu_custom_call.1} parent=5 // pred_check
        _
      $region10: #{tpu_custom_call.1} parent=5 // pred_check_branch
        %438 = sbr.rel (%p435) target = $region12
      $region11: #{tpu_custom_call.1} parent=5 // pred_region
        %s439 = ssub.s32 %s23, 1
        // Predicated region
        $region13: #{tpu_custom_call.1} parent=11 // pred_check
          %p440 = pneg %p61
        $region14: #{tpu_custom_call.1} parent=11 // pred_check_branch
          %442 = sbr.rel (%p440) target = $region16
        $region15: #{tpu_custom_call.1} parent=11 // pred_region
          %s443 = smul.u32 2, %s32
          %445 = vsyncadd [#allocation3], 0
          %s446 = smul.addr %s443, 8
          %s447 = scalar_lea.hbm %s0, %s446
          %s448 = sshll.u32 %s447, 4
          %s449 = int_to_ptr.hbm [resolvable:$true] %s448
          %s450 = sshll.u32 [#allocation2], 4
          %s451 = int_to_ptr.vmem [resolvable:$true] %s450
          %456 = dma.hbm_to_vmem [thread:$0]  %s449, 256, %s451, [#allocation3], 128, 128, 8
        $region16: #{tpu_custom_call.1} parent=11 // pred_fallthru
          _
        // Predicated region
        $region17: #{tpu_custom_call.1} parent=11 // pred_check
          %p457 = pneg %p87
        $region18: #{tpu_custom_call.1} parent=11 // pred_check_branch
          %459 = sbr.rel (%p457) target = $region20
        $region19: #{tpu_custom_call.1} parent=11 // pred_region
          %s460 = smul.u32 2, %s32
          %462 = vsyncadd [#allocation6], 0
          %s463 = smul.addr %s460, 2
          %s464 = smul.addr %s463, 4
          %s465 = scalar_lea.hbm %s1, %s464
          %s466 = sshll.u32 %s465, 4
          %s467 = int_to_ptr.hbm [resolvable:$true] %s466
          %s468 = sshll.u32 [#allocation5], 4
          %s469 = int_to_ptr.vmem [resolvable:$true] %s468
          %474 = dma.hbm_to_vmem [thread:$0]  %s467, 256, %s469, [#allocation6], 64, 64, 4
        $region20: #{tpu_custom_call.1} parent=11 // pred_fallthru
          _
      $region12: #{tpu_custom_call.1} parent=5 // pred_fallthru
        _
      %p475 = scmp.lt.s32.totalorder %s23, 2
      // Predicated region
      $region21: #{tpu_custom_call.1} parent=5 // pred_check
        %p476 = pneg %p475
      $region22: #{tpu_custom_call.1} parent=5 // pred_check_branch
        %478 = sbr.rel (%p476) target = $region24
      $region23: #{tpu_custom_call.1} parent=5 // pred_region
        // Predicated region
        $region25: #{tpu_custom_call.1} parent=23 // pred_check
          %p479 = pneg %p107
        $region26: #{tpu_custom_call.1} parent=23 // pred_check_branch
          %481 = sbr.rel (%p479) target = $region28
        $region27: #{tpu_custom_call.1} parent=23 // pred_region
          %s482 = sand.u32 %s23, 1
          %s483 = scalar_lea.sflag [#allocation3], %s482
          %s484 = sand.u32 %s97, 1
          %s485 = smul.addr %s484, 64
          %s486 = scalar_lea.vmem [#allocation7], %s485
          %488 = vsyncadd %s483, 0
          %s489 = smul.addr %s31, 16
          %s490 = smul.addr %s489, 4
          %s491 = scalar_lea.hbm %s2, %s490
          %s492 = sshll.u32 %s491, 4
          %s493 = int_to_ptr.hbm [resolvable:$true] %s492
          %s494 = sshll.u32 %s486, 4
          %s495 = int_to_ptr.vmem [resolvable:$true] %s494
          %500 = dma.hbm_to_vmem [thread:$0]  %s493, 1024, %s495, %s483, 64, 64, 4
        $region28: #{tpu_custom_call.1} parent=23 // pred_fallthru
          _
        // Predicated region
        $region29: #{tpu_custom_call.1} parent=23 // pred_check
          %p501 = pneg %p133
        $region30: #{tpu_custom_call.1} parent=23 // pred_check_branch
          %503 = sbr.rel (%p501) target = $region32
        $region31: #{tpu_custom_call.1} parent=23 // pred_region
          %s504 = sand.u32 %s23, 1
          %s505 = scalar_lea.sflag [#allocation3], %s504
          %s506 = sand.u32 %s123, 1
          %s507 = smul.addr %s506, 64
          %s508 = scalar_lea.vmem [#allocation8], %s507
          %510 = vsyncadd %s505, 0
          %s511 = smul.addr %s31, 16
          %s512 = smul.addr %s511, 4
          %s513 = scalar_lea.hbm %s3, %s512
          %s514 = sshll.u32 %s513, 4
          %s515 = int_to_ptr.hbm [resolvable:$true] %s514
          %s516 = sshll.u32 %s508, 4
          %s517 = int_to_ptr.vmem [resolvable:$true] %s516
          %522 = dma.hbm_to_vmem [thread:$0]  %s515, 1024, %s517, %s505, 64, 64, 4
        $region32: #{tpu_custom_call.1} parent=23 // pred_fallthru
          _
        // Predicated region
        $region33: #{tpu_custom_call.1} parent=23 // pred_check
          %p523 = pneg %p159
        $region34: #{tpu_custom_call.1} parent=23 // pred_check_branch
          %525 = sbr.rel (%p523) target = $region36
        $region35: #{tpu_custom_call.1} parent=23 // pred_region
          %s526 = sand.u32 %s23, 1
          %s527 = scalar_lea.sflag [#allocation3], %s526
          %s528 = sand.u32 %s149, 1
          %s529 = smul.addr %s528, 64
          %s530 = scalar_lea.vmem [#allocation9], %s529
          %532 = vsyncadd %s527, 0
          %s533 = smul.addr %s31, 16
          %s534 = smul.addr %s533, 4
          %s535 = scalar_lea.hbm %s4, %s534
          %s536 = sshll.u32 %s535, 4
          %s537 = int_to_ptr.hbm [resolvable:$true] %s536
          %s538 = sshll.u32 %s530, 4
          %s539 = int_to_ptr.vmem [resolvable:$true] %s538
          %544 = dma.hbm_to_vmem [thread:$0]  %s537, 1024, %s539, %s527, 64, 64, 4
        $region36: #{tpu_custom_call.1} parent=23 // pred_fallthru
          _
        // Predicated region
        $region37: #{tpu_custom_call.1} parent=23 // pred_check
          %p545 = pneg %p185
        $region38: #{tpu_custom_call.1} parent=23 // pred_check_branch
          %547 = sbr.rel (%p545) target = $region40
        $region39: #{tpu_custom_call.1} parent=23 // pred_region
          %s548 = sand.u32 %s23, 1
          %s549 = scalar_lea.sflag [#allocation3], %s548
          %s550 = sand.u32 %s175, 1
          %s551 = smul.addr %s550, 64
          %s552 = scalar_lea.vmem [#allocation10], %s551
          %554 = vsyncadd %s549, 0
          %s555 = smul.addr %s31, 16
          %s556 = smul.addr %s555, 4
          %s557 = scalar_lea.hbm %s5, %s556
          %s558 = sshll.u32 %s557, 4
          %s559 = int_to_ptr.hbm [resolvable:$true] %s558
          %s560 = sshll.u32 %s552, 4
          %s561 = int_to_ptr.vmem [resolvable:$true] %s560
          %566 = dma.hbm_to_vmem [thread:$0]  %s559, 1024, %s561, %s549, 64, 64, 4
        $region40: #{tpu_custom_call.1} parent=23 // pred_fallthru
          _
        // Predicated region
        $region41: #{tpu_custom_call.1} parent=23 // pred_check
          %p567 = pneg %p211
        $region42: #{tpu_custom_call.1} parent=23 // pred_check_branch
          %569 = sbr.rel (%p567) target = $region44
        $region43: #{tpu_custom_call.1} parent=23 // pred_region
          %s570 = sand.u32 %s23, 1
          %s571 = scalar_lea.sflag [#allocation3], %s570
          %s572 = sand.u32 %s201, 1
          %s573 = smul.addr %s572, 64
          %s574 = scalar_lea.vmem [#allocation11], %s573
          %576 = vsyncadd %s571, 0
          %s577 = smul.addr %s31, 16
          %s578 = smul.addr %s577, 4
          %s579 = scalar_lea.hbm %s6, %s578
          %s580 = sshll.u32 %s579, 4
          %s581 = int_to_ptr.hbm [resolvable:$true] %s580
          %s582 = sshll.u32 %s574, 4
          %s583 = int_to_ptr.vmem [resolvable:$true] %s582
          %588 = dma.hbm_to_vmem [thread:$0]  %s581, 1024, %s583, %s571, 64, 64, 4
        $region44: #{tpu_custom_call.1} parent=23 // pred_fallthru
          _
        // Predicated region
        $region45: #{tpu_custom_call.1} parent=23 // pred_check
          %p589 = pneg %p237
        $region46: #{tpu_custom_call.1} parent=23 // pred_check_branch
          %591 = sbr.rel (%p589) target = $region48
        $region47: #{tpu_custom_call.1} parent=23 // pred_region
          %s592 = sand.u32 %s23, 1
          %s593 = scalar_lea.sflag [#allocation3], %s592
          %s594 = sand.u32 %s227, 1
          %s595 = smul.addr %s594, 64
          %s596 = scalar_lea.vmem [#allocation12], %s595
          %598 = vsyncadd %s593, 0
          %s599 = smul.addr %s31, 16
          %s600 = smul.addr %s599, 4
          %s601 = scalar_lea.hbm %s7, %s600
          %s602 = sshll.u32 %s601, 4
          %s603 = int_to_ptr.hbm [resolvable:$true] %s602
          %s604 = sshll.u32 %s596, 4
          %s605 = int_to_ptr.vmem [resolvable:$true] %s604
          %610 = dma.hbm_to_vmem [thread:$0]  %s603, 1024, %s605, %s593, 64, 64, 4
        $region48: #{tpu_custom_call.1} parent=23 // pred_fallthru
          _
        // Predicated region
        $region49: #{tpu_custom_call.1} parent=23 // pred_check
          %p611 = pneg %p263
        $region50: #{tpu_custom_call.1} parent=23 // pred_check_branch
          %613 = sbr.rel (%p611) target = $region52
        $region51: #{tpu_custom_call.1} parent=23 // pred_region
          %s614 = sand.u32 %s23, 1
          %s615 = scalar_lea.sflag [#allocation3], %s614
          %s616 = sand.u32 %s253, 1
          %s617 = smul.addr %s616, 64
          %s618 = scalar_lea.vmem [#allocation13], %s617
          %620 = vsyncadd %s615, 0
          %s621 = smul.addr %s31, 16
          %s622 = smul.addr %s621, 4
          %s623 = scalar_lea.hbm %s8, %s622
          %s624 = sshll.u32 %s623, 4
          %s625 = int_to_ptr.hbm [resolvable:$true] %s624
          %s626 = sshll.u32 %s618, 4
          %s627 = int_to_ptr.vmem [resolvable:$true] %s626
          %632 = dma.hbm_to_vmem [thread:$0]  %s625, 1024, %s627, %s615, 64, 64, 4
        $region52: #{tpu_custom_call.1} parent=23 // pred_fallthru
          _
        // Predicated region
        $region53: #{tpu_custom_call.1} parent=23 // pred_check
          %p633 = pneg %p289
        $region54: #{tpu_custom_call.1} parent=23 // pred_check_branch
          %635 = sbr.rel (%p633) target = $region56
        $region55: #{tpu_custom_call.1} parent=23 // pred_region
          %s636 = sand.u32 %s23, 1
          %s637 = scalar_lea.sflag [#allocation3], %s636
          %s638 = sand.u32 %s279, 1
          %s639 = smul.addr %s638, 64
          %s640 = scalar_lea.vmem [#allocation14], %s639
          %642 = vsyncadd %s637, 0
          %s643 = smul.addr %s31, 16
          %s644 = smul.addr %s643, 4
          %s645 = scalar_lea.hbm %s9, %s644
          %s646 = sshll.u32 %s645, 4
          %s647 = int_to_ptr.hbm [resolvable:$true] %s646
          %s648 = sshll.u32 %s640, 4
          %s649 = int_to_ptr.vmem [resolvable:$true] %s648
          %654 = dma.hbm_to_vmem [thread:$0]  %s647, 1024, %s649, %s637, 64, 64, 4
        $region56: #{tpu_custom_call.1} parent=23 // pred_fallthru
          _
        // Predicated region
        $region57: #{tpu_custom_call.1} parent=23 // pred_check
          %p655 = pneg %p315
        $region58: #{tpu_custom_call.1} parent=23 // pred_check_branch
          %657 = sbr.rel (%p655) target = $region60
        $region59: #{tpu_custom_call.1} parent=23 // pred_region
          %s658 = sand.u32 %s23, 1
          %s659 = scalar_lea.sflag [#allocation3], %s658
          %s660 = sand.u32 %s305, 1
          %s661 = smul.addr %s660, 128
          %s662 = scalar_lea.vmem [#allocation15], %s661
          %664 = vsyncadd %s659, 0
          %s665 = smul.addr %s31, 32
          %s666 = smul.addr %s665, 4
          %s667 = scalar_lea.hbm %s10, %s666
          %s668 = sshll.u32 %s667, 4
          %s669 = int_to_ptr.hbm [resolvable:$true] %s668
          %s670 = sshll.u32 %s662, 4
          %s671 = int_to_ptr.vmem [resolvable:$true] %s670
          %676 = dma.hbm_to_vmem [thread:$0]  %s669, 2048, %s671, %s659, 128, 128, 8
        $region60: #{tpu_custom_call.1} parent=23 // pred_fallthru
          _
        // Predicated region
        $region61: #{tpu_custom_call.1} parent=23 // pred_check
          %p677 = pneg %p341
        $region62: #{tpu_custom_call.1} parent=23 // pred_check_branch
          %679 = sbr.rel (%p677) target = $region64
        $region63: #{tpu_custom_call.1} parent=23 // pred_region
          %s680 = sand.u32 %s23, 1
          %s681 = scalar_lea.sflag [#allocation3], %s680
          %s682 = sand.u32 %s331, 1
          %s683 = smul.addr %s682, 128
          %s684 = scalar_lea.vmem [#allocation16], %s683
          %686 = vsyncadd %s681, 0
          %s687 = smul.addr %s31, 32
          %s688 = smul.addr %s687, 4
          %s689 = scalar_lea.hbm %s11, %s688
          %s690 = sshll.u32 %s689, 4
          %s691 = int_to_ptr.hbm [resolvable:$true] %s690
          %s692 = sshll.u32 %s684, 4
          %s693 = int_to_ptr.vmem [resolvable:$true] %s692
          %698 = dma.hbm_to_vmem [thread:$0]  %s691, 2048, %s693, %s681, 64, 64, 4
        $region64: #{tpu_custom_call.1} parent=23 // pred_fallthru
          _
        // Predicated region
        $region65: #{tpu_custom_call.1} parent=23 // pred_check
          %p699 = pneg %p367
        $region66: #{tpu_custom_call.1} parent=23 // pred_check_branch
          %701 = sbr.rel (%p699) target = $region68
        $region67: #{tpu_custom_call.1} parent=23 // pred_region
          %p702 = scmp.lt.s32.totalorder %s31, 1
          %s703 = scalar_select %p702, %s31, 1
          %s704 = smul.addr %s703, 2
          %s705 = scalar_lea.vmem %s12, %s704
        $region68: #{tpu_custom_call.1} parent=23 // pred_fallthru
          _
        // Predicated region
        $region69: #{tpu_custom_call.1} parent=23 // pred_check
          %p706 = pneg %p393
        $region70: #{tpu_custom_call.1} parent=23 // pred_check_branch
          %708 = sbr.rel (%p706) target = $region72
        $region71: #{tpu_custom_call.1} parent=23 // pred_region
          %p709 = scmp.lt.s32.totalorder %s31, 1
          %s710 = scalar_select %p709, %s31, 1
          %s711 = smul.addr %s710, 2
          %s712 = smul.addr %s711, 8
          %s713 = scalar_lea.vmem %s13, %s712
        $region72: #{tpu_custom_call.1} parent=23 // pred_fallthru
          _
      $region24: #{tpu_custom_call.1} parent=5 // pred_fallthru
        _
      %p714 = scmp.le.s32.totalorder 1, %s23
      %p715 = scmp.lt.s32.totalorder %s23, 3
      %p716 = pnand %p714, %p715
      %p717 = pneg %p716
      // Predicated region
      $region73: #{tpu_custom_call.1} parent=5 // pred_check
        _
      $region74: #{tpu_custom_call.1} parent=5 // pred_check_branch
        %719 = sbr.rel (%p716) target = $region76
      $region75: #{tpu_custom_call.1} parent=5 // pred_region
        %s720 = ssub.s32 %s23, 1
        // Predicated region
        $region77: #{tpu_custom_call.1} parent=75 // pred_check
          %p721 = pneg %p61
        $region78: #{tpu_custom_call.1} parent=75 // pred_check_branch
          %723 = sbr.rel (%p721) target = $region80
        $region79: #{tpu_custom_call.1} parent=75 // pred_region
          %725 = dma.done [#allocation3], 256
        $region80: #{tpu_custom_call.1} parent=75 // pred_fallthru
          _
        // Predicated region
        $region81: #{tpu_custom_call.1} parent=75 // pred_check
          %p726 = pneg %p87
        $region82: #{tpu_custom_call.1} parent=75 // pred_check_branch
          %728 = sbr.rel (%p726) target = $region84
        $region83: #{tpu_custom_call.1} parent=75 // pred_region
          %730 = dma.done [#allocation6], 256
        $region84: #{tpu_custom_call.1} parent=75 // pred_fallthru
          _
        %s731 = sand.u32 %s28, 1
        %s732 = scalar_lea.sflag [#allocation3], %s731
        %s733 = sand.u32 %s100, 1
        %s734 = smul.addr %s733, 64
        %s735 = scalar_lea.vmem [#allocation7], %s734
        // Predicated region
        $region85: #{tpu_custom_call.1} parent=75 // pred_check
          %p736 = pneg %p113
        $region86: #{tpu_custom_call.1} parent=75 // pred_check_branch
          %738 = sbr.rel (%p736) target = $region88
        $region87: #{tpu_custom_call.1} parent=75 // pred_region
          %740 = dma.done %s732, 1024
        $region88: #{tpu_custom_call.1} parent=75 // pred_fallthru
          _
        %s741 = sand.u32 %s28, 1
        %s742 = scalar_lea.sflag [#allocation3], %s741
        %s743 = sand.u32 %s126, 1
        %s744 = smul.addr %s743, 64
        %s745 = scalar_lea.vmem [#allocation8], %s744
        // Predicated region
        $region89: #{tpu_custom_call.1} parent=75 // pred_check
          %p746 = pneg %p139
        $region90: #{tpu_custom_call.1} parent=75 // pred_check_branch
          %748 = sbr.rel (%p746) target = $region92
        $region91: #{tpu_custom_call.1} parent=75 // pred_region
          %750 = dma.done %s742, 1024
        $region92: #{tpu_custom_call.1} parent=75 // pred_fallthru
          _
        %s751 = sand.u32 %s28, 1
        %s752 = scalar_lea.sflag [#allocation3], %s751
        %s753 = sand.u32 %s152, 1
        %s754 = smul.addr %s753, 64
        %s755 = scalar_lea.vmem [#allocation9], %s754
        // Predicated region
        $region93: #{tpu_custom_call.1} parent=75 // pred_check
          %p756 = pneg %p165
        $region94: #{tpu_custom_call.1} parent=75 // pred_check_branch
          %758 = sbr.rel (%p756) target = $region96
        $region95: #{tpu_custom_call.1} parent=75 // pred_region
          %760 = dma.done %s752, 1024
        $region96: #{tpu_custom_call.1} parent=75 // pred_fallthru
          _
        %s761 = sand.u32 %s28, 1
        %s762 = scalar_lea.sflag [#allocation3], %s761
        %s763 = sand.u32 %s178, 1
        %s764 = smul.addr %s763, 64
        %s765 = scalar_lea.vmem [#allocation10], %s764
        // Predicated region
        $region97: #{tpu_custom_call.1} parent=75 // pred_check
          %p766 = pneg %p191
        $region98: #{tpu_custom_call.1} parent=75 // pred_check_branch
          %768 = sbr.rel (%p766) target = $region100
        $region99: #{tpu_custom_call.1} parent=75 // pred_region
          %770 = dma.done %s762, 1024
        $region100: #{tpu_custom_call.1} parent=75 // pred_fallthru
          _
        %s771 = sand.u32 %s28, 1
        %s772 = scalar_lea.sflag [#allocation3], %s771
        %s773 = sand.u32 %s204, 1
        %s774 = smul.addr %s773, 64
        %s775 = scalar_lea.vmem [#allocation11], %s774
        // Predicated region
        $region101: #{tpu_custom_call.1} parent=75 // pred_check
          %p776 = pneg %p217
        $region102: #{tpu_custom_call.1} parent=75 // pred_check_branch
          %778 = sbr.rel (%p776) target = $region104
        $region103: #{tpu_custom_call.1} parent=75 // pred_region
          %780 = dma.done %s772, 1024
        $region104: #{tpu_custom_call.1} parent=75 // pred_fallthru
          _
        %s781 = sand.u32 %s28, 1
        %s782 = scalar_lea.sflag [#allocation3], %s781
        %s783 = sand.u32 %s230, 1
        %s784 = smul.addr %s783, 64
        %s785 = scalar_lea.vmem [#allocation12], %s784
        // Predicated region
        $region105: #{tpu_custom_call.1} parent=75 // pred_check
          %p786 = pneg %p243
        $region106: #{tpu_custom_call.1} parent=75 // pred_check_branch
          %788 = sbr.rel (%p786) target = $region108
        $region107: #{tpu_custom_call.1} parent=75 // pred_region
          %790 = dma.done %s782, 1024
        $region108: #{tpu_custom_call.1} parent=75 // pred_fallthru
          _
        %s791 = sand.u32 %s28, 1
        %s792 = scalar_lea.sflag [#allocation3], %s791
        %s793 = sand.u32 %s256, 1
        %s794 = smul.addr %s793, 64
        %s795 = scalar_lea.vmem [#allocation13], %s794
        // Predicated region
        $region109: #{tpu_custom_call.1} parent=75 // pred_check
          %p796 = pneg %p269
        $region110: #{tpu_custom_call.1} parent=75 // pred_check_branch
          %798 = sbr.rel (%p796) target = $region112
        $region111: #{tpu_custom_call.1} parent=75 // pred_region
          %800 = dma.done %s792, 1024
        $region112: #{tpu_custom_call.1} parent=75 // pred_fallthru
          _
        %s801 = sand.u32 %s28, 1
        %s802 = scalar_lea.sflag [#allocation3], %s801
        %s803 = sand.u32 %s282, 1
        %s804 = smul.addr %s803, 64
        %s805 = scalar_lea.vmem [#allocation14], %s804
        // Predicated region
        $region113: #{tpu_custom_call.1} parent=75 // pred_check
          %p806 = pneg %p295
        $region114: #{tpu_custom_call.1} parent=75 // pred_check_branch
          %808 = sbr.rel (%p806) target = $region116
        $region115: #{tpu_custom_call.1} parent=75 // pred_region
          %810 = dma.done %s802, 1024
        $region116: #{tpu_custom_call.1} parent=75 // pred_fallthru
          _
        %s811 = sand.u32 %s28, 1
        %s812 = scalar_lea.sflag [#allocation3], %s811
        %s813 = sand.u32 %s308, 1
        %s814 = smul.addr %s813, 128
        %s815 = scalar_lea.vmem [#allocation15], %s814
        // Predicated region
        $region117: #{tpu_custom_call.1} parent=75 // pred_check
          %p816 = pneg %p321
        $region118: #{tpu_custom_call.1} parent=75 // pred_check_branch
          %818 = sbr.rel (%p816) target = $region120
        $region119: #{tpu_custom_call.1} parent=75 // pred_region
          %820 = dma.done %s812, 2048
        $region120: #{tpu_custom_call.1} parent=75 // pred_fallthru
          _
        %s821 = sand.u32 %s28, 1
        %s822 = scalar_lea.sflag [#allocation3], %s821
        %s823 = sand.u32 %s334, 1
        %s824 = smul.addr %s823, 128
        %s825 = scalar_lea.vmem [#allocation16], %s824
        // Predicated region
        $region121: #{tpu_custom_call.1} parent=75 // pred_check
          %p826 = pneg %p347
        $region122: #{tpu_custom_call.1} parent=75 // pred_check_branch
          %828 = sbr.rel (%p826) target = $region124
        $region123: #{tpu_custom_call.1} parent=75 // pred_region
          %830 = dma.done %s822, 2048
        $region124: #{tpu_custom_call.1} parent=75 // pred_fallthru
          _
        %p831 = pneg %p61
        %p832 = pneg %p58
        %p833 = pneg %p87
        %p834 = pneg %p84
        %s835 = sand.u32 %s28, 1
        %s836 = scalar_lea.sflag [#allocation3], %s835
        %s837 = sand.u32 %s100, 1
        %s838 = smul.addr %s837, 64
        %s839 = scalar_lea.vmem [#allocation7], %s838
        %p840 = pneg %p113
        %p841 = pneg %p110
        %s842 = sand.u32 %s28, 1
        %s843 = scalar_lea.sflag [#allocation3], %s842
        %s844 = sand.u32 %s126, 1
        %s845 = smul.addr %s844, 64
        %s846 = scalar_lea.vmem [#allocation8], %s845
        %p847 = pneg %p139
        %p848 = pneg %p136
        %s849 = sand.u32 %s28, 1
        %s850 = scalar_lea.sflag [#allocation3], %s849
        %s851 = sand.u32 %s152, 1
        %s852 = smul.addr %s851, 64
        %s853 = scalar_lea.vmem [#allocation9], %s852
        %p854 = pneg %p165
        %p855 = pneg %p162
        %s856 = sand.u32 %s28, 1
        %s857 = scalar_lea.sflag [#allocation3], %s856
        %s858 = sand.u32 %s178, 1
        %s859 = smul.addr %s858, 64
        %s860 = scalar_lea.vmem [#allocation10], %s859
        %p861 = pneg %p191
        %p862 = pneg %p188
        %s863 = sand.u32 %s28, 1
        %s864 = scalar_lea.sflag [#allocation3], %s863
        %s865 = sand.u32 %s204, 1
        %s866 = smul.addr %s865, 64
        %s867 = scalar_lea.vmem [#allocation11], %s866
        %p868 = pneg %p217
        %p869 = pneg %p214
        %s870 = sand.u32 %s28, 1
        %s871 = scalar_lea.sflag [#allocation3], %s870
        %s872 = sand.u32 %s230, 1
        %s873 = smul.addr %s872, 64
        %s874 = scalar_lea.vmem [#allocation12], %s873
        %p875 = pneg %p243
        %p876 = pneg %p240
        %s877 = sand.u32 %s28, 1
        %s878 = scalar_lea.sflag [#allocation3], %s877
        %s879 = sand.u32 %s256, 1
        %s880 = smul.addr %s879, 64
        %s881 = scalar_lea.vmem [#allocation13], %s880
        %p882 = pneg %p269
        %p883 = pneg %p266
        %s884 = sand.u32 %s28, 1
        %s885 = scalar_lea.sflag [#allocation3], %s884
        %s886 = sand.u32 %s282, 1
        %s887 = smul.addr %s886, 64
        %s888 = scalar_lea.vmem [#allocation14], %s887
        %p889 = pneg %p295
        %p890 = pneg %p292
        %s891 = sand.u32 %s28, 1
        %s892 = scalar_lea.sflag [#allocation3], %s891
        %s893 = sand.u32 %s308, 1
        %s894 = smul.addr %s893, 128
        %s895 = scalar_lea.vmem [#allocation15], %s894
        %p896 = pneg %p321
        %p897 = pneg %p318
        %s898 = sand.u32 %s28, 1
        %s899 = scalar_lea.sflag [#allocation3], %s898
        %s900 = sand.u32 %s334, 1
        %s901 = smul.addr %s900, 128
        %s902 = scalar_lea.vmem [#allocation16], %s901
        %p903 = pneg %p347
        %p904 = pneg %p344
        %p905 = scmp.lt.s32.totalorder %s33, 1
        %s906 = scalar_select %p905, %s33, 1
        %s907 = smul.addr %s906, 2
        %s908 = scalar_lea.vmem %s12, %s907
        %p909 = pneg %p373
        %p910 = pneg %p370
        %p911 = scmp.lt.s32.totalorder %s33, 1
        %s912 = scalar_select %p911, %s33, 1
        %s913 = smul.addr %s912, 2
        %s914 = smul.addr %s913, 8
        %s915 = scalar_lea.vmem %s13, %s914
        %p916 = pneg %p399
        %p917 = pneg %p396
        %p918 = pneg %p425
        %p919 = pneg %p422
        %s920 = smul.u32 2, %s32
        %s921 = smul.u32 2, %s32
        %p922 = scmp.lt.s32.totalorder %s33, 1
        %s923 = scalar_select %p922, %s33, 1
        %s924 = smul.addr %s923, 2
        %s925 = scalar_lea.vmem %s12, %s924
        %p926 = scmp.lt.s32.totalorder %s33, 1
        %s927 = scalar_select %p926, %s33, 1
        %s928 = smul.addr %s927, 2
        %s929 = smul.addr %s928, 8
        %s930 = scalar_lea.vmem %s13, %s929
        %s931 = smul.u32 2, %s32
        %p933 = scmp.eq.s32.totalorder %s33, 0
        // Predicated region
        $region125: #{tpu_custom_call.1} parent=75 // pred_check
          %p934 = pneg %p933
        $region126: #{tpu_custom_call.1} parent=75 // pred_check_branch
          %936 = sbr.rel (%p934) target = $region128
        $region127: #{tpu_custom_call.1} parent=75 // pred_region
          %v937 = vld [vmem:[#allocation2] sm:$0xff]
          %v938 = vld [vmem:[#allocation2 + $0x8] sm:$0xff]
          %939 = vst [vmem:[#allocation17] sm:$0xff] %v937
          %940 = vst [vmem:[#allocation17 + $0x8] sm:$0xff] %v938
        $region128: #{tpu_custom_call.1} parent=75 // pred_fallthru
          _
        %v941 = vld [vmem:[#allocation17] sm:$0xff]
        %v942 = vld [vmem:[#allocation17 + $0x8] sm:$0xff]
        %v943 = vld [vmem:[#allocation5] sm:$0xf]
        %v944 = vld [vmem:[#allocation5 + $0x4] sm:$0xf]
        %v945 = vld [vmem:[#allocation5 + $0x8] sm:$0xf]
        %v946 = vld [vmem:[#allocation5 + $0xc] sm:$0xf]
        %v947 = vld [vmem:[%s930] sm:$0xff]
        %v948 = vld [vmem:[%s930 + $0x8] sm:$0xff]
        %v949 = vpack.c.bf16 %v942, %v941
        %v950 = vld [vmem:[%s735] sm:$0xf]
        %v951 = vld [vmem:[%s735 + $0x4] sm:$0xf]
        %v952 = vld [vmem:[%s735 + $0x8] sm:$0xf]
        %v953 = vld [vmem:[%s735 + $0xc] sm:$0xf]
        %v954 = vld [vmem:[%s735 + $0x10] sm:$0xf]
        %v955 = vld [vmem:[%s735 + $0x14] sm:$0xf]
        %v956 = vld [vmem:[%s735 + $0x18] sm:$0xf]
        %v957 = vld [vmem:[%s735 + $0x1c] sm:$0xf]
        %v958 = vld [vmem:[%s735 + $0x20] sm:$0xf]
        %v959 = vld [vmem:[%s735 + $0x24] sm:$0xf]
        %v960 = vld [vmem:[%s735 + $0x28] sm:$0xf]
        %v961 = vld [vmem:[%s735 + $0x2c] sm:$0xf]
        %v962 = vld [vmem:[%s735 + $0x30] sm:$0xf]
        %v963 = vld [vmem:[%s735 + $0x34] sm:$0xf]
        %v964 = vld [vmem:[%s735 + $0x38] sm:$0xf]
        %v965 = vld [vmem:[%s735 + $0x3c] sm:$0xf]
        %v966 = vperm.slane %v947, 0
        %v983 = vunpack.c.l.b16 %v950
        %v984 = vunpack.c.l.b16 %v951
        %v985 = vunpack.c.l.b16 %v952
        %v986 = vunpack.c.l.b16 %v953
        %v987 = vunpack.c.l.b16 %v954
        %v988 = vunpack.c.l.b16 %v955
        %v989 = vunpack.c.l.b16 %v956
        %v990 = vunpack.c.l.b16 %v957
        %v991 = vunpack.c.l.b16 %v958
        %v992 = vunpack.c.l.b16 %v959
        %v993 = vunpack.c.l.b16 %v960
        %v994 = vunpack.c.l.b16 %v961
        %v995 = vunpack.c.l.b16 %v962
        %v996 = vunpack.c.l.b16 %v963
        %v997 = vunpack.c.l.b16 %v964
        %v998 = vunpack.c.l.b16 %v965
        %v999 = vpack.c.b16 %v984, %v983
        %v1000 = vpack.c.b16 %v986, %v985
        %v1001 = vpack.c.b16 %v988, %v987
        %v1002 = vpack.c.b16 %v990, %v989
        %v1003 = vpack.c.b16 %v992, %v991
        %v1004 = vpack.c.b16 %v994, %v993
        %v1005 = vpack.c.b16 %v996, %v995
        %v1006 = vpack.c.b16 %v998, %v997
        %1015 = vmatpush.bf16.msra.mxu0 %v1006
        %1016 = vmatpush.bf16.msra.mxu0 %v1005
        %1017 = vmatpush.bf16.msra.mxu0 %v1004
        %1018 = vmatpush.bf16.msra.mxu0 %v1003
        %1019 = vmatpush.bf16.msra.mxu0 %v1002
        %1020 = vmatpush.bf16.msra.mxu0 %v1001
        %1021 = vmatpush.bf16.msra.mxu0 %v1000
        %1022 = vmatpush.bf16.msra.mxu0 %v999
        %1023 = vmatmul.bf16.gmra.mxu0 %v949
        %v1024 = vpop.f32.mrf.mxu0
        %v1025 = vadd.f32 %v966, %v1024
        %v1026 = vpop.f32.mrf.mxu0
        %v1027 = vadd.f32 %v966, %v1026
        %1028 = vdwg.mxu0
        %v1029 = vld [vmem:[%s745] sm:$0xf]
        %v1030 = vld [vmem:[%s745 + $0x4] sm:$0xf]
        %v1031 = vld [vmem:[%s745 + $0x8] sm:$0xf]
        %v1032 = vld [vmem:[%s745 + $0xc] sm:$0xf]
        %v1033 = vld [vmem:[%s745 + $0x10] sm:$0xf]
        %v1034 = vld [vmem:[%s745 + $0x14] sm:$0xf]
        %v1035 = vld [vmem:[%s745 + $0x18] sm:$0xf]
        %v1036 = vld [vmem:[%s745 + $0x1c] sm:$0xf]
        %v1037 = vld [vmem:[%s745 + $0x20] sm:$0xf]
        %v1038 = vld [vmem:[%s745 + $0x24] sm:$0xf]
        %v1039 = vld [vmem:[%s745 + $0x28] sm:$0xf]
        %v1040 = vld [vmem:[%s745 + $0x2c] sm:$0xf]
        %v1041 = vld [vmem:[%s745 + $0x30] sm:$0xf]
        %v1042 = vld [vmem:[%s745 + $0x34] sm:$0xf]
        %v1043 = vld [vmem:[%s745 + $0x38] sm:$0xf]
        %v1044 = vld [vmem:[%s745 + $0x3c] sm:$0xf]
        %v1045 = vperm.slane %v947, 1
        %v1062 = vunpack.c.l.b16 %v1029
        %v1063 = vunpack.c.l.b16 %v1030
        %v1064 = vunpack.c.l.b16 %v1031
        %v1065 = vunpack.c.l.b16 %v1032
        %v1066 = vunpack.c.l.b16 %v1033
        %v1067 = vunpack.c.l.b16 %v1034
        %v1068 = vunpack.c.l.b16 %v1035
        %v1069 = vunpack.c.l.b16 %v1036
        %v1070 = vunpack.c.l.b16 %v1037
        %v1071 = vunpack.c.l.b16 %v1038
        %v1072 = vunpack.c.l.b16 %v1039
        %v1073 = vunpack.c.l.b16 %v1040
        %v1074 = vunpack.c.l.b16 %v1041
        %v1075 = vunpack.c.l.b16 %v1042
        %v1076 = vunpack.c.l.b16 %v1043
        %v1077 = vunpack.c.l.b16 %v1044
        %v1078 = vpack.c.b16 %v1063, %v1062
        %v1079 = vpack.c.b16 %v1065, %v1064
        %v1080 = vpack.c.b16 %v1067, %v1066
        %v1081 = vpack.c.b16 %v1069, %v1068
        %v1082 = vpack.c.b16 %v1071, %v1070
        %v1083 = vpack.c.b16 %v1073, %v1072
        %v1084 = vpack.c.b16 %v1075, %v1074
        %v1085 = vpack.c.b16 %v1077, %v1076
        %1094 = vmatpush.bf16.msra.mxu0 %v1085
        %1095 = vmatpush.bf16.msra.mxu0 %v1084
        %1096 = vmatpush.bf16.msra.mxu0 %v1083
        %1097 = vmatpush.bf16.msra.mxu0 %v1082
        %1098 = vmatpush.bf16.msra.mxu0 %v1081
        %1099 = vmatpush.bf16.msra.mxu0 %v1080
        %1100 = vmatpush.bf16.msra.mxu0 %v1079
        %1101 = vmatpush.bf16.msra.mxu0 %v1078
        %1102 = vmatmul.bf16.gmra.mxu0 %v949
        %v1103 = vpop.f32.mrf.mxu0
        %v1104 = vadd.f32 %v1045, %v1103
        %v1105 = vpop.f32.mrf.mxu0
        %v1106 = vadd.f32 %v1045, %v1105
        %1107 = vdwg.mxu0
        %v1108 = vld [vmem:[%s755] sm:$0xf]
        %v1109 = vld [vmem:[%s755 + $0x4] sm:$0xf]
        %v1110 = vld [vmem:[%s755 + $0x8] sm:$0xf]
        %v1111 = vld [vmem:[%s755 + $0xc] sm:$0xf]
        %v1112 = vld [vmem:[%s755 + $0x10] sm:$0xf]
        %v1113 = vld [vmem:[%s755 + $0x14] sm:$0xf]
        %v1114 = vld [vmem:[%s755 + $0x18] sm:$0xf]
        %v1115 = vld [vmem:[%s755 + $0x1c] sm:$0xf]
        %v1116 = vld [vmem:[%s755 + $0x20] sm:$0xf]
        %v1117 = vld [vmem:[%s755 + $0x24] sm:$0xf]
        %v1118 = vld [vmem:[%s755 + $0x28] sm:$0xf]
        %v1119 = vld [vmem:[%s755 + $0x2c] sm:$0xf]
        %v1120 = vld [vmem:[%s755 + $0x30] sm:$0xf]
        %v1121 = vld [vmem:[%s755 + $0x34] sm:$0xf]
        %v1122 = vld [vmem:[%s755 + $0x38] sm:$0xf]
        %v1123 = vld [vmem:[%s755 + $0x3c] sm:$0xf]
        %v1124 = vperm.slane %v947, 2
        %v1141 = vunpack.c.l.b16 %v1108
        %v1142 = vunpack.c.l.b16 %v1109
        %v1143 = vunpack.c.l.b16 %v1110
        %v1144 = vunpack.c.l.b16 %v1111
        %v1145 = vunpack.c.l.b16 %v1112
        %v1146 = vunpack.c.l.b16 %v1113
        %v1147 = vunpack.c.l.b16 %v1114
        %v1148 = vunpack.c.l.b16 %v1115
        %v1149 = vunpack.c.l.b16 %v1116
        %v1150 = vunpack.c.l.b16 %v1117
        %v1151 = vunpack.c.l.b16 %v1118
        %v1152 = vunpack.c.l.b16 %v1119
        %v1153 = vunpack.c.l.b16 %v1120
        %v1154 = vunpack.c.l.b16 %v1121
        %v1155 = vunpack.c.l.b16 %v1122
        %v1156 = vunpack.c.l.b16 %v1123
        %v1157 = vpack.c.b16 %v1142, %v1141
        %v1158 = vpack.c.b16 %v1144, %v1143
        %v1159 = vpack.c.b16 %v1146, %v1145
        %v1160 = vpack.c.b16 %v1148, %v1147
        %v1161 = vpack.c.b16 %v1150, %v1149
        %v1162 = vpack.c.b16 %v1152, %v1151
        %v1163 = vpack.c.b16 %v1154, %v1153
        %v1164 = vpack.c.b16 %v1156, %v1155
        %1173 = vmatpush.bf16.msra.mxu0 %v1164
        %1174 = vmatpush.bf16.msra.mxu0 %v1163
        %1175 = vmatpush.bf16.msra.mxu0 %v1162
        %1176 = vmatpush.bf16.msra.mxu0 %v1161
        %1177 = vmatpush.bf16.msra.mxu0 %v1160
        %1178 = vmatpush.bf16.msra.mxu0 %v1159
        %1179 = vmatpush.bf16.msra.mxu0 %v1158
        %1180 = vmatpush.bf16.msra.mxu0 %v1157
        %1181 = vmatmul.bf16.gmra.mxu0 %v949
        %v1182 = vpop.f32.mrf.mxu0
        %v1183 = vadd.f32 %v1124, %v1182
        %v1184 = vpop.f32.mrf.mxu0
        %v1185 = vadd.f32 %v1124, %v1184
        %1186 = vdwg.mxu0
        %1189 = vrot.lane.b32.xlu0 %v1025, 96
        %v1190 = vpop.permute.xlu0 %1189
        %1191 = vrot.lane.b32.xlu0 %v1027, 96
        %v1192 = vpop.permute.xlu0 %1191
        %1195 = vrot.lane.b32.xlu0 %v1025, 64
        %v1196 = vpop.permute.xlu0 %1195
        %1197 = vrot.lane.b32.xlu0 %v1027, 64
        %v1198 = vpop.permute.xlu0 %1197
        %1201 = vrot.lane.b32.xlu0 %v1025, 32
        %v1202 = vpop.permute.xlu0 %1201
        %1203 = vrot.lane.b32.xlu0 %v1027, 32
        %v1204 = vpop.permute.xlu0 %1203
        %v1207 = vrot.slane %v1196, 4
        %vm1208 = vcmask 1047556
        %v1209 = vsel %vm1208, %v1207, %v1025
        %v1210 = vrot.slane %v1025, 4
        %v1211 = vsel %vm1208, %v1196, %v1210
        %v1213 = vunpack.c.l.s4 1983009808
        %v1214 = vunpack.c.0.s8 %v1213
        %v1215 = vperm.slane %v1209, %v1214
        %v1217 = vunpack.c.l.s4 1983009808
        %v1218 = vunpack.c.0.s8 %v1217
        %v1219 = vperm.slane %v1211, %v1218
        %v1220 = vrot.slane %v1202, 4
        %v1221 = vsel %vm1208, %v1220, %v1190
        %v1222 = vrot.slane %v1190, 4
        %v1223 = vsel %vm1208, %v1202, %v1222
        %v1225 = vunpack.c.l.s4 1983009808
        %v1226 = vunpack.c.0.s8 %v1225
        %v1227 = vperm.slane %v1221, %v1226
        %v1229 = vunpack.c.l.s4 1983009808
        %v1230 = vunpack.c.0.s8 %v1229
        %v1231 = vperm.slane %v1223, %v1230
        %v1232 = vrot.slane %v1227, 4
        %v1233 = vsel %vm1208, %v1232, %v1215
        %v1234 = vrot.slane %v1215, 4
        %v1235 = vsel %vm1208, %v1227, %v1234
        %v1237 = vunpack.c.l.s4 1934713408
        %v1238 = vunpack.c.0.s8 %v1237
        %v1239 = vperm.slane %v1233, %v1238
        %v1241 = vunpack.c.l.s4 1934713408
        %v1242 = vunpack.c.0.s8 %v1241
        %v1243 = vperm.slane %v1235, %v1242
        %v1244 = vrot.slane %v1231, 4
        %v1245 = vsel %vm1208, %v1244, %v1219
        %v1246 = vrot.slane %v1219, 4
        %v1247 = vsel %vm1208, %v1231, %v1246
        %v1249 = vunpack.c.l.s4 1934713408
        %v1250 = vunpack.c.0.s8 %v1249
        %v1251 = vperm.slane %v1245, %v1250
        %v1253 = vunpack.c.l.s4 1934713408
        %v1254 = vunpack.c.0.s8 %v1253
        %v1255 = vperm.slane %v1247, %v1254
        %v1256 = vrot.slane %v1239, 4
        %v1257 = vsel %vm1208, 0.0, %v1256
        %v1258 = vrot.slane %v1243, 4
        %v1259 = vsel %vm1208, 0.0, %v1258
        %v1260 = vrot.slane %v1251, 4
        %v1261 = vsel %vm1208, 0.0, %v1260
        %v1262 = vrot.slane %v1255, 4
        %v1263 = vsel %vm1208, 0.0, %v1262
        %v1264 = vrot.slane %v1198, 4
        %v1265 = vsel %vm1208, %v1264, %v1027
        %v1266 = vrot.slane %v1027, 4
        %v1267 = vsel %vm1208, %v1198, %v1266
        %v1269 = vunpack.c.l.s4 1983009808
        %v1270 = vunpack.c.0.s8 %v1269
        %v1271 = vperm.slane %v1265, %v1270
        %v1273 = vunpack.c.l.s4 1983009808
        %v1274 = vunpack.c.0.s8 %v1273
        %v1275 = vperm.slane %v1267, %v1274
        %v1276 = vrot.slane %v1204, 4
        %v1277 = vsel %vm1208, %v1276, %v1192
        %v1278 = vrot.slane %v1192, 4
        %v1279 = vsel %vm1208, %v1204, %v1278
        %v1281 = vunpack.c.l.s4 1983009808
        %v1282 = vunpack.c.0.s8 %v1281
        %v1283 = vperm.slane %v1277, %v1282
        %v1285 = vunpack.c.l.s4 1983009808
        %v1286 = vunpack.c.0.s8 %v1285
        %v1287 = vperm.slane %v1279, %v1286
        %v1288 = vrot.slane %v1283, 4
        %v1289 = vsel %vm1208, %v1288, %v1271
        %v1290 = vrot.slane %v1271, 4
        %v1291 = vsel %vm1208, %v1283, %v1290
        %v1293 = vunpack.c.l.s4 1934713408
        %v1294 = vunpack.c.0.s8 %v1293
        %v1295 = vperm.slane %v1289, %v1294
        %v1297 = vunpack.c.l.s4 1934713408
        %v1298 = vunpack.c.0.s8 %v1297
        %v1299 = vperm.slane %v1291, %v1298
        %v1300 = vrot.slane %v1287, 4
        %v1301 = vsel %vm1208, %v1300, %v1275
        %v1302 = vrot.slane %v1275, 4
        %v1303 = vsel %vm1208, %v1287, %v1302
        %v1305 = vunpack.c.l.s4 1934713408
        %v1306 = vunpack.c.0.s8 %v1305
        %v1307 = vperm.slane %v1301, %v1306
        %v1309 = vunpack.c.l.s4 1934713408
        %v1310 = vunpack.c.0.s8 %v1309
        %v1311 = vperm.slane %v1303, %v1310
        %v1312 = vrot.slane %v1295, 4
        %v1313 = vsel %vm1208, 0.0, %v1312
        %v1314 = vrot.slane %v1299, 4
        %v1315 = vsel %vm1208, 0.0, %v1314
        %v1316 = vrot.slane %v1307, 4
        %v1317 = vsel %vm1208, 0.0, %v1316
        %v1318 = vrot.slane %v1311, 4
        %v1319 = vsel %vm1208, 0.0, %v1318
        %v1320 = vsel %vm1208, %v1258, %v1239
        %v1322 = vunpack.c.l.s4 1983009808
        %v1323 = vunpack.c.0.s8 %v1322
        %v1324 = vperm.slane %v1320, %v1323
        %v1325 = vrot.slane %v1259, 4
        %v1326 = vsel %vm1208, %v1325, %v1257
        %v1328 = vunpack.c.l.s4 1983009808
        %v1329 = vunpack.c.0.s8 %v1328
        %v1330 = vperm.slane %v1326, %v1329
        %v1331 = vsel %vm1208, %v1262, %v1251
        %v1333 = vunpack.c.l.s4 1983009808
        %v1334 = vunpack.c.0.s8 %v1333
        %v1335 = vperm.slane %v1331, %v1334
        %v1336 = vrot.slane %v1263, 4
        %v1337 = vsel %vm1208, %v1336, %v1261
        %v1339 = vunpack.c.l.s4 1983009808
        %v1340 = vunpack.c.0.s8 %v1339
        %v1341 = vperm.slane %v1337, %v1340
        %v1342 = vrot.slane %v1330, 4
        %v1343 = vsel %vm1208, %v1342, %v1324
        %v1344 = vrot.slane %v1324, 4
        %v1345 = vsel %vm1208, %v1330, %v1344
        %v1347 = vunpack.c.l.s4 1934713408
        %v1348 = vunpack.c.0.s8 %v1347
        %v1349 = vperm.slane %v1343, %v1348
        %v1351 = vunpack.c.l.s4 1934713408
        %v1352 = vunpack.c.0.s8 %v1351
        %v1353 = vperm.slane %v1345, %v1352
        %v1354 = vrot.slane %v1341, 4
        %v1355 = vsel %vm1208, %v1354, %v1335
        %v1356 = vrot.slane %v1335, 4
        %v1357 = vsel %vm1208, %v1341, %v1356
        %v1359 = vunpack.c.l.s4 1934713408
        %v1360 = vunpack.c.0.s8 %v1359
        %v1361 = vperm.slane %v1355, %v1360
        %v1363 = vunpack.c.l.s4 1934713408
        %v1364 = vunpack.c.0.s8 %v1363
        %v1365 = vperm.slane %v1357, %v1364
        %v1366 = vrot.slane %v1361, 4
        %v1367 = vsel %vm1208, %v1366, %v1349
        %v1368 = vrot.slane %v1349, 4
        %v1369 = vsel %vm1208, %v1361, %v1368
        %v1370 = vrot.slane %v1365, 4
        %v1371 = vsel %vm1208, %v1370, %v1353
        %v1372 = vrot.slane %v1353, 4
        %v1373 = vsel %vm1208, %v1365, %v1372
        %v1374 = vsel %vm1208, %v1314, %v1295
        %v1376 = vunpack.c.l.s4 1983009808
        %v1377 = vunpack.c.0.s8 %v1376
        %v1378 = vperm.slane %v1374, %v1377
        %v1379 = vrot.slane %v1315, 4
        %v1380 = vsel %vm1208, %v1379, %v1313
        %v1382 = vunpack.c.l.s4 1983009808
        %v1383 = vunpack.c.0.s8 %v1382
        %v1384 = vperm.slane %v1380, %v1383
        %v1385 = vsel %vm1208, %v1318, %v1307
        %v1387 = vunpack.c.l.s4 1983009808
        %v1388 = vunpack.c.0.s8 %v1387
        %v1389 = vperm.slane %v1385, %v1388
        %v1390 = vrot.slane %v1319, 4
        %v1391 = vsel %vm1208, %v1390, %v1317
        %v1393 = vunpack.c.l.s4 1983009808
        %v1394 = vunpack.c.0.s8 %v1393
        %v1395 = vperm.slane %v1391, %v1394
        %v1396 = vrot.slane %v1384, 4
        %v1397 = vsel %vm1208, %v1396, %v1378
        %v1398 = vrot.slane %v1378, 4
        %v1399 = vsel %vm1208, %v1384, %v1398
        %v1401 = vunpack.c.l.s4 1934713408
        %v1402 = vunpack.c.0.s8 %v1401
        %v1403 = vperm.slane %v1397, %v1402
        %v1405 = vunpack.c.l.s4 1934713408
        %v1406 = vunpack.c.0.s8 %v1405
        %v1407 = vperm.slane %v1399, %v1406
        %v1408 = vrot.slane %v1395, 4
        %v1409 = vsel %vm1208, %v1408, %v1389
        %v1410 = vrot.slane %v1389, 4
        %v1411 = vsel %vm1208, %v1395, %v1410
        %v1413 = vunpack.c.l.s4 1934713408
        %v1414 = vunpack.c.0.s8 %v1413
        %v1415 = vperm.slane %v1409, %v1414
        %v1417 = vunpack.c.l.s4 1934713408
        %v1418 = vunpack.c.0.s8 %v1417
        %v1419 = vperm.slane %v1411, %v1418
        %v1420 = vrot.slane %v1415, 4
        %v1421 = vsel %vm1208, %v1420, %v1403
        %v1422 = vrot.slane %v1403, 4
        %v1423 = vsel %vm1208, %v1415, %v1422
        %v1424 = vrot.slane %v1419, 4
        %v1425 = vsel %vm1208, %v1424, %v1407
        %v1426 = vrot.slane %v1407, 4
        %v1427 = vsel %vm1208, %v1419, %v1426
        %1430 = vrot.lane.b32.xlu0 %v1104, 96
        %v1431 = vpop.permute.xlu0 %1430
        %1432 = vrot.lane.b32.xlu0 %v1106, 96
        %v1433 = vpop.permute.xlu0 %1432
        %1436 = vrot.lane.b32.xlu0 %v1104, 64
        %v1437 = vpop.permute.xlu0 %1436
        %1438 = vrot.lane.b32.xlu0 %v1106, 64
        %v1439 = vpop.permute.xlu0 %1438
        %1442 = vrot.lane.b32.xlu0 %v1104, 32
        %v1443 = vpop.permute.xlu0 %1442
        %1444 = vrot.lane.b32.xlu0 %v1106, 32
        %v1445 = vpop.permute.xlu0 %1444
        %v1448 = vrot.slane %v1437, 4
        %v1449 = vsel %vm1208, %v1448, %v1104
        %v1450 = vrot.slane %v1104, 4
        %v1451 = vsel %vm1208, %v1437, %v1450
        %v1453 = vunpack.c.l.s4 1983009808
        %v1454 = vunpack.c.0.s8 %v1453
        %v1455 = vperm.slane %v1449, %v1454
        %v1457 = vunpack.c.l.s4 1983009808
        %v1458 = vunpack.c.0.s8 %v1457
        %v1459 = vperm.slane %v1451, %v1458
        %v1460 = vrot.slane %v1443, 4
        %v1461 = vsel %vm1208, %v1460, %v1431
        %v1462 = vrot.slane %v1431, 4
        %v1463 = vsel %vm1208, %v1443, %v1462
        %v1465 = vunpack.c.l.s4 1983009808
        %v1466 = vunpack.c.0.s8 %v1465
        %v1467 = vperm.slane %v1461, %v1466
        %v1469 = vunpack.c.l.s4 1983009808
        %v1470 = vunpack.c.0.s8 %v1469
        %v1471 = vperm.slane %v1463, %v1470
        %v1472 = vrot.slane %v1467, 4
        %v1473 = vsel %vm1208, %v1472, %v1455
        %v1474 = vrot.slane %v1455, 4
        %v1475 = vsel %vm1208, %v1467, %v1474
        %v1477 = vunpack.c.l.s4 1934713408
        %v1478 = vunpack.c.0.s8 %v1477
        %v1479 = vperm.slane %v1473, %v1478
        %v1481 = vunpack.c.l.s4 1934713408
        %v1482 = vunpack.c.0.s8 %v1481
        %v1483 = vperm.slane %v1475, %v1482
        %v1484 = vrot.slane %v1471, 4
        %v1485 = vsel %vm1208, %v1484, %v1459
        %v1486 = vrot.slane %v1459, 4
        %v1487 = vsel %vm1208, %v1471, %v1486
        %v1489 = vunpack.c.l.s4 1934713408
        %v1490 = vunpack.c.0.s8 %v1489
        %v1491 = vperm.slane %v1485, %v1490
        %v1493 = vunpack.c.l.s4 1934713408
        %v1494 = vunpack.c.0.s8 %v1493
        %v1495 = vperm.slane %v1487, %v1494
        %v1496 = vrot.slane %v1479, 4
        %v1497 = vsel %vm1208, 0.0, %v1496
        %v1498 = vrot.slane %v1483, 4
        %v1499 = vsel %vm1208, 0.0, %v1498
        %v1500 = vrot.slane %v1491, 4
        %v1501 = vsel %vm1208, 0.0, %v1500
        %v1502 = vrot.slane %v1495, 4
        %v1503 = vsel %vm1208, 0.0, %v1502
        %v1504 = vrot.slane %v1439, 4
        %v1505 = vsel %vm1208, %v1504, %v1106
        %v1506 = vrot.slane %v1106, 4
        %v1507 = vsel %vm1208, %v1439, %v1506
        %v1509 = vunpack.c.l.s4 1983009808
        %v1510 = vunpack.c.0.s8 %v1509
        %v1511 = vperm.slane %v1505, %v1510
        %v1513 = vunpack.c.l.s4 1983009808
        %v1514 = vunpack.c.0.s8 %v1513
        %v1515 = vperm.slane %v1507, %v1514
        %v1516 = vrot.slane %v1445, 4
        %v1517 = vsel %vm1208, %v1516, %v1433
        %v1518 = vrot.slane %v1433, 4
        %v1519 = vsel %vm1208, %v1445, %v1518
        %v1521 = vunpack.c.l.s4 1983009808
        %v1522 = vunpack.c.0.s8 %v1521
        %v1523 = vperm.slane %v1517, %v1522
        %v1525 = vunpack.c.l.s4 1983009808
        %v1526 = vunpack.c.0.s8 %v1525
        %v1527 = vperm.slane %v1519, %v1526
        %v1528 = vrot.slane %v1523, 4
        %v1529 = vsel %vm1208, %v1528, %v1511
        %v1530 = vrot.slane %v1511, 4
        %v1531 = vsel %vm1208, %v1523, %v1530
        %v1533 = vunpack.c.l.s4 1934713408
        %v1534 = vunpack.c.0.s8 %v1533
        %v1535 = vperm.slane %v1529, %v1534
        %v1537 = vunpack.c.l.s4 1934713408
        %v1538 = vunpack.c.0.s8 %v1537
        %v1539 = vperm.slane %v1531, %v1538
        %v1540 = vrot.slane %v1527, 4
        %v1541 = vsel %vm1208, %v1540, %v1515
        %v1542 = vrot.slane %v1515, 4
        %v1543 = vsel %vm1208, %v1527, %v1542
        %v1545 = vunpack.c.l.s4 1934713408
        %v1546 = vunpack.c.0.s8 %v1545
        %v1547 = vperm.slane %v1541, %v1546
        %v1549 = vunpack.c.l.s4 1934713408
        %v1550 = vunpack.c.0.s8 %v1549
        %v1551 = vperm.slane %v1543, %v1550
        %v1552 = vrot.slane %v1535, 4
        %v1553 = vsel %vm1208, 0.0, %v1552
        %v1554 = vrot.slane %v1539, 4
        %v1555 = vsel %vm1208, 0.0, %v1554
        %v1556 = vrot.slane %v1547, 4
        %v1557 = vsel %vm1208, 0.0, %v1556
        %v1558 = vrot.slane %v1551, 4
        %v1559 = vsel %vm1208, 0.0, %v1558
        %v1560 = vsel %vm1208, %v1498, %v1479
        %v1562 = vunpack.c.l.s4 1983009808
        %v1563 = vunpack.c.0.s8 %v1562
        %v1564 = vperm.slane %v1560, %v1563
        %v1565 = vrot.slane %v1499, 4
        %v1566 = vsel %vm1208, %v1565, %v1497
        %v1568 = vunpack.c.l.s4 1983009808
        %v1569 = vunpack.c.0.s8 %v1568
        %v1570 = vperm.slane %v1566, %v1569
        %v1571 = vsel %vm1208, %v1502, %v1491
        %v1573 = vunpack.c.l.s4 1983009808
        %v1574 = vunpack.c.0.s8 %v1573
        %v1575 = vperm.slane %v1571, %v1574
        %v1576 = vrot.slane %v1503, 4
        %v1577 = vsel %vm1208, %v1576, %v1501
        %v1579 = vunpack.c.l.s4 1983009808
        %v1580 = vunpack.c.0.s8 %v1579
        %v1581 = vperm.slane %v1577, %v1580
        %v1582 = vrot.slane %v1570, 4
        %v1583 = vsel %vm1208, %v1582, %v1564
        %v1584 = vrot.slane %v1564, 4
        %v1585 = vsel %vm1208, %v1570, %v1584
        %v1587 = vunpack.c.l.s4 1934713408
        %v1588 = vunpack.c.0.s8 %v1587
        %v1589 = vperm.slane %v1583, %v1588
        %v1591 = vunpack.c.l.s4 1934713408
        %v1592 = vunpack.c.0.s8 %v1591
        %v1593 = vperm.slane %v1585, %v1592
        %v1594 = vrot.slane %v1581, 4
        %v1595 = vsel %vm1208, %v1594, %v1575
        %v1596 = vrot.slane %v1575, 4
        %v1597 = vsel %vm1208, %v1581, %v1596
        %v1599 = vunpack.c.l.s4 1934713408
        %v1600 = vunpack.c.0.s8 %v1599
        %v1601 = vperm.slane %v1595, %v1600
        %v1603 = vunpack.c.l.s4 1934713408
        %v1604 = vunpack.c.0.s8 %v1603
        %v1605 = vperm.slane %v1597, %v1604
        %v1606 = vrot.slane %v1601, 4
        %v1607 = vsel %vm1208, %v1606, %v1589
        %v1608 = vrot.slane %v1589, 4
        %v1609 = vsel %vm1208, %v1601, %v1608
        %v1610 = vrot.slane %v1605, 4
        %v1611 = vsel %vm1208, %v1610, %v1593
        %v1612 = vrot.slane %v1593, 4
        %v1613 = vsel %vm1208, %v1605, %v1612
        %v1614 = vsel %vm1208, %v1554, %v1535
        %v1616 = vunpack.c.l.s4 1983009808
        %v1617 = vunpack.c.0.s8 %v1616
        %v1618 = vperm.slane %v1614, %v1617
        %v1619 = vrot.slane %v1555, 4
        %v1620 = vsel %vm1208, %v1619, %v1553
        %v1622 = vunpack.c.l.s4 1983009808
        %v1623 = vunpack.c.0.s8 %v1622
        %v1624 = vperm.slane %v1620, %v1623
        %v1625 = vsel %vm1208, %v1558, %v1547
        %v1627 = vunpack.c.l.s4 1983009808
        %v1628 = vunpack.c.0.s8 %v1627
        %v1629 = vperm.slane %v1625, %v1628
        %v1630 = vrot.slane %v1559, 4
        %v1631 = vsel %vm1208, %v1630, %v1557
        %v1633 = vunpack.c.l.s4 1983009808
        %v1634 = vunpack.c.0.s8 %v1633
        %v1635 = vperm.slane %v1631, %v1634
        %v1636 = vrot.slane %v1624, 4
        %v1637 = vsel %vm1208, %v1636, %v1618
        %v1638 = vrot.slane %v1618, 4
        %v1639 = vsel %vm1208, %v1624, %v1638
        %v1641 = vunpack.c.l.s4 1934713408
        %v1642 = vunpack.c.0.s8 %v1641
        %v1643 = vperm.slane %v1637, %v1642
        %v1645 = vunpack.c.l.s4 1934713408
        %v1646 = vunpack.c.0.s8 %v1645
        %v1647 = vperm.slane %v1639, %v1646
        %v1648 = vrot.slane %v1635, 4
        %v1649 = vsel %vm1208, %v1648, %v1629
        %v1650 = vrot.slane %v1629, 4
        %v1651 = vsel %vm1208, %v1635, %v1650
        %v1653 = vunpack.c.l.s4 1934713408
        %v1654 = vunpack.c.0.s8 %v1653
        %v1655 = vperm.slane %v1649, %v1654
        %v1657 = vunpack.c.l.s4 1934713408
        %v1658 = vunpack.c.0.s8 %v1657
        %v1659 = vperm.slane %v1651, %v1658
        %v1660 = vrot.slane %v1655, 4
        %v1661 = vsel %vm1208, %v1660, %v1643
        %v1662 = vrot.slane %v1643, 4
        %v1663 = vsel %vm1208, %v1655, %v1662
        %v1664 = vrot.slane %v1659, 4
        %v1665 = vsel %vm1208, %v1664, %v1647
        %v1666 = vrot.slane %v1647, 4
        %v1667 = vsel %vm1208, %v1659, %v1666
        %1670 = vrot.lane.b32.xlu0 %v1183, 96
        %v1671 = vpop.permute.xlu0 %1670
        %1672 = vrot.lane.b32.xlu0 %v1185, 96
        %v1673 = vpop.permute.xlu0 %1672
        %1676 = vrot.lane.b32.xlu0 %v1183, 64
        %v1677 = vpop.permute.xlu0 %1676
        %1678 = vrot.lane.b32.xlu0 %v1185, 64
        %v1679 = vpop.permute.xlu0 %1678
        %1682 = vrot.lane.b32.xlu0 %v1183, 32
        %v1683 = vpop.permute.xlu0 %1682
        %1684 = vrot.lane.b32.xlu0 %v1185, 32
        %v1685 = vpop.permute.xlu0 %1684
        %v1688 = vrot.slane %v1677, 4
        %v1689 = vsel %vm1208, %v1688, %v1183
        %v1690 = vrot.slane %v1183, 4
        %v1691 = vsel %vm1208, %v1677, %v1690
        %v1693 = vunpack.c.l.s4 1983009808
        %v1694 = vunpack.c.0.s8 %v1693
        %v1695 = vperm.slane %v1689, %v1694
        %v1697 = vunpack.c.l.s4 1983009808
        %v1698 = vunpack.c.0.s8 %v1697
        %v1699 = vperm.slane %v1691, %v1698
        %v1700 = vrot.slane %v1683, 4
        %v1701 = vsel %vm1208, %v1700, %v1671
        %v1702 = vrot.slane %v1671, 4
        %v1703 = vsel %vm1208, %v1683, %v1702
        %v1705 = vunpack.c.l.s4 1983009808
        %v1706 = vunpack.c.0.s8 %v1705
        %v1707 = vperm.slane %v1701, %v1706
        %v1709 = vunpack.c.l.s4 1983009808
        %v1710 = vunpack.c.0.s8 %v1709
        %v1711 = vperm.slane %v1703, %v1710
        %v1712 = vrot.slane %v1707, 4
        %v1713 = vsel %vm1208, %v1712, %v1695
        %v1714 = vrot.slane %v1695, 4
        %v1715 = vsel %vm1208, %v1707, %v1714
        %v1717 = vunpack.c.l.s4 1934713408
        %v1718 = vunpack.c.0.s8 %v1717
        %v1719 = vperm.slane %v1713, %v1718
        %v1721 = vunpack.c.l.s4 1934713408
        %v1722 = vunpack.c.0.s8 %v1721
        %v1723 = vperm.slane %v1715, %v1722
        %v1724 = vrot.slane %v1711, 4
        %v1725 = vsel %vm1208, %v1724, %v1699
        %v1726 = vrot.slane %v1699, 4
        %v1727 = vsel %vm1208, %v1711, %v1726
        %v1729 = vunpack.c.l.s4 1934713408
        %v1730 = vunpack.c.0.s8 %v1729
        %v1731 = vperm.slane %v1725, %v1730
        %v1733 = vunpack.c.l.s4 1934713408
        %v1734 = vunpack.c.0.s8 %v1733
        %v1735 = vperm.slane %v1727, %v1734
        %v1736 = vrot.slane %v1719, 4
        %v1737 = vsel %vm1208, 0.0, %v1736
        %v1738 = vrot.slane %v1723, 4
        %v1739 = vsel %vm1208, 0.0, %v1738
        %v1740 = vrot.slane %v1731, 4
        %v1741 = vsel %vm1208, 0.0, %v1740
        %v1742 = vrot.slane %v1735, 4
        %v1743 = vsel %vm1208, 0.0, %v1742
        %v1744 = vrot.slane %v1679, 4
        %v1745 = vsel %vm1208, %v1744, %v1185
        %v1746 = vrot.slane %v1185, 4
        %v1747 = vsel %vm1208, %v1679, %v1746
        %v1749 = vunpack.c.l.s4 1983009808
        %v1750 = vunpack.c.0.s8 %v1749
        %v1751 = vperm.slane %v1745, %v1750
        %v1753 = vunpack.c.l.s4 1983009808
        %v1754 = vunpack.c.0.s8 %v1753
        %v1755 = vperm.slane %v1747, %v1754
        %v1756 = vrot.slane %v1685, 4
        %v1757 = vsel %vm1208, %v1756, %v1673
        %v1758 = vrot.slane %v1673, 4
        %v1759 = vsel %vm1208, %v1685, %v1758
        %v1761 = vunpack.c.l.s4 1983009808
        %v1762 = vunpack.c.0.s8 %v1761
        %v1763 = vperm.slane %v1757, %v1762
        %v1765 = vunpack.c.l.s4 1983009808
        %v1766 = vunpack.c.0.s8 %v1765
        %v1767 = vperm.slane %v1759, %v1766
        %v1768 = vrot.slane %v1763, 4
        %v1769 = vsel %vm1208, %v1768, %v1751
        %v1770 = vrot.slane %v1751, 4
        %v1771 = vsel %vm1208, %v1763, %v1770
        %v1773 = vunpack.c.l.s4 1934713408
        %v1774 = vunpack.c.0.s8 %v1773
        %v1775 = vperm.slane %v1769, %v1774
        %v1777 = vunpack.c.l.s4 1934713408
        %v1778 = vunpack.c.0.s8 %v1777
        %v1779 = vperm.slane %v1771, %v1778
        %v1780 = vrot.slane %v1767, 4
        %v1781 = vsel %vm1208, %v1780, %v1755
        %v1782 = vrot.slane %v1755, 4
        %v1783 = vsel %vm1208, %v1767, %v1782
        %v1785 = vunpack.c.l.s4 1934713408
        %v1786 = vunpack.c.0.s8 %v1785
        %v1787 = vperm.slane %v1781, %v1786
        %v1789 = vunpack.c.l.s4 1934713408
        %v1790 = vunpack.c.0.s8 %v1789
        %v1791 = vperm.slane %v1783, %v1790
        %v1792 = vrot.slane %v1775, 4
        %v1793 = vsel %vm1208, 0.0, %v1792
        %v1794 = vrot.slane %v1779, 4
        %v1795 = vsel %vm1208, 0.0, %v1794
        %v1796 = vrot.slane %v1787, 4
        %v1797 = vsel %vm1208, 0.0, %v1796
        %v1798 = vrot.slane %v1791, 4
        %v1799 = vsel %vm1208, 0.0, %v1798
        %v1800 = vsel %vm1208, %v1738, %v1719
        %v1802 = vunpack.c.l.s4 1983009808
        %v1803 = vunpack.c.0.s8 %v1802
        %v1804 = vperm.slane %v1800, %v1803
        %v1805 = vrot.slane %v1739, 4
        %v1806 = vsel %vm1208, %v1805, %v1737
        %v1808 = vunpack.c.l.s4 1983009808
        %v1809 = vunpack.c.0.s8 %v1808
        %v1810 = vperm.slane %v1806, %v1809
        %v1811 = vsel %vm1208, %v1742, %v1731
        %v1813 = vunpack.c.l.s4 1983009808
        %v1814 = vunpack.c.0.s8 %v1813
        %v1815 = vperm.slane %v1811, %v1814
        %v1816 = vrot.slane %v1743, 4
        %v1817 = vsel %vm1208, %v1816, %v1741
        %v1819 = vunpack.c.l.s4 1983009808
        %v1820 = vunpack.c.0.s8 %v1819
        %v1821 = vperm.slane %v1817, %v1820
        %v1822 = vrot.slane %v1810, 4
        %v1823 = vsel %vm1208, %v1822, %v1804
        %v1824 = vrot.slane %v1804, 4
        %v1825 = vsel %vm1208, %v1810, %v1824
        %v1827 = vunpack.c.l.s4 1934713408
        %v1828 = vunpack.c.0.s8 %v1827
        %v1829 = vperm.slane %v1823, %v1828
        %v1831 = vunpack.c.l.s4 1934713408
        %v1832 = vunpack.c.0.s8 %v1831
        %v1833 = vperm.slane %v1825, %v1832
        %v1834 = vrot.slane %v1821, 4
        %v1835 = vsel %vm1208, %v1834, %v1815
        %v1836 = vrot.slane %v1815, 4
        %v1837 = vsel %vm1208, %v1821, %v1836
        %v1839 = vunpack.c.l.s4 1934713408
        %v1840 = vunpack.c.0.s8 %v1839
        %v1841 = vperm.slane %v1835, %v1840
        %v1843 = vunpack.c.l.s4 1934713408
        %v1844 = vunpack.c.0.s8 %v1843
        %v1845 = vperm.slane %v1837, %v1844
        %v1846 = vrot.slane %v1841, 4
        %v1847 = vsel %vm1208, %v1846, %v1829
        %v1848 = vrot.slane %v1829, 4
        %v1849 = vsel %vm1208, %v1841, %v1848
        %v1850 = vrot.slane %v1845, 4
        %v1851 = vsel %vm1208, %v1850, %v1833
        %v1852 = vrot.slane %v1833, 4
        %v1853 = vsel %vm1208, %v1845, %v1852
        %v1854 = vsel %vm1208, %v1794, %v1775
        %v1856 = vunpack.c.l.s4 1983009808
        %v1857 = vunpack.c.0.s8 %v1856
        %v1858 = vperm.slane %v1854, %v1857
        %v1859 = vrot.slane %v1795, 4
        %v1860 = vsel %vm1208, %v1859, %v1793
        %v1862 = vunpack.c.l.s4 1983009808
        %v1863 = vunpack.c.0.s8 %v1862
        %v1864 = vperm.slane %v1860, %v1863
        %v1865 = vsel %vm1208, %v1798, %v1787
        %v1867 = vunpack.c.l.s4 1983009808
        %v1868 = vunpack.c.0.s8 %v1867
        %v1869 = vperm.slane %v1865, %v1868
        %v1870 = vrot.slane %v1799, 4
        %v1871 = vsel %vm1208, %v1870, %v1797
        %v1873 = vunpack.c.l.s4 1983009808
        %v1874 = vunpack.c.0.s8 %v1873
        %v1875 = vperm.slane %v1871, %v1874
        %v1876 = vrot.slane %v1864, 4
        %v1877 = vsel %vm1208, %v1876, %v1858
        %v1878 = vrot.slane %v1858, 4
        %v1879 = vsel %vm1208, %v1864, %v1878
        %v1881 = vunpack.c.l.s4 1934713408
        %v1882 = vunpack.c.0.s8 %v1881
        %v1883 = vperm.slane %v1877, %v1882
        %v1885 = vunpack.c.l.s4 1934713408
        %v1886 = vunpack.c.0.s8 %v1885
        %v1887 = vperm.slane %v1879, %v1886
        %v1888 = vrot.slane %v1875, 4
        %v1889 = vsel %vm1208, %v1888, %v1869
        %v1890 = vrot.slane %v1869, 4
        %v1891 = vsel %vm1208, %v1875, %v1890
        %v1893 = vunpack.c.l.s4 1934713408
        %v1894 = vunpack.c.0.s8 %v1893
        %v1895 = vperm.slane %v1889, %v1894
        %v1897 = vunpack.c.l.s4 1934713408
        %v1898 = vunpack.c.0.s8 %v1897
        %v1899 = vperm.slane %v1891, %v1898
        %v1900 = vrot.slane %v1895, 4
        %v1901 = vsel %vm1208, %v1900, %v1883
        %v1902 = vrot.slane %v1883, 4
        %v1903 = vsel %vm1208, %v1895, %v1902
        %v1904 = vrot.slane %v1899, 4
        %v1905 = vsel %vm1208, %v1904, %v1887
        %v1906 = vrot.slane %v1887, 4
        %v1907 = vsel %vm1208, %v1899, %v1906
        %v1908 = vpack.c.bf16 %v1367, %v1367
        %v1909 = vpack.c.bf16 %v1369, %v1369
        %v1910 = vpack.c.bf16 %v1371, %v1371
        %v1911 = vpack.c.bf16 %v1373, %v1373
        %v1912 = vpack.c.bf16 %v1421, %v1421
        %v1913 = vpack.c.bf16 %v1423, %v1423
        %v1914 = vpack.c.bf16 %v1425, %v1425
        %v1915 = vpack.c.bf16 %v1427, %v1427
        %v1916 = vpack.c.bf16 %v1607, %v1607
        %v1917 = vpack.c.bf16 %v1609, %v1609
        %v1918 = vpack.c.bf16 %v1611, %v1611
        %v1919 = vpack.c.bf16 %v1613, %v1613
        %v1920 = vpack.c.bf16 %v1661, %v1661
        %v1921 = vpack.c.bf16 %v1663, %v1663
        %v1922 = vpack.c.bf16 %v1665, %v1665
        %v1923 = vpack.c.bf16 %v1667, %v1667
        %vm1924 = vcmask 261120
        %v1926 = vsel %vm1924, %v1908, 0
        %v1929 = vsel %vm1924, %v1916, 0
        %1931 = vmatpush.bf16.xpose.msra.mxu0 0
        %1932 = vmatpush.bf16.xpose.msra.mxu0 0
        %1933 = vmatpush.bf16.xpose.msra.mxu0 0
        %1934 = vmatpush.bf16.xpose.msra.mxu0 0
        %1935 = vmatpush.bf16.xpose.msra.mxu0 0
        %1936 = vmatpush.bf16.xpose.msra.mxu0 0
        %1937 = vmatpush.bf16.xpose.msra.mxu0 0
        %1938 = vmatpush.bf16.xpose.msra.mxu0 %v1929
        %1939 = vmatmul.bf16.gmra.mxu0 %v1926
        %v1940 = vpop.f32.mrf.mxu0
        %v1941 = vadd.f32 0.0, %v1940
        %v1942 = vpop.f32.mrf.mxu0
        %1943 = vdwg.mxu0
        %v1945 = vsel %vm1924, %v1909, 0
        %v1948 = vsel %vm1924, %v1917, 0
        %1950 = vmatpush.bf16.xpose.msra.mxu0 0
        %1951 = vmatpush.bf16.xpose.msra.mxu0 0
        %1952 = vmatpush.bf16.xpose.msra.mxu0 0
        %1953 = vmatpush.bf16.xpose.msra.mxu0 0
        %1954 = vmatpush.bf16.xpose.msra.mxu0 0
        %1955 = vmatpush.bf16.xpose.msra.mxu0 0
        %1956 = vmatpush.bf16.xpose.msra.mxu0 0
        %1957 = vmatpush.bf16.xpose.msra.mxu0 %v1948
        %1958 = vmatmul.bf16.gmra.mxu0 %v1945
        %v1959 = vpop.f32.mrf.mxu0
        %v1960 = vadd.f32 0.0, %v1959
        %v1961 = vpop.f32.mrf.mxu0
        %1962 = vdwg.mxu0
        %v1964 = vsel %vm1924, %v1910, 0
        %v1967 = vsel %vm1924, %v1918, 0
        %1969 = vmatpush.bf16.xpose.msra.mxu0 0
        %1970 = vmatpush.bf16.xpose.msra.mxu0 0
        %1971 = vmatpush.bf16.xpose.msra.mxu0 0
        %1972 = vmatpush.bf16.xpose.msra.mxu0 0
        %1973 = vmatpush.bf16.xpose.msra.mxu0 0
        %1974 = vmatpush.bf16.xpose.msra.mxu0 0
        %1975 = vmatpush.bf16.xpose.msra.mxu0 0
        %1976 = vmatpush.bf16.xpose.msra.mxu0 %v1967
        %1977 = vmatmul.bf16.gmra.mxu0 %v1964
        %v1978 = vpop.f32.mrf.mxu0
        %v1979 = vadd.f32 0.0, %v1978
        %v1980 = vpop.f32.mrf.mxu0
        %1981 = vdwg.mxu0
        %v1983 = vsel %vm1924, %v1911, 0
        %v1986 = vsel %vm1924, %v1919, 0
        %1988 = vmatpush.bf16.xpose.msra.mxu0 0
        %1989 = vmatpush.bf16.xpose.msra.mxu0 0
        %1990 = vmatpush.bf16.xpose.msra.mxu0 0
        %1991 = vmatpush.bf16.xpose.msra.mxu0 0
        %1992 = vmatpush.bf16.xpose.msra.mxu0 0
        %1993 = vmatpush.bf16.xpose.msra.mxu0 0
        %1994 = vmatpush.bf16.xpose.msra.mxu0 0
        %1995 = vmatpush.bf16.xpose.msra.mxu0 %v1986
        %1996 = vmatmul.bf16.gmra.mxu0 %v1983
        %v1997 = vpop.f32.mrf.mxu0
        %v1998 = vadd.f32 0.0, %v1997
        %v1999 = vpop.f32.mrf.mxu0
        %2000 = vdwg.mxu0
        %v2002 = vsel %vm1924, %v1912, 0
        %v2005 = vsel %vm1924, %v1920, 0
        %2007 = vmatpush.bf16.xpose.msra.mxu0 0
        %2008 = vmatpush.bf16.xpose.msra.mxu0 0
        %2009 = vmatpush.bf16.xpose.msra.mxu0 0
        %2010 = vmatpush.bf16.xpose.msra.mxu0 0
        %2011 = vmatpush.bf16.xpose.msra.mxu0 0
        %2012 = vmatpush.bf16.xpose.msra.mxu0 0
        %2013 = vmatpush.bf16.xpose.msra.mxu0 0
        %2014 = vmatpush.bf16.xpose.msra.mxu0 %v2005
        %2015 = vmatmul.bf16.gmra.mxu0 %v2002
        %v2016 = vpop.f32.mrf.mxu0
        %v2017 = vadd.f32 0.0, %v2016
        %v2018 = vpop.f32.mrf.mxu0
        %2019 = vdwg.mxu0
        %v2021 = vsel %vm1924, %v1913, 0
        %v2024 = vsel %vm1924, %v1921, 0
        %2026 = vmatpush.bf16.xpose.msra.mxu0 0
        %2027 = vmatpush.bf16.xpose.msra.mxu0 0
        %2028 = vmatpush.bf16.xpose.msra.mxu0 0
        %2029 = vmatpush.bf16.xpose.msra.mxu0 0
        %2030 = vmatpush.bf16.xpose.msra.mxu0 0
        %2031 = vmatpush.bf16.xpose.msra.mxu0 0
        %2032 = vmatpush.bf16.xpose.msra.mxu0 0
        %2033 = vmatpush.bf16.xpose.msra.mxu0 %v2024
        %2034 = vmatmul.bf16.gmra.mxu0 %v2021
        %v2035 = vpop.f32.mrf.mxu0
        %v2036 = vadd.f32 0.0, %v2035
        %v2037 = vpop.f32.mrf.mxu0
        %2038 = vdwg.mxu0
        %v2040 = vsel %vm1924, %v1914, 0
        %v2043 = vsel %vm1924, %v1922, 0
        %2045 = vmatpush.bf16.xpose.msra.mxu0 0
        %2046 = vmatpush.bf16.xpose.msra.mxu0 0
        %2047 = vmatpush.bf16.xpose.msra.mxu0 0
        %2048 = vmatpush.bf16.xpose.msra.mxu0 0
        %2049 = vmatpush.bf16.xpose.msra.mxu0 0
        %2050 = vmatpush.bf16.xpose.msra.mxu0 0
        %2051 = vmatpush.bf16.xpose.msra.mxu0 0
        %2052 = vmatpush.bf16.xpose.msra.mxu0 %v2043
        %2053 = vmatmul.bf16.gmra.mxu0 %v2040
        %v2054 = vpop.f32.mrf.mxu0
        %v2055 = vadd.f32 0.0, %v2054
        %v2056 = vpop.f32.mrf.mxu0
        %2057 = vdwg.mxu0
        %v2059 = vsel %vm1924, %v1915, 0
        %v2062 = vsel %vm1924, %v1923, 0
        %2064 = vmatpush.bf16.xpose.msra.mxu0 0
        %2065 = vmatpush.bf16.xpose.msra.mxu0 0
        %2066 = vmatpush.bf16.xpose.msra.mxu0 0
        %2067 = vmatpush.bf16.xpose.msra.mxu0 0
        %2068 = vmatpush.bf16.xpose.msra.mxu0 0
        %2069 = vmatpush.bf16.xpose.msra.mxu0 0
        %2070 = vmatpush.bf16.xpose.msra.mxu0 0
        %2071 = vmatpush.bf16.xpose.msra.mxu0 %v2062
        %2072 = vmatmul.bf16.gmra.mxu0 %v2059
        %v2073 = vpop.f32.mrf.mxu0
        %v2074 = vadd.f32 0.0, %v2073
        %v2075 = vpop.f32.mrf.mxu0
        %2076 = vdwg.mxu0
        %vm2077 = vcmask 64512
        %v2078 = vsel %vm2077, %v1941, -inf
        %2079 = vmax.xlane.f32.xlu0 %v2078
        %v2080 = vpop.xlane.xlu0 %2079
        %v2081 = vsel %vm2077, %v1960, -inf
        %2082 = vmax.xlane.f32.xlu0 %v2081
        %v2083 = vpop.xlane.xlu0 %2082
        %v2084 = vsel %vm2077, %v1979, -inf
        %2085 = vmax.xlane.f32.xlu0 %v2084
        %v2086 = vpop.xlane.xlu0 %2085
        %v2087 = vsel %vm2077, %v1998, -inf
        %2088 = vmax.xlane.f32.xlu0 %v2087
        %v2089 = vpop.xlane.xlu0 %2088
        %v2090 = vsel %vm2077, %v2017, -inf
        %2091 = vmax.xlane.f32.xlu0 %v2090
        %v2092 = vpop.xlane.xlu0 %2091
        %v2093 = vsel %vm2077, %v2036, -inf
        %2094 = vmax.xlane.f32.xlu0 %v2093
        %v2095 = vpop.xlane.xlu0 %2094
        %v2096 = vsel %vm2077, %v2055, -inf
        %2097 = vmax.xlane.f32.xlu0 %v2096
        %v2098 = vpop.xlane.xlu0 %2097
        %v2099 = vsel %vm2077, %v2074, -inf
        %2100 = vmax.xlane.f32.xlu0 %v2099
        %v2101 = vpop.xlane.xlu0 %2100
        %v2102 = vsub.f32 %v1941, %v2080
        %v2103 = vsub.f32 %v1960, %v2083
        %v2104 = vsub.f32 %v1979, %v2086
        %v2105 = vsub.f32 %v1998, %v2089
        %v2106 = vsub.f32 %v2017, %v2092
        %v2107 = vsub.f32 %v2036, %v2095
        %v2108 = vsub.f32 %v2055, %v2098
        %v2109 = vsub.f32 %v2074, %v2101
        %v2110 = vmul.f32 %v2102, 1.442695
        %v2111 = vpow.pop %v2110
        %v2112 = vmul.f32 %v2103, 1.442695
        %v2113 = vpow.pop %v2112
        %v2114 = vmul.f32 %v2104, 1.442695
        %v2115 = vpow.pop %v2114
        %v2116 = vmul.f32 %v2105, 1.442695
        %v2117 = vpow.pop %v2116
        %v2118 = vmul.f32 %v2106, 1.442695
        %v2119 = vpow.pop %v2118
        %v2120 = vmul.f32 %v2107, 1.442695
        %v2121 = vpow.pop %v2120
        %v2122 = vmul.f32 %v2108, 1.442695
        %v2123 = vpow.pop %v2122
        %v2124 = vmul.f32 %v2109, 1.442695
        %v2125 = vpow.pop %v2124
        %v2126 = vsel %vm2077, %v2111, 0.0
        %2127 = vadd.xlane.f32.xlu0 %v2126
        %v2128 = vpop.xlane.xlu0 %2127
        %v2129 = vsel %vm2077, %v2113, 0.0
        %2130 = vadd.xlane.f32.xlu0 %v2129
        %v2131 = vpop.xlane.xlu0 %2130
        %v2132 = vsel %vm2077, %v2115, 0.0
        %2133 = vadd.xlane.f32.xlu0 %v2132
        %v2134 = vpop.xlane.xlu0 %2133
        %v2135 = vsel %vm2077, %v2117, 0.0
        %2136 = vadd.xlane.f32.xlu0 %v2135
        %v2137 = vpop.xlane.xlu0 %2136
        %v2138 = vsel %vm2077, %v2119, 0.0
        %2139 = vadd.xlane.f32.xlu0 %v2138
        %v2140 = vpop.xlane.xlu0 %2139
        %v2141 = vsel %vm2077, %v2121, 0.0
        %2142 = vadd.xlane.f32.xlu0 %v2141
        %v2143 = vpop.xlane.xlu0 %2142
        %v2144 = vsel %vm2077, %v2123, 0.0
        %2145 = vadd.xlane.f32.xlu0 %v2144
        %v2146 = vpop.xlane.xlu0 %2145
        %v2147 = vsel %vm2077, %v2125, 0.0
        %2148 = vadd.xlane.f32.xlu0 %v2147
        %v2149 = vpop.xlane.xlu0 %2148
        %v2150 = vrcp.pop %v2128
        %v2151 = vrcp.pop %v2131
        %v2152 = vrcp.pop %v2134
        %v2153 = vrcp.pop %v2137
        %v2154 = vrcp.pop %v2140
        %v2155 = vrcp.pop %v2143
        %v2156 = vrcp.pop %v2146
        %v2157 = vrcp.pop %v2149
        %v2158 = vmul.f32 %v2111, %v2150
        %v2159 = vmul.f32 %v2113, %v2151
        %v2160 = vmul.f32 %v2115, %v2152
        %v2161 = vmul.f32 %v2117, %v2153
        %v2162 = vmul.f32 %v2119, %v2154
        %v2163 = vmul.f32 %v2121, %v2155
        %v2164 = vmul.f32 %v2123, %v2156
        %v2165 = vmul.f32 %v2125, %v2157
        %v2166 = vpack.c.bf16 %v2158, %v2158
        %v2167 = vpack.c.bf16 %v2159, %v2159
        %v2168 = vpack.c.bf16 %v2160, %v2160
        %v2169 = vpack.c.bf16 %v2161, %v2161
        %v2170 = vpack.c.bf16 %v2162, %v2162
        %v2171 = vpack.c.bf16 %v2163, %v2163
        %v2172 = vpack.c.bf16 %v2164, %v2164
        %v2173 = vpack.c.bf16 %v2165, %v2165
        %v2174 = vpack.c.bf16 %v1847, %v1847
        %v2175 = vpack.c.bf16 %v1849, %v1849
        %v2176 = vpack.c.bf16 %v1851, %v1851
        %v2177 = vpack.c.bf16 %v1853, %v1853
        %v2178 = vpack.c.bf16 %v1901, %v1901
        %v2179 = vpack.c.bf16 %v1903, %v1903
        %v2180 = vpack.c.bf16 %v1905, %v1905
        %v2181 = vpack.c.bf16 %v1907, %v1907
        %v2183 = vsel %vm2077, %v2166, 0
        %vm2185 = vcmask 1043456
        %v2187 = vsel %vm2185, %v2174, 0
        %2189 = vmatpush.bf16.msra.mxu0 0
        %2190 = vmatpush.bf16.msra.mxu0 0
        %2191 = vmatpush.bf16.msra.mxu0 0
        %2192 = vmatpush.bf16.msra.mxu0 0
        %2193 = vmatpush.bf16.msra.mxu0 0
        %2194 = vmatpush.bf16.msra.mxu0 0
        %2195 = vmatpush.bf16.msra.mxu0 0
        %2196 = vmatpush.bf16.msra.mxu0 %v2187
        %2197 = vmatmul.bf16.gmra.mxu0 %v2183
        %v2198 = vpop.f32.mrf.mxu0
        %v2199 = vadd.f32 0.0, %v2198
        %v2200 = vpop.f32.mrf.mxu0
        %2201 = vdwg.mxu0
        %v2203 = vsel %vm2077, %v2167, 0
        %v2206 = vsel %vm2185, %v2175, 0
        %2208 = vmatpush.bf16.msra.mxu0 0
        %2209 = vmatpush.bf16.msra.mxu0 0
        %2210 = vmatpush.bf16.msra.mxu0 0
        %2211 = vmatpush.bf16.msra.mxu0 0
        %2212 = vmatpush.bf16.msra.mxu0 0
        %2213 = vmatpush.bf16.msra.mxu0 0
        %2214 = vmatpush.bf16.msra.mxu0 0
        %2215 = vmatpush.bf16.msra.mxu0 %v2206
        %2216 = vmatmul.bf16.gmra.mxu0 %v2203
        %v2217 = vpop.f32.mrf.mxu0
        %v2218 = vadd.f32 0.0, %v2217
        %v2219 = vpop.f32.mrf.mxu0
        %2220 = vdwg.mxu0
        %v2222 = vsel %vm2077, %v2168, 0
        %v2225 = vsel %vm2185, %v2176, 0
        %2227 = vmatpush.bf16.msra.mxu0 0
        %2228 = vmatpush.bf16.msra.mxu0 0
        %2229 = vmatpush.bf16.msra.mxu0 0
        %2230 = vmatpush.bf16.msra.mxu0 0
        %2231 = vmatpush.bf16.msra.mxu0 0
        %2232 = vmatpush.bf16.msra.mxu0 0
        %2233 = vmatpush.bf16.msra.mxu0 0
        %2234 = vmatpush.bf16.msra.mxu0 %v2225
        %2235 = vmatmul.bf16.gmra.mxu0 %v2222
        %v2236 = vpop.f32.mrf.mxu0
        %v2237 = vadd.f32 0.0, %v2236
        %v2238 = vpop.f32.mrf.mxu0
        %2239 = vdwg.mxu0
        %v2241 = vsel %vm2077, %v2169, 0
        %v2244 = vsel %vm2185, %v2177, 0
        %2246 = vmatpush.bf16.msra.mxu0 0
        %2247 = vmatpush.bf16.msra.mxu0 0
        %2248 = vmatpush.bf16.msra.mxu0 0
        %2249 = vmatpush.bf16.msra.mxu0 0
        %2250 = vmatpush.bf16.msra.mxu0 0
        %2251 = vmatpush.bf16.msra.mxu0 0
        %2252 = vmatpush.bf16.msra.mxu0 0
        %2253 = vmatpush.bf16.msra.mxu0 %v2244
        %2254 = vmatmul.bf16.gmra.mxu0 %v2241
        %v2255 = vpop.f32.mrf.mxu0
        %v2256 = vadd.f32 0.0, %v2255
        %v2257 = vpop.f32.mrf.mxu0
        %2258 = vdwg.mxu0
        %v2260 = vsel %vm2077, %v2170, 0
        %v2263 = vsel %vm2185, %v2178, 0
        %2265 = vmatpush.bf16.msra.mxu0 0
        %2266 = vmatpush.bf16.msra.mxu0 0
        %2267 = vmatpush.bf16.msra.mxu0 0
        %2268 = vmatpush.bf16.msra.mxu0 0
        %2269 = vmatpush.bf16.msra.mxu0 0
        %2270 = vmatpush.bf16.msra.mxu0 0
        %2271 = vmatpush.bf16.msra.mxu0 0
        %2272 = vmatpush.bf16.msra.mxu0 %v2263
        %2273 = vmatmul.bf16.gmra.mxu0 %v2260
        %v2274 = vpop.f32.mrf.mxu0
        %v2275 = vadd.f32 0.0, %v2274
        %v2276 = vpop.f32.mrf.mxu0
        %2277 = vdwg.mxu0
        %v2279 = vsel %vm2077, %v2171, 0
        %v2282 = vsel %vm2185, %v2179, 0
        %2284 = vmatpush.bf16.msra.mxu0 0
        %2285 = vmatpush.bf16.msra.mxu0 0
        %2286 = vmatpush.bf16.msra.mxu0 0
        %2287 = vmatpush.bf16.msra.mxu0 0
        %2288 = vmatpush.bf16.msra.mxu0 0
        %2289 = vmatpush.bf16.msra.mxu0 0
        %2290 = vmatpush.bf16.msra.mxu0 0
        %2291 = vmatpush.bf16.msra.mxu0 %v2282
        %2292 = vmatmul.bf16.gmra.mxu0 %v2279
        %v2293 = vpop.f32.mrf.mxu0
        %v2294 = vadd.f32 0.0, %v2293
        %v2295 = vpop.f32.mrf.mxu0
        %2296 = vdwg.mxu0
        %v2298 = vsel %vm2077, %v2172, 0
        %v2301 = vsel %vm2185, %v2180, 0
        %2303 = vmatpush.bf16.msra.mxu0 0
        %2304 = vmatpush.bf16.msra.mxu0 0
        %2305 = vmatpush.bf16.msra.mxu0 0
        %2306 = vmatpush.bf16.msra.mxu0 0
        %2307 = vmatpush.bf16.msra.mxu0 0
        %2308 = vmatpush.bf16.msra.mxu0 0
        %2309 = vmatpush.bf16.msra.mxu0 0
        %2310 = vmatpush.bf16.msra.mxu0 %v2301
        %2311 = vmatmul.bf16.gmra.mxu0 %v2298
        %v2312 = vpop.f32.mrf.mxu0
        %v2313 = vadd.f32 0.0, %v2312
        %v2314 = vpop.f32.mrf.mxu0
        %2315 = vdwg.mxu0
        %v2317 = vsel %vm2077, %v2173, 0
        %v2320 = vsel %vm2185, %v2181, 0
        %2322 = vmatpush.bf16.msra.mxu0 0
        %2323 = vmatpush.bf16.msra.mxu0 0
        %2324 = vmatpush.bf16.msra.mxu0 0
        %2325 = vmatpush.bf16.msra.mxu0 0
        %2326 = vmatpush.bf16.msra.mxu0 0
        %2327 = vmatpush.bf16.msra.mxu0 0
        %2328 = vmatpush.bf16.msra.mxu0 0
        %2329 = vmatpush.bf16.msra.mxu0 %v2320
        %2330 = vmatmul.bf16.gmra.mxu0 %v2317
        %v2331 = vpop.f32.mrf.mxu0
        %v2332 = vadd.f32 0.0, %v2331
        %v2333 = vpop.f32.mrf.mxu0
        %2334 = vdwg.mxu0
        %v2335 = vrot.slane %v2237, 4
        %v2336 = vsel %vm1208, %v2335, %v2199
        %v2337 = vrot.slane %v2199, 4
        %v2338 = vsel %vm1208, %v2237, %v2337
        %v2340 = vunpack.c.l.s4 1983009808
        %v2341 = vunpack.c.0.s8 %v2340
        %v2342 = vperm.slane %v2336, %v2341
        %v2344 = vunpack.c.l.s4 1983009808
        %v2345 = vunpack.c.0.s8 %v2344
        %v2346 = vperm.slane %v2338, %v2345
        %v2347 = vrot.slane %v2256, 4
        %v2348 = vsel %vm1208, %v2347, %v2218
        %v2349 = vrot.slane %v2218, 4
        %v2350 = vsel %vm1208, %v2256, %v2349
        %v2352 = vunpack.c.l.s4 1983009808
        %v2353 = vunpack.c.0.s8 %v2352
        %v2354 = vperm.slane %v2348, %v2353
        %v2356 = vunpack.c.l.s4 1983009808
        %v2357 = vunpack.c.0.s8 %v2356
        %v2358 = vperm.slane %v2350, %v2357
        %v2359 = vrot.slane %v2354, 4
        %v2360 = vsel %vm1208, %v2359, %v2342
        %v2361 = vrot.slane %v2342, 4
        %v2362 = vsel %vm1208, %v2354, %v2361
        %v2364 = vunpack.c.l.s4 1934713408
        %v2365 = vunpack.c.0.s8 %v2364
        %v2366 = vperm.slane %v2360, %v2365
        %v2368 = vunpack.c.l.s4 1934713408
        %v2369 = vunpack.c.0.s8 %v2368
        %v2370 = vperm.slane %v2362, %v2369
        %v2371 = vrot.slane %v2358, 4
        %v2372 = vsel %vm1208, %v2371, %v2346
        %v2373 = vrot.slane %v2346, 4
        %v2374 = vsel %vm1208, %v2358, %v2373
        %v2376 = vunpack.c.l.s4 1934713408
        %v2377 = vunpack.c.0.s8 %v2376
        %v2378 = vperm.slane %v2372, %v2377
        %v2380 = vunpack.c.l.s4 1934713408
        %v2381 = vunpack.c.0.s8 %v2380
        %v2382 = vperm.slane %v2374, %v2381
        %v2383 = vrot.slane %v2366, 4
        %v2384 = vsel %vm1208, 0.0, %v2383
        %v2385 = vrot.slane %v2370, 4
        %v2386 = vsel %vm1208, 0.0, %v2385
        %v2387 = vrot.slane %v2378, 4
        %v2388 = vsel %vm1208, 0.0, %v2387
        %v2389 = vrot.slane %v2382, 4
        %v2390 = vsel %vm1208, 0.0, %v2389
        %v2391 = vrot.slane %v2313, 4
        %v2392 = vsel %vm1208, %v2391, %v2275
        %v2393 = vrot.slane %v2275, 4
        %v2394 = vsel %vm1208, %v2313, %v2393
        %v2396 = vunpack.c.l.s4 1983009808
        %v2397 = vunpack.c.0.s8 %v2396
        %v2398 = vperm.slane %v2392, %v2397
        %v2400 = vunpack.c.l.s4 1983009808
        %v2401 = vunpack.c.0.s8 %v2400
        %v2402 = vperm.slane %v2394, %v2401
        %v2403 = vrot.slane %v2332, 4
        %v2404 = vsel %vm1208, %v2403, %v2294
        %v2405 = vrot.slane %v2294, 4
        %v2406 = vsel %vm1208, %v2332, %v2405
        %v2408 = vunpack.c.l.s4 1983009808
        %v2409 = vunpack.c.0.s8 %v2408
        %v2410 = vperm.slane %v2404, %v2409
        %v2412 = vunpack.c.l.s4 1983009808
        %v2413 = vunpack.c.0.s8 %v2412
        %v2414 = vperm.slane %v2406, %v2413
        %v2415 = vrot.slane %v2410, 4
        %v2416 = vsel %vm1208, %v2415, %v2398
        %v2417 = vrot.slane %v2398, 4
        %v2418 = vsel %vm1208, %v2410, %v2417
        %v2420 = vunpack.c.l.s4 1934713408
        %v2421 = vunpack.c.0.s8 %v2420
        %v2422 = vperm.slane %v2416, %v2421
        %v2424 = vunpack.c.l.s4 1934713408
        %v2425 = vunpack.c.0.s8 %v2424
        %v2426 = vperm.slane %v2418, %v2425
        %v2427 = vrot.slane %v2414, 4
        %v2428 = vsel %vm1208, %v2427, %v2402
        %v2429 = vrot.slane %v2402, 4
        %v2430 = vsel %vm1208, %v2414, %v2429
        %v2432 = vunpack.c.l.s4 1934713408
        %v2433 = vunpack.c.0.s8 %v2432
        %v2434 = vperm.slane %v2428, %v2433
        %v2436 = vunpack.c.l.s4 1934713408
        %v2437 = vunpack.c.0.s8 %v2436
        %v2438 = vperm.slane %v2430, %v2437
        %v2439 = vrot.slane %v2422, 4
        %v2440 = vsel %vm1208, 0.0, %v2439
        %v2441 = vrot.slane %v2426, 4
        %v2442 = vsel %vm1208, 0.0, %v2441
        %v2443 = vrot.slane %v2434, 4
        %v2444 = vsel %vm1208, 0.0, %v2443
        %v2445 = vrot.slane %v2438, 4
        %v2446 = vsel %vm1208, 0.0, %v2445
        %v2447 = vsel %vm1208, %v2385, %v2366
        %v2449 = vunpack.c.l.s4 1983009808
        %v2450 = vunpack.c.0.s8 %v2449
        %v2451 = vperm.slane %v2447, %v2450
        %v2452 = vrot.slane %v2386, 4
        %v2453 = vsel %vm1208, %v2452, %v2384
        %v2455 = vunpack.c.l.s4 1983009808
        %v2456 = vunpack.c.0.s8 %v2455
        %v2457 = vperm.slane %v2453, %v2456
        %v2458 = vsel %vm1208, %v2389, %v2378
        %v2460 = vunpack.c.l.s4 1983009808
        %v2461 = vunpack.c.0.s8 %v2460
        %v2462 = vperm.slane %v2458, %v2461
        %v2463 = vrot.slane %v2390, 4
        %v2464 = vsel %vm1208, %v2463, %v2388
        %v2466 = vunpack.c.l.s4 1983009808
        %v2467 = vunpack.c.0.s8 %v2466
        %v2468 = vperm.slane %v2464, %v2467
        %v2469 = vrot.slane %v2457, 4
        %v2470 = vsel %vm1208, %v2469, %v2451
        %v2471 = vrot.slane %v2451, 4
        %v2472 = vsel %vm1208, %v2457, %v2471
        %v2474 = vunpack.c.l.s4 1934713408
        %v2475 = vunpack.c.0.s8 %v2474
        %v2476 = vperm.slane %v2470, %v2475
        %v2478 = vunpack.c.l.s4 1934713408
        %v2479 = vunpack.c.0.s8 %v2478
        %v2480 = vperm.slane %v2472, %v2479
        %v2481 = vrot.slane %v2468, 4
        %v2482 = vsel %vm1208, %v2481, %v2462
        %v2483 = vrot.slane %v2462, 4
        %v2484 = vsel %vm1208, %v2468, %v2483
        %v2486 = vunpack.c.l.s4 1934713408
        %v2487 = vunpack.c.0.s8 %v2486
        %v2488 = vperm.slane %v2482, %v2487
        %v2490 = vunpack.c.l.s4 1934713408
        %v2491 = vunpack.c.0.s8 %v2490
        %v2492 = vperm.slane %v2484, %v2491
        %v2493 = vrot.slane %v2488, 4
        %v2494 = vsel %vm1208, %v2493, %v2476
        %v2495 = vrot.slane %v2476, 4
        %v2496 = vsel %vm1208, %v2488, %v2495
        %v2497 = vrot.slane %v2492, 4
        %v2498 = vsel %vm1208, %v2497, %v2480
        %v2499 = vrot.slane %v2480, 4
        %v2500 = vsel %vm1208, %v2492, %v2499
        %v2501 = vsel %vm1208, %v2441, %v2422
        %v2503 = vunpack.c.l.s4 1983009808
        %v2504 = vunpack.c.0.s8 %v2503
        %v2505 = vperm.slane %v2501, %v2504
        %v2506 = vrot.slane %v2442, 4
        %v2507 = vsel %vm1208, %v2506, %v2440
        %v2509 = vunpack.c.l.s4 1983009808
        %v2510 = vunpack.c.0.s8 %v2509
        %v2511 = vperm.slane %v2507, %v2510
        %v2512 = vsel %vm1208, %v2445, %v2434
        %v2514 = vunpack.c.l.s4 1983009808
        %v2515 = vunpack.c.0.s8 %v2514
        %v2516 = vperm.slane %v2512, %v2515
        %v2517 = vrot.slane %v2446, 4
        %v2518 = vsel %vm1208, %v2517, %v2444
        %v2520 = vunpack.c.l.s4 1983009808
        %v2521 = vunpack.c.0.s8 %v2520
        %v2522 = vperm.slane %v2518, %v2521
        %v2523 = vrot.slane %v2511, 4
        %v2524 = vsel %vm1208, %v2523, %v2505
        %v2525 = vrot.slane %v2505, 4
        %v2526 = vsel %vm1208, %v2511, %v2525
        %v2528 = vunpack.c.l.s4 1934713408
        %v2529 = vunpack.c.0.s8 %v2528
        %v2530 = vperm.slane %v2524, %v2529
        %v2532 = vunpack.c.l.s4 1934713408
        %v2533 = vunpack.c.0.s8 %v2532
        %v2534 = vperm.slane %v2526, %v2533
        %v2535 = vrot.slane %v2522, 4
        %v2536 = vsel %vm1208, %v2535, %v2516
        %v2537 = vrot.slane %v2516, 4
        %v2538 = vsel %vm1208, %v2522, %v2537
        %v2540 = vunpack.c.l.s4 1934713408
        %v2541 = vunpack.c.0.s8 %v2540
        %v2542 = vperm.slane %v2536, %v2541
        %v2544 = vunpack.c.l.s4 1934713408
        %v2545 = vunpack.c.0.s8 %v2544
        %v2546 = vperm.slane %v2538, %v2545
        %v2547 = vrot.slane %v2542, 4
        %v2548 = vsel %vm1208, %v2547, %v2530
        %v2549 = vrot.slane %v2530, 4
        %v2550 = vsel %vm1208, %v2542, %v2549
        %v2551 = vrot.slane %v2546, 4
        %v2552 = vsel %vm1208, %v2551, %v2534
        %v2553 = vrot.slane %v2534, 4
        %v2554 = vsel %vm1208, %v2546, %v2553
        %2557 = vrot.lane.b32.xlu0 %v2496, 32
        %v2558 = vpop.permute.xlu0 %2557
        %2559 = vrot.lane.b32.xlu0 %v2550, 32
        %v2560 = vpop.permute.xlu0 %2559
        %2565 = vrot.lane.b32.xlu0 %v2498, 64
        %v2566 = vpop.permute.xlu0 %2565
        %2567 = vrot.lane.b32.xlu0 %v2552, 64
        %v2568 = vpop.permute.xlu0 %2567
        %2573 = vrot.lane.b32.xlu0 %v2500, 96
        %v2574 = vpop.permute.xlu0 %2573
        %2575 = vrot.lane.b32.xlu0 %v2554, 96
        %v2576 = vpop.permute.xlu0 %2575
        %v2579 = vsel %vm1924, %v2494, %v2558
        %v2580 = vsel %vm1924, %v2548, %v2560
        %vm2581 = vcmask 523264
        %v2582 = vsel %vm2581, %v2579, %v2566
        %v2583 = vsel %vm2581, %v2580, %v2568
        %vm2584 = vcmask 785408
        %v2585 = vsel %vm2584, %v2582, %v2574
        %v2586 = vsel %vm2584, %v2583, %v2576
        %v2587 = vpack.c.bf16 %v2586, %v2585
        %v2588 = vld [vmem:[%s765] sm:$0xf]
        %v2589 = vld [vmem:[%s765 + $0x4] sm:$0xf]
        %v2590 = vld [vmem:[%s765 + $0x8] sm:$0xf]
        %v2591 = vld [vmem:[%s765 + $0xc] sm:$0xf]
        %v2592 = vld [vmem:[%s765 + $0x10] sm:$0xf]
        %v2593 = vld [vmem:[%s765 + $0x14] sm:$0xf]
        %v2594 = vld [vmem:[%s765 + $0x18] sm:$0xf]
        %v2595 = vld [vmem:[%s765 + $0x1c] sm:$0xf]
        %v2596 = vld [vmem:[%s765 + $0x20] sm:$0xf]
        %v2597 = vld [vmem:[%s765 + $0x24] sm:$0xf]
        %v2598 = vld [vmem:[%s765 + $0x28] sm:$0xf]
        %v2599 = vld [vmem:[%s765 + $0x2c] sm:$0xf]
        %v2600 = vld [vmem:[%s765 + $0x30] sm:$0xf]
        %v2601 = vld [vmem:[%s765 + $0x34] sm:$0xf]
        %v2602 = vld [vmem:[%s765 + $0x38] sm:$0xf]
        %v2603 = vld [vmem:[%s765 + $0x3c] sm:$0xf]
        %v2604 = vperm.slane %v947, 3
        %v2621 = vunpack.c.l.b16 %v2588
        %v2622 = vunpack.c.l.b16 %v2589
        %v2623 = vunpack.c.l.b16 %v2590
        %v2624 = vunpack.c.l.b16 %v2591
        %v2625 = vunpack.c.l.b16 %v2592
        %v2626 = vunpack.c.l.b16 %v2593
        %v2627 = vunpack.c.l.b16 %v2594
        %v2628 = vunpack.c.l.b16 %v2595
        %v2629 = vunpack.c.l.b16 %v2596
        %v2630 = vunpack.c.l.b16 %v2597
        %v2631 = vunpack.c.l.b16 %v2598
        %v2632 = vunpack.c.l.b16 %v2599
        %v2633 = vunpack.c.l.b16 %v2600
        %v2634 = vunpack.c.l.b16 %v2601
        %v2635 = vunpack.c.l.b16 %v2602
        %v2636 = vunpack.c.l.b16 %v2603
        %v2637 = vpack.c.b16 %v2622, %v2621
        %v2638 = vpack.c.b16 %v2624, %v2623
        %v2639 = vpack.c.b16 %v2626, %v2625
        %v2640 = vpack.c.b16 %v2628, %v2627
        %v2641 = vpack.c.b16 %v2630, %v2629
        %v2642 = vpack.c.b16 %v2632, %v2631
        %v2643 = vpack.c.b16 %v2634, %v2633
        %v2644 = vpack.c.b16 %v2636, %v2635
        %2653 = vmatpush.bf16.msra.mxu0 %v2644
        %2654 = vmatpush.bf16.msra.mxu0 %v2643
        %2655 = vmatpush.bf16.msra.mxu0 %v2642
        %2656 = vmatpush.bf16.msra.mxu0 %v2641
        %2657 = vmatpush.bf16.msra.mxu0 %v2640
        %2658 = vmatpush.bf16.msra.mxu0 %v2639
        %2659 = vmatpush.bf16.msra.mxu0 %v2638
        %2660 = vmatpush.bf16.msra.mxu0 %v2637
        %2661 = vmatmul.bf16.gmra.mxu0 %v2587
        %v2662 = vpop.f32.mrf.mxu0
        %v2663 = vadd.f32 %v2604, %v2662
        %v2664 = vpop.f32.mrf.mxu0
        %v2665 = vadd.f32 %v2604, %v2664
        %2666 = vdwg.mxu0
        %v2667 = vadd.f32 %v941, %v2663
        %v2668 = vadd.f32 %v942, %v2665
        %2669 = vadd.xlane.f32.xlu0 %v2667
        %v2670 = vpop.xlane.xlu0 %2669
        %2671 = vadd.xlane.f32.xlu0 %v2668
        %v2672 = vpop.xlane.xlu0 %2671
        %v2673 = vrcp.pop 128.0
        %v2674 = vmul.f32 128.0, %v2673
        %v2675 = vsub.f32 1.0, %v2674
        %v2676 = vmul.f32 %v2673, %v2675
        %v2677 = vadd.f32 %v2673, %v2676
        %vm2678 = vweird.f32 %v2673
        %v2679 = vsel %vm2678, %v2673, %v2677
        %v2680 = vmul.f32 %v2670, %v2679
        %v2681 = vmul.f32 %v2672, %v2679
        %v2682 = vsub.f32 %v2667, %v2680
        %v2683 = vsub.f32 %v2668, %v2681
        %v2684 = vmul.f32 %v2682, %v2682
        %v2685 = vmul.f32 %v2683, %v2683
        %2686 = vadd.xlane.f32.xlu0 %v2684
        %v2687 = vpop.xlane.xlu0 %2686
        %2688 = vadd.xlane.f32.xlu0 %v2685
        %v2689 = vpop.xlane.xlu0 %2688
        %v2690 = vmul.f32 %v2687, %v2679
        %v2691 = vmul.f32 %v2689, %v2679
        %v2692 = vadd.f32 %v2690, 1e-05
        %v2693 = vadd.f32 %v2691, 1e-05
        %v2694 = vrsqrt.pop %v2692
        %v2695 = vmul.f32 %v2694, %v2692
        %v2696 = vmul.f32 %v2695, %v2694
        %v2697 = vmul.f32 0.5, %v2696
        %v2698 = vsub.f32 1.5, %v2697
        %v2699 = vmul.f32 %v2694, %v2698
        %vm2700 = vweird.f32 %v2692
        %vm2701 = vweird.f32 %v2694
        %vm2702 = vmor %vm2700, %vm2701
        %v2703 = vsel %vm2702, %v2694, %v2699
        %v2704 = vrsqrt.pop %v2693
        %v2705 = vmul.f32 %v2704, %v2693
        %v2706 = vmul.f32 %v2705, %v2704
        %v2707 = vmul.f32 0.5, %v2706
        %v2708 = vsub.f32 1.5, %v2707
        %v2709 = vmul.f32 %v2704, %v2708
        %vm2710 = vweird.f32 %v2693
        %vm2711 = vweird.f32 %v2704
        %vm2712 = vmor %vm2710, %vm2711
        %v2713 = vsel %vm2712, %v2704, %v2709
        %v2714 = vmul.f32 %v2682, %v2703
        %v2715 = vmul.f32 %v2683, %v2713
        %v2716 = vperm.slane %v948, 1
        %v2717 = vmul.f32 %v2714, %v2716
        %v2718 = vmul.f32 %v2715, %v2716
        %v2719 = vperm.slane %v948, 2
        %v2720 = vadd.f32 %v2717, %v2719
        %v2721 = vadd.f32 %v2718, %v2719
        %v2722 = vpack.c.bf16 %v2721, %v2720
        %v2723 = vld [vmem:[%s775] sm:$0xf]
        %v2724 = vld [vmem:[%s775 + $0x4] sm:$0xf]
        %v2725 = vld [vmem:[%s775 + $0x8] sm:$0xf]
        %v2726 = vld [vmem:[%s775 + $0xc] sm:$0xf]
        %v2727 = vld [vmem:[%s775 + $0x10] sm:$0xf]
        %v2728 = vld [vmem:[%s775 + $0x14] sm:$0xf]
        %v2729 = vld [vmem:[%s775 + $0x18] sm:$0xf]
        %v2730 = vld [vmem:[%s775 + $0x1c] sm:$0xf]
        %v2731 = vld [vmem:[%s775 + $0x20] sm:$0xf]
        %v2732 = vld [vmem:[%s775 + $0x24] sm:$0xf]
        %v2733 = vld [vmem:[%s775 + $0x28] sm:$0xf]
        %v2734 = vld [vmem:[%s775 + $0x2c] sm:$0xf]
        %v2735 = vld [vmem:[%s775 + $0x30] sm:$0xf]
        %v2736 = vld [vmem:[%s775 + $0x34] sm:$0xf]
        %v2737 = vld [vmem:[%s775 + $0x38] sm:$0xf]
        %v2738 = vld [vmem:[%s775 + $0x3c] sm:$0xf]
        %v2739 = vperm.slane %v947, 4
        %v2756 = vunpack.c.l.b16 %v2723
        %v2757 = vunpack.c.l.b16 %v2724
        %v2758 = vunpack.c.l.b16 %v2725
        %v2759 = vunpack.c.l.b16 %v2726
        %v2760 = vunpack.c.l.b16 %v2727
        %v2761 = vunpack.c.l.b16 %v2728
        %v2762 = vunpack.c.l.b16 %v2729
        %v2763 = vunpack.c.l.b16 %v2730
        %v2764 = vunpack.c.l.b16 %v2731
        %v2765 = vunpack.c.l.b16 %v2732
        %v2766 = vunpack.c.l.b16 %v2733
        %v2767 = vunpack.c.l.b16 %v2734
        %v2768 = vunpack.c.l.b16 %v2735
        %v2769 = vunpack.c.l.b16 %v2736
        %v2770 = vunpack.c.l.b16 %v2737
        %v2771 = vunpack.c.l.b16 %v2738
        %v2772 = vpack.c.b16 %v2757, %v2756
        %v2773 = vpack.c.b16 %v2759, %v2758
        %v2774 = vpack.c.b16 %v2761, %v2760
        %v2775 = vpack.c.b16 %v2763, %v2762
        %v2776 = vpack.c.b16 %v2765, %v2764
        %v2777 = vpack.c.b16 %v2767, %v2766
        %v2778 = vpack.c.b16 %v2769, %v2768
        %v2779 = vpack.c.b16 %v2771, %v2770
        %2788 = vmatpush.bf16.msra.mxu0 %v2779
        %2789 = vmatpush.bf16.msra.mxu0 %v2778
        %2790 = vmatpush.bf16.msra.mxu0 %v2777
        %2791 = vmatpush.bf16.msra.mxu0 %v2776
        %2792 = vmatpush.bf16.msra.mxu0 %v2775
        %2793 = vmatpush.bf16.msra.mxu0 %v2774
        %2794 = vmatpush.bf16.msra.mxu0 %v2773
        %2795 = vmatpush.bf16.msra.mxu0 %v2772
        %2796 = vmatmul.bf16.gmra.mxu0 %v2722
        %v2797 = vpop.f32.mrf.mxu0
        %v2798 = vadd.f32 %v2739, %v2797
        %v2799 = vpop.f32.mrf.mxu0
        %v2800 = vadd.f32 %v2739, %v2799
        %2801 = vdwg.mxu0
        %v2802 = vld [vmem:[%s785] sm:$0xf]
        %v2803 = vld [vmem:[%s785 + $0x4] sm:$0xf]
        %v2804 = vld [vmem:[%s785 + $0x8] sm:$0xf]
        %v2805 = vld [vmem:[%s785 + $0xc] sm:$0xf]
        %v2806 = vld [vmem:[%s785 + $0x10] sm:$0xf]
        %v2807 = vld [vmem:[%s785 + $0x14] sm:$0xf]
        %v2808 = vld [vmem:[%s785 + $0x18] sm:$0xf]
        %v2809 = vld [vmem:[%s785 + $0x1c] sm:$0xf]
        %v2810 = vld [vmem:[%s785 + $0x20] sm:$0xf]
        %v2811 = vld [vmem:[%s785 + $0x24] sm:$0xf]
        %v2812 = vld [vmem:[%s785 + $0x28] sm:$0xf]
        %v2813 = vld [vmem:[%s785 + $0x2c] sm:$0xf]
        %v2814 = vld [vmem:[%s785 + $0x30] sm:$0xf]
        %v2815 = vld [vmem:[%s785 + $0x34] sm:$0xf]
        %v2816 = vld [vmem:[%s785 + $0x38] sm:$0xf]
        %v2817 = vld [vmem:[%s785 + $0x3c] sm:$0xf]
        %v2818 = vperm.slane %v947, 5
        %v2823 = vunpack.c.l.b16 %v943
        %v2824 = vunpack.c.l.b16 %v944
        %v2825 = vunpack.c.l.b16 %v945
        %v2826 = vunpack.c.l.b16 %v946
        %v2827 = vpack.c.b16 %v2824, %v2823
        %v2828 = vpack.c.b16 %v2826, %v2825
        %v2847 = vunpack.c.l.b16 %v2802
        %v2848 = vunpack.c.l.b16 %v2803
        %v2849 = vunpack.c.l.b16 %v2804
        %v2850 = vunpack.c.l.b16 %v2805
        %v2851 = vunpack.c.l.b16 %v2806
        %v2852 = vunpack.c.l.b16 %v2807
        %v2853 = vunpack.c.l.b16 %v2808
        %v2854 = vunpack.c.l.b16 %v2809
        %v2855 = vunpack.c.l.b16 %v2810
        %v2856 = vunpack.c.l.b16 %v2811
        %v2857 = vunpack.c.l.b16 %v2812
        %v2858 = vunpack.c.l.b16 %v2813
        %v2859 = vunpack.c.l.b16 %v2814
        %v2860 = vunpack.c.l.b16 %v2815
        %v2861 = vunpack.c.l.b16 %v2816
        %v2862 = vunpack.c.l.b16 %v2817
        %v2863 = vpack.c.b16 %v2848, %v2847
        %v2864 = vpack.c.b16 %v2850, %v2849
        %v2865 = vpack.c.b16 %v2852, %v2851
        %v2866 = vpack.c.b16 %v2854, %v2853
        %v2867 = vpack.c.b16 %v2856, %v2855
        %v2868 = vpack.c.b16 %v2858, %v2857
        %v2869 = vpack.c.b16 %v2860, %v2859
        %v2870 = vpack.c.b16 %v2862, %v2861
        %2879 = vmatpush.bf16.msra.mxu0 %v2870
        %2880 = vmatpush.bf16.msra.mxu0 %v2869
        %2881 = vmatpush.bf16.msra.mxu0 %v2868
        %2882 = vmatpush.bf16.msra.mxu0 %v2867
        %2883 = vmatpush.bf16.msra.mxu0 %v2866
        %2884 = vmatpush.bf16.msra.mxu0 %v2865
        %2885 = vmatpush.bf16.msra.mxu0 %v2864
        %2886 = vmatpush.bf16.msra.mxu0 %v2863
        %2887 = vmatmul.bf16.gmra.mxu0 %v2827
        %v2888 = vpop.f32.mrf.mxu0
        %v2889 = vadd.f32 %v2818, %v2888
        %v2890 = vpop.f32.mrf.mxu0
        %v2891 = vadd.f32 %v2818, %v2890
        %2892 = vmatmul.bf16.gmra.mxu0 %v2828
        %v2893 = vpop.f32.mrf.mxu0
        %v2894 = vadd.f32 %v2818, %v2893
        %v2895 = vpop.f32.mrf.mxu0
        %v2896 = vadd.f32 %v2818, %v2895
        %2897 = vdwg.mxu0
        %v2898 = vld [vmem:[%s795] sm:$0xf]
        %v2899 = vld [vmem:[%s795 + $0x4] sm:$0xf]
        %v2900 = vld [vmem:[%s795 + $0x8] sm:$0xf]
        %v2901 = vld [vmem:[%s795 + $0xc] sm:$0xf]
        %v2902 = vld [vmem:[%s795 + $0x10] sm:$0xf]
        %v2903 = vld [vmem:[%s795 + $0x14] sm:$0xf]
        %v2904 = vld [vmem:[%s795 + $0x18] sm:$0xf]
        %v2905 = vld [vmem:[%s795 + $0x1c] sm:$0xf]
        %v2906 = vld [vmem:[%s795 + $0x20] sm:$0xf]
        %v2907 = vld [vmem:[%s795 + $0x24] sm:$0xf]
        %v2908 = vld [vmem:[%s795 + $0x28] sm:$0xf]
        %v2909 = vld [vmem:[%s795 + $0x2c] sm:$0xf]
        %v2910 = vld [vmem:[%s795 + $0x30] sm:$0xf]
        %v2911 = vld [vmem:[%s795 + $0x34] sm:$0xf]
        %v2912 = vld [vmem:[%s795 + $0x38] sm:$0xf]
        %v2913 = vld [vmem:[%s795 + $0x3c] sm:$0xf]
        %v2914 = vperm.slane %v947, 6
        %v2931 = vunpack.c.l.b16 %v2898
        %v2932 = vunpack.c.l.b16 %v2899
        %v2933 = vunpack.c.l.b16 %v2900
        %v2934 = vunpack.c.l.b16 %v2901
        %v2935 = vunpack.c.l.b16 %v2902
        %v2936 = vunpack.c.l.b16 %v2903
        %v2937 = vunpack.c.l.b16 %v2904
        %v2938 = vunpack.c.l.b16 %v2905
        %v2939 = vunpack.c.l.b16 %v2906
        %v2940 = vunpack.c.l.b16 %v2907
        %v2941 = vunpack.c.l.b16 %v2908
        %v2942 = vunpack.c.l.b16 %v2909
        %v2943 = vunpack.c.l.b16 %v2910
        %v2944 = vunpack.c.l.b16 %v2911
        %v2945 = vunpack.c.l.b16 %v2912
        %v2946 = vunpack.c.l.b16 %v2913
        %v2947 = vpack.c.b16 %v2932, %v2931
        %v2948 = vpack.c.b16 %v2934, %v2933
        %v2949 = vpack.c.b16 %v2936, %v2935
        %v2950 = vpack.c.b16 %v2938, %v2937
        %v2951 = vpack.c.b16 %v2940, %v2939
        %v2952 = vpack.c.b16 %v2942, %v2941
        %v2953 = vpack.c.b16 %v2944, %v2943
        %v2954 = vpack.c.b16 %v2946, %v2945
        %2963 = vmatpush.bf16.msra.mxu0 %v2954
        %2964 = vmatpush.bf16.msra.mxu0 %v2953
        %2965 = vmatpush.bf16.msra.mxu0 %v2952
        %2966 = vmatpush.bf16.msra.mxu0 %v2951
        %2967 = vmatpush.bf16.msra.mxu0 %v2950
        %2968 = vmatpush.bf16.msra.mxu0 %v2949
        %2969 = vmatpush.bf16.msra.mxu0 %v2948
        %2970 = vmatpush.bf16.msra.mxu0 %v2947
        %2971 = vmatmul.bf16.gmra.mxu0 %v2827
        %v2972 = vpop.f32.mrf.mxu0
        %v2973 = vadd.f32 %v2914, %v2972
        %v2974 = vpop.f32.mrf.mxu0
        %v2975 = vadd.f32 %v2914, %v2974
        %2976 = vmatmul.bf16.gmra.mxu0 %v2828
        %v2977 = vpop.f32.mrf.mxu0
        %v2978 = vadd.f32 %v2914, %v2977
        %v2979 = vpop.f32.mrf.mxu0
        %v2980 = vadd.f32 %v2914, %v2979
        %2981 = vdwg.mxu0
        %2984 = vrot.lane.b32.xlu0 %v2798, 96
        %v2985 = vpop.permute.xlu0 %2984
        %2986 = vrot.lane.b32.xlu0 %v2800, 96
        %v2987 = vpop.permute.xlu0 %2986
        %2990 = vrot.lane.b32.xlu0 %v2798, 64
        %v2991 = vpop.permute.xlu0 %2990
        %2992 = vrot.lane.b32.xlu0 %v2800, 64
        %v2993 = vpop.permute.xlu0 %2992
        %2996 = vrot.lane.b32.xlu0 %v2798, 32
        %v2997 = vpop.permute.xlu0 %2996
        %2998 = vrot.lane.b32.xlu0 %v2800, 32
        %v2999 = vpop.permute.xlu0 %2998
        %v3002 = vrot.slane %v2991, 4
        %v3003 = vsel %vm1208, %v3002, %v2798
        %v3004 = vrot.slane %v2798, 4
        %v3005 = vsel %vm1208, %v2991, %v3004
        %v3007 = vunpack.c.l.s4 1983009808
        %v3008 = vunpack.c.0.s8 %v3007
        %v3009 = vperm.slane %v3003, %v3008
        %v3011 = vunpack.c.l.s4 1983009808
        %v3012 = vunpack.c.0.s8 %v3011
        %v3013 = vperm.slane %v3005, %v3012
        %v3014 = vrot.slane %v2997, 4
        %v3015 = vsel %vm1208, %v3014, %v2985
        %v3016 = vrot.slane %v2985, 4
        %v3017 = vsel %vm1208, %v2997, %v3016
        %v3019 = vunpack.c.l.s4 1983009808
        %v3020 = vunpack.c.0.s8 %v3019
        %v3021 = vperm.slane %v3015, %v3020
        %v3023 = vunpack.c.l.s4 1983009808
        %v3024 = vunpack.c.0.s8 %v3023
        %v3025 = vperm.slane %v3017, %v3024
        %v3026 = vrot.slane %v3021, 4
        %v3027 = vsel %vm1208, %v3026, %v3009
        %v3028 = vrot.slane %v3009, 4
        %v3029 = vsel %vm1208, %v3021, %v3028
        %v3031 = vunpack.c.l.s4 1934713408
        %v3032 = vunpack.c.0.s8 %v3031
        %v3033 = vperm.slane %v3027, %v3032
        %v3035 = vunpack.c.l.s4 1934713408
        %v3036 = vunpack.c.0.s8 %v3035
        %v3037 = vperm.slane %v3029, %v3036
        %v3038 = vrot.slane %v3025, 4
        %v3039 = vsel %vm1208, %v3038, %v3013
        %v3040 = vrot.slane %v3013, 4
        %v3041 = vsel %vm1208, %v3025, %v3040
        %v3043 = vunpack.c.l.s4 1934713408
        %v3044 = vunpack.c.0.s8 %v3043
        %v3045 = vperm.slane %v3039, %v3044
        %v3047 = vunpack.c.l.s4 1934713408
        %v3048 = vunpack.c.0.s8 %v3047
        %v3049 = vperm.slane %v3041, %v3048
        %v3050 = vrot.slane %v3033, 4
        %v3051 = vsel %vm1208, 0.0, %v3050
        %v3052 = vrot.slane %v3037, 4
        %v3053 = vsel %vm1208, 0.0, %v3052
        %v3054 = vrot.slane %v3045, 4
        %v3055 = vsel %vm1208, 0.0, %v3054
        %v3056 = vrot.slane %v3049, 4
        %v3057 = vsel %vm1208, 0.0, %v3056
        %v3058 = vrot.slane %v2993, 4
        %v3059 = vsel %vm1208, %v3058, %v2800
        %v3060 = vrot.slane %v2800, 4
        %v3061 = vsel %vm1208, %v2993, %v3060
        %v3063 = vunpack.c.l.s4 1983009808
        %v3064 = vunpack.c.0.s8 %v3063
        %v3065 = vperm.slane %v3059, %v3064
        %v3067 = vunpack.c.l.s4 1983009808
        %v3068 = vunpack.c.0.s8 %v3067
        %v3069 = vperm.slane %v3061, %v3068
        %v3070 = vrot.slane %v2999, 4
        %v3071 = vsel %vm1208, %v3070, %v2987
        %v3072 = vrot.slane %v2987, 4
        %v3073 = vsel %vm1208, %v2999, %v3072
        %v3075 = vunpack.c.l.s4 1983009808
        %v3076 = vunpack.c.0.s8 %v3075
        %v3077 = vperm.slane %v3071, %v3076
        %v3079 = vunpack.c.l.s4 1983009808
        %v3080 = vunpack.c.0.s8 %v3079
        %v3081 = vperm.slane %v3073, %v3080
        %v3082 = vrot.slane %v3077, 4
        %v3083 = vsel %vm1208, %v3082, %v3065
        %v3084 = vrot.slane %v3065, 4
        %v3085 = vsel %vm1208, %v3077, %v3084
        %v3087 = vunpack.c.l.s4 1934713408
        %v3088 = vunpack.c.0.s8 %v3087
        %v3089 = vperm.slane %v3083, %v3088
        %v3091 = vunpack.c.l.s4 1934713408
        %v3092 = vunpack.c.0.s8 %v3091
        %v3093 = vperm.slane %v3085, %v3092
        %v3094 = vrot.slane %v3081, 4
        %v3095 = vsel %vm1208, %v3094, %v3069
        %v3096 = vrot.slane %v3069, 4
        %v3097 = vsel %vm1208, %v3081, %v3096
        %v3099 = vunpack.c.l.s4 1934713408
        %v3100 = vunpack.c.0.s8 %v3099
        %v3101 = vperm.slane %v3095, %v3100
        %v3103 = vunpack.c.l.s4 1934713408
        %v3104 = vunpack.c.0.s8 %v3103
        %v3105 = vperm.slane %v3097, %v3104
        %v3106 = vrot.slane %v3089, 4
        %v3107 = vsel %vm1208, 0.0, %v3106
        %v3108 = vrot.slane %v3093, 4
        %v3109 = vsel %vm1208, 0.0, %v3108
        %v3110 = vrot.slane %v3101, 4
        %v3111 = vsel %vm1208, 0.0, %v3110
        %v3112 = vrot.slane %v3105, 4
        %v3113 = vsel %vm1208, 0.0, %v3112
        %v3114 = vsel %vm1208, %v3052, %v3033
        %v3116 = vunpack.c.l.s4 1983009808
        %v3117 = vunpack.c.0.s8 %v3116
        %v3118 = vperm.slane %v3114, %v3117
        %v3119 = vrot.slane %v3053, 4
        %v3120 = vsel %vm1208, %v3119, %v3051
        %v3122 = vunpack.c.l.s4 1983009808
        %v3123 = vunpack.c.0.s8 %v3122
        %v3124 = vperm.slane %v3120, %v3123
        %v3125 = vsel %vm1208, %v3056, %v3045
        %v3127 = vunpack.c.l.s4 1983009808
        %v3128 = vunpack.c.0.s8 %v3127
        %v3129 = vperm.slane %v3125, %v3128
        %v3130 = vrot.slane %v3057, 4
        %v3131 = vsel %vm1208, %v3130, %v3055
        %v3133 = vunpack.c.l.s4 1983009808
        %v3134 = vunpack.c.0.s8 %v3133
        %v3135 = vperm.slane %v3131, %v3134
        %v3136 = vrot.slane %v3124, 4
        %v3137 = vsel %vm1208, %v3136, %v3118
        %v3138 = vrot.slane %v3118, 4
        %v3139 = vsel %vm1208, %v3124, %v3138
        %v3141 = vunpack.c.l.s4 1934713408
        %v3142 = vunpack.c.0.s8 %v3141
        %v3143 = vperm.slane %v3137, %v3142
        %v3145 = vunpack.c.l.s4 1934713408
        %v3146 = vunpack.c.0.s8 %v3145
        %v3147 = vperm.slane %v3139, %v3146
        %v3148 = vrot.slane %v3135, 4
        %v3149 = vsel %vm1208, %v3148, %v3129
        %v3150 = vrot.slane %v3129, 4
        %v3151 = vsel %vm1208, %v3135, %v3150
        %v3153 = vunpack.c.l.s4 1934713408
        %v3154 = vunpack.c.0.s8 %v3153
        %v3155 = vperm.slane %v3149, %v3154
        %v3157 = vunpack.c.l.s4 1934713408
        %v3158 = vunpack.c.0.s8 %v3157
        %v3159 = vperm.slane %v3151, %v3158
        %v3160 = vrot.slane %v3155, 4
        %v3161 = vsel %vm1208, %v3160, %v3143
        %v3162 = vrot.slane %v3143, 4
        %v3163 = vsel %vm1208, %v3155, %v3162
        %v3164 = vrot.slane %v3159, 4
        %v3165 = vsel %vm1208, %v3164, %v3147
        %v3166 = vrot.slane %v3147, 4
        %v3167 = vsel %vm1208, %v3159, %v3166
        %v3168 = vsel %vm1208, %v3108, %v3089
        %v3170 = vunpack.c.l.s4 1983009808
        %v3171 = vunpack.c.0.s8 %v3170
        %v3172 = vperm.slane %v3168, %v3171
        %v3173 = vrot.slane %v3109, 4
        %v3174 = vsel %vm1208, %v3173, %v3107
        %v3176 = vunpack.c.l.s4 1983009808
        %v3177 = vunpack.c.0.s8 %v3176
        %v3178 = vperm.slane %v3174, %v3177
        %v3179 = vsel %vm1208, %v3112, %v3101
        %v3181 = vunpack.c.l.s4 1983009808
        %v3182 = vunpack.c.0.s8 %v3181
        %v3183 = vperm.slane %v3179, %v3182
        %v3184 = vrot.slane %v3113, 4
        %v3185 = vsel %vm1208, %v3184, %v3111
        %v3187 = vunpack.c.l.s4 1983009808
        %v3188 = vunpack.c.0.s8 %v3187
        %v3189 = vperm.slane %v3185, %v3188
        %v3190 = vrot.slane %v3178, 4
        %v3191 = vsel %vm1208, %v3190, %v3172
        %v3192 = vrot.slane %v3172, 4
        %v3193 = vsel %vm1208, %v3178, %v3192
        %v3195 = vunpack.c.l.s4 1934713408
        %v3196 = vunpack.c.0.s8 %v3195
        %v3197 = vperm.slane %v3191, %v3196
        %v3199 = vunpack.c.l.s4 1934713408
        %v3200 = vunpack.c.0.s8 %v3199
        %v3201 = vperm.slane %v3193, %v3200
        %v3202 = vrot.slane %v3189, 4
        %v3203 = vsel %vm1208, %v3202, %v3183
        %v3204 = vrot.slane %v3183, 4
        %v3205 = vsel %vm1208, %v3189, %v3204
        %v3207 = vunpack.c.l.s4 1934713408
        %v3208 = vunpack.c.0.s8 %v3207
        %v3209 = vperm.slane %v3203, %v3208
        %v3211 = vunpack.c.l.s4 1934713408
        %v3212 = vunpack.c.0.s8 %v3211
        %v3213 = vperm.slane %v3205, %v3212
        %v3214 = vrot.slane %v3209, 4
        %v3215 = vsel %vm1208, %v3214, %v3197
        %v3216 = vrot.slane %v3197, 4
        %v3217 = vsel %vm1208, %v3209, %v3216
        %v3218 = vrot.slane %v3213, 4
        %v3219 = vsel %vm1208, %v3218, %v3201
        %v3220 = vrot.slane %v3201, 4
        %v3221 = vsel %vm1208, %v3213, %v3220
        %3226 = vrot.lane.b32.xlu0 %v2889, 96
        %v3227 = vpop.permute.xlu0 %3226
        %3228 = vrot.lane.b32.xlu0 %v2891, 96
        %v3229 = vpop.permute.xlu0 %3228
        %3230 = vrot.lane.b32.xlu0 %v2894, 96
        %v3231 = vpop.permute.xlu0 %3230
        %3232 = vrot.lane.b32.xlu0 %v2896, 96
        %v3233 = vpop.permute.xlu0 %3232
        %3238 = vrot.lane.b32.xlu0 %v2889, 64
        %v3239 = vpop.permute.xlu0 %3238
        %3240 = vrot.lane.b32.xlu0 %v2891, 64
        %v3241 = vpop.permute.xlu0 %3240
        %3242 = vrot.lane.b32.xlu0 %v2894, 64
        %v3243 = vpop.permute.xlu0 %3242
        %3244 = vrot.lane.b32.xlu0 %v2896, 64
        %v3245 = vpop.permute.xlu0 %3244
        %3250 = vrot.lane.b32.xlu0 %v2889, 32
        %v3251 = vpop.permute.xlu0 %3250
        %3252 = vrot.lane.b32.xlu0 %v2891, 32
        %v3253 = vpop.permute.xlu0 %3252
        %3254 = vrot.lane.b32.xlu0 %v2894, 32
        %v3255 = vpop.permute.xlu0 %3254
        %3256 = vrot.lane.b32.xlu0 %v2896, 32
        %v3257 = vpop.permute.xlu0 %3256
        %v3262 = vrot.slane %v3239, 4
        %v3263 = vsel %vm1208, %v3262, %v2889
        %v3264 = vrot.slane %v2889, 4
        %v3265 = vsel %vm1208, %v3239, %v3264
        %v3267 = vunpack.c.l.s4 1983009808
        %v3268 = vunpack.c.0.s8 %v3267
        %v3269 = vperm.slane %v3263, %v3268
        %v3271 = vunpack.c.l.s4 1983009808
        %v3272 = vunpack.c.0.s8 %v3271
        %v3273 = vperm.slane %v3265, %v3272
        %v3274 = vrot.slane %v3251, 4
        %v3275 = vsel %vm1208, %v3274, %v3227
        %v3276 = vrot.slane %v3227, 4
        %v3277 = vsel %vm1208, %v3251, %v3276
        %v3279 = vunpack.c.l.s4 1983009808
        %v3280 = vunpack.c.0.s8 %v3279
        %v3281 = vperm.slane %v3275, %v3280
        %v3283 = vunpack.c.l.s4 1983009808
        %v3284 = vunpack.c.0.s8 %v3283
        %v3285 = vperm.slane %v3277, %v3284
        %v3286 = vrot.slane %v3281, 4
        %v3287 = vsel %vm1208, %v3286, %v3269
        %v3288 = vrot.slane %v3269, 4
        %v3289 = vsel %vm1208, %v3281, %v3288
        %v3291 = vunpack.c.l.s4 1934713408
        %v3292 = vunpack.c.0.s8 %v3291
        %v3293 = vperm.slane %v3287, %v3292
        %v3295 = vunpack.c.l.s4 1934713408
        %v3296 = vunpack.c.0.s8 %v3295
        %v3297 = vperm.slane %v3289, %v3296
        %v3298 = vrot.slane %v3285, 4
        %v3299 = vsel %vm1208, %v3298, %v3273
        %v3300 = vrot.slane %v3273, 4
        %v3301 = vsel %vm1208, %v3285, %v3300
        %v3303 = vunpack.c.l.s4 1934713408
        %v3304 = vunpack.c.0.s8 %v3303
        %v3305 = vperm.slane %v3299, %v3304
        %v3307 = vunpack.c.l.s4 1934713408
        %v3308 = vunpack.c.0.s8 %v3307
        %v3309 = vperm.slane %v3301, %v3308
        %v3310 = vrot.slane %v3293, 4
        %v3311 = vsel %vm1208, 0.0, %v3310
        %v3312 = vrot.slane %v3297, 4
        %v3313 = vsel %vm1208, 0.0, %v3312
        %v3314 = vrot.slane %v3305, 4
        %v3315 = vsel %vm1208, 0.0, %v3314
        %v3316 = vrot.slane %v3309, 4
        %v3317 = vsel %vm1208, 0.0, %v3316
        %v3318 = vrot.slane %v3241, 4
        %v3319 = vsel %vm1208, %v3318, %v2891
        %v3320 = vrot.slane %v2891, 4
        %v3321 = vsel %vm1208, %v3241, %v3320
        %v3323 = vunpack.c.l.s4 1983009808
        %v3324 = vunpack.c.0.s8 %v3323
        %v3325 = vperm.slane %v3319, %v3324
        %v3327 = vunpack.c.l.s4 1983009808
        %v3328 = vunpack.c.0.s8 %v3327
        %v3329 = vperm.slane %v3321, %v3328
        %v3330 = vrot.slane %v3253, 4
        %v3331 = vsel %vm1208, %v3330, %v3229
        %v3332 = vrot.slane %v3229, 4
        %v3333 = vsel %vm1208, %v3253, %v3332
        %v3335 = vunpack.c.l.s4 1983009808
        %v3336 = vunpack.c.0.s8 %v3335
        %v3337 = vperm.slane %v3331, %v3336
        %v3339 = vunpack.c.l.s4 1983009808
        %v3340 = vunpack.c.0.s8 %v3339
        %v3341 = vperm.slane %v3333, %v3340
        %v3342 = vrot.slane %v3337, 4
        %v3343 = vsel %vm1208, %v3342, %v3325
        %v3344 = vrot.slane %v3325, 4
        %v3345 = vsel %vm1208, %v3337, %v3344
        %v3347 = vunpack.c.l.s4 1934713408
        %v3348 = vunpack.c.0.s8 %v3347
        %v3349 = vperm.slane %v3343, %v3348
        %v3351 = vunpack.c.l.s4 1934713408
        %v3352 = vunpack.c.0.s8 %v3351
        %v3353 = vperm.slane %v3345, %v3352
        %v3354 = vrot.slane %v3341, 4
        %v3355 = vsel %vm1208, %v3354, %v3329
        %v3356 = vrot.slane %v3329, 4
        %v3357 = vsel %vm1208, %v3341, %v3356
        %v3359 = vunpack.c.l.s4 1934713408
        %v3360 = vunpack.c.0.s8 %v3359
        %v3361 = vperm.slane %v3355, %v3360
        %v3363 = vunpack.c.l.s4 1934713408
        %v3364 = vunpack.c.0.s8 %v3363
        %v3365 = vperm.slane %v3357, %v3364
        %v3366 = vrot.slane %v3349, 4
        %v3367 = vsel %vm1208, 0.0, %v3366
        %v3368 = vrot.slane %v3353, 4
        %v3369 = vsel %vm1208, 0.0, %v3368
        %v3370 = vrot.slane %v3361, 4
        %v3371 = vsel %vm1208, 0.0, %v3370
        %v3372 = vrot.slane %v3365, 4
        %v3373 = vsel %vm1208, 0.0, %v3372
        %v3374 = vrot.slane %v3243, 4
        %v3375 = vsel %vm1208, %v3374, %v2894
        %v3376 = vrot.slane %v2894, 4
        %v3377 = vsel %vm1208, %v3243, %v3376
        %v3379 = vunpack.c.l.s4 1983009808
        %v3380 = vunpack.c.0.s8 %v3379
        %v3381 = vperm.slane %v3375, %v3380
        %v3383 = vunpack.c.l.s4 1983009808
        %v3384 = vunpack.c.0.s8 %v3383
        %v3385 = vperm.slane %v3377, %v3384
        %v3386 = vrot.slane %v3255, 4
        %v3387 = vsel %vm1208, %v3386, %v3231
        %v3388 = vrot.slane %v3231, 4
        %v3389 = vsel %vm1208, %v3255, %v3388
        %v3391 = vunpack.c.l.s4 1983009808
        %v3392 = vunpack.c.0.s8 %v3391
        %v3393 = vperm.slane %v3387, %v3392
        %v3395 = vunpack.c.l.s4 1983009808
        %v3396 = vunpack.c.0.s8 %v3395
        %v3397 = vperm.slane %v3389, %v3396
        %v3398 = vrot.slane %v3393, 4
        %v3399 = vsel %vm1208, %v3398, %v3381
        %v3400 = vrot.slane %v3381, 4
        %v3401 = vsel %vm1208, %v3393, %v3400
        %v3403 = vunpack.c.l.s4 1934713408
        %v3404 = vunpack.c.0.s8 %v3403
        %v3405 = vperm.slane %v3399, %v3404
        %v3407 = vunpack.c.l.s4 1934713408
        %v3408 = vunpack.c.0.s8 %v3407
        %v3409 = vperm.slane %v3401, %v3408
        %v3410 = vrot.slane %v3397, 4
        %v3411 = vsel %vm1208, %v3410, %v3385
        %v3412 = vrot.slane %v3385, 4
        %v3413 = vsel %vm1208, %v3397, %v3412
        %v3415 = vunpack.c.l.s4 1934713408
        %v3416 = vunpack.c.0.s8 %v3415
        %v3417 = vperm.slane %v3411, %v3416
        %v3419 = vunpack.c.l.s4 1934713408
        %v3420 = vunpack.c.0.s8 %v3419
        %v3421 = vperm.slane %v3413, %v3420
        %v3422 = vrot.slane %v3405, 4
        %v3423 = vsel %vm1208, 0.0, %v3422
        %v3424 = vrot.slane %v3409, 4
        %v3425 = vsel %vm1208, 0.0, %v3424
        %v3426 = vrot.slane %v3417, 4
        %v3427 = vsel %vm1208, 0.0, %v3426
        %v3428 = vrot.slane %v3421, 4
        %v3429 = vsel %vm1208, 0.0, %v3428
        %v3430 = vrot.slane %v3245, 4
        %v3431 = vsel %vm1208, %v3430, %v2896
        %v3432 = vrot.slane %v2896, 4
        %v3433 = vsel %vm1208, %v3245, %v3432
        %v3435 = vunpack.c.l.s4 1983009808
        %v3436 = vunpack.c.0.s8 %v3435
        %v3437 = vperm.slane %v3431, %v3436
        %v3439 = vunpack.c.l.s4 1983009808
        %v3440 = vunpack.c.0.s8 %v3439
        %v3441 = vperm.slane %v3433, %v3440
        %v3442 = vrot.slane %v3257, 4
        %v3443 = vsel %vm1208, %v3442, %v3233
        %v3444 = vrot.slane %v3233, 4
        %v3445 = vsel %vm1208, %v3257, %v3444
        %v3447 = vunpack.c.l.s4 1983009808
        %v3448 = vunpack.c.0.s8 %v3447
        %v3449 = vperm.slane %v3443, %v3448
        %v3451 = vunpack.c.l.s4 1983009808
        %v3452 = vunpack.c.0.s8 %v3451
        %v3453 = vperm.slane %v3445, %v3452
        %v3454 = vrot.slane %v3449, 4
        %v3455 = vsel %vm1208, %v3454, %v3437
        %v3456 = vrot.slane %v3437, 4
        %v3457 = vsel %vm1208, %v3449, %v3456
        %v3459 = vunpack.c.l.s4 1934713408
        %v3460 = vunpack.c.0.s8 %v3459
        %v3461 = vperm.slane %v3455, %v3460
        %v3463 = vunpack.c.l.s4 1934713408
        %v3464 = vunpack.c.0.s8 %v3463
        %v3465 = vperm.slane %v3457, %v3464
        %v3466 = vrot.slane %v3453, 4
        %v3467 = vsel %vm1208, %v3466, %v3441
        %v3468 = vrot.slane %v3441, 4
        %v3469 = vsel %vm1208, %v3453, %v3468
        %v3471 = vunpack.c.l.s4 1934713408
        %v3472 = vunpack.c.0.s8 %v3471
        %v3473 = vperm.slane %v3467, %v3472
        %v3475 = vunpack.c.l.s4 1934713408
        %v3476 = vunpack.c.0.s8 %v3475
        %v3477 = vperm.slane %v3469, %v3476
        %v3478 = vrot.slane %v3461, 4
        %v3479 = vsel %vm1208, 0.0, %v3478
        %v3480 = vrot.slane %v3465, 4
        %v3481 = vsel %vm1208, 0.0, %v3480
        %v3482 = vrot.slane %v3473, 4
        %v3483 = vsel %vm1208, 0.0, %v3482
        %v3484 = vrot.slane %v3477, 4
        %v3485 = vsel %vm1208, 0.0, %v3484
        %v3486 = vsel %vm1208, %v3312, %v3293
        %v3488 = vunpack.c.l.s4 1983009808
        %v3489 = vunpack.c.0.s8 %v3488
        %v3490 = vperm.slane %v3486, %v3489
        %v3491 = vrot.slane %v3313, 4
        %v3492 = vsel %vm1208, %v3491, %v3311
        %v3494 = vunpack.c.l.s4 1983009808
        %v3495 = vunpack.c.0.s8 %v3494
        %v3496 = vperm.slane %v3492, %v3495
        %v3497 = vsel %vm1208, %v3316, %v3305
        %v3499 = vunpack.c.l.s4 1983009808
        %v3500 = vunpack.c.0.s8 %v3499
        %v3501 = vperm.slane %v3497, %v3500
        %v3502 = vrot.slane %v3317, 4
        %v3503 = vsel %vm1208, %v3502, %v3315
        %v3505 = vunpack.c.l.s4 1983009808
        %v3506 = vunpack.c.0.s8 %v3505
        %v3507 = vperm.slane %v3503, %v3506
        %v3508 = vrot.slane %v3496, 4
        %v3509 = vsel %vm1208, %v3508, %v3490
        %v3510 = vrot.slane %v3490, 4
        %v3511 = vsel %vm1208, %v3496, %v3510
        %v3513 = vunpack.c.l.s4 1934713408
        %v3514 = vunpack.c.0.s8 %v3513
        %v3515 = vperm.slane %v3509, %v3514
        %v3517 = vunpack.c.l.s4 1934713408
        %v3518 = vunpack.c.0.s8 %v3517
        %v3519 = vperm.slane %v3511, %v3518
        %v3520 = vrot.slane %v3507, 4
        %v3521 = vsel %vm1208, %v3520, %v3501
        %v3522 = vrot.slane %v3501, 4
        %v3523 = vsel %vm1208, %v3507, %v3522
        %v3525 = vunpack.c.l.s4 1934713408
        %v3526 = vunpack.c.0.s8 %v3525
        %v3527 = vperm.slane %v3521, %v3526
        %v3529 = vunpack.c.l.s4 1934713408
        %v3530 = vunpack.c.0.s8 %v3529
        %v3531 = vperm.slane %v3523, %v3530
        %v3532 = vrot.slane %v3527, 4
        %v3533 = vsel %vm1208, %v3532, %v3515
        %v3534 = vrot.slane %v3515, 4
        %v3535 = vsel %vm1208, %v3527, %v3534
        %v3536 = vrot.slane %v3531, 4
        %v3537 = vsel %vm1208, %v3536, %v3519
        %v3538 = vrot.slane %v3519, 4
        %v3539 = vsel %vm1208, %v3531, %v3538
        %v3540 = vsel %vm1208, %v3368, %v3349
        %v3542 = vunpack.c.l.s4 1983009808
        %v3543 = vunpack.c.0.s8 %v3542
        %v3544 = vperm.slane %v3540, %v3543
        %v3545 = vrot.slane %v3369, 4
        %v3546 = vsel %vm1208, %v3545, %v3367
        %v3548 = vunpack.c.l.s4 1983009808
        %v3549 = vunpack.c.0.s8 %v3548
        %v3550 = vperm.slane %v3546, %v3549
        %v3551 = vsel %vm1208, %v3372, %v3361
        %v3553 = vunpack.c.l.s4 1983009808
        %v3554 = vunpack.c.0.s8 %v3553
        %v3555 = vperm.slane %v3551, %v3554
        %v3556 = vrot.slane %v3373, 4
        %v3557 = vsel %vm1208, %v3556, %v3371
        %v3559 = vunpack.c.l.s4 1983009808
        %v3560 = vunpack.c.0.s8 %v3559
        %v3561 = vperm.slane %v3557, %v3560
        %v3562 = vrot.slane %v3550, 4
        %v3563 = vsel %vm1208, %v3562, %v3544
        %v3564 = vrot.slane %v3544, 4
        %v3565 = vsel %vm1208, %v3550, %v3564
        %v3567 = vunpack.c.l.s4 1934713408
        %v3568 = vunpack.c.0.s8 %v3567
        %v3569 = vperm.slane %v3563, %v3568
        %v3571 = vunpack.c.l.s4 1934713408
        %v3572 = vunpack.c.0.s8 %v3571
        %v3573 = vperm.slane %v3565, %v3572
        %v3574 = vrot.slane %v3561, 4
        %v3575 = vsel %vm1208, %v3574, %v3555
        %v3576 = vrot.slane %v3555, 4
        %v3577 = vsel %vm1208, %v3561, %v3576
        %v3579 = vunpack.c.l.s4 1934713408
        %v3580 = vunpack.c.0.s8 %v3579
        %v3581 = vperm.slane %v3575, %v3580
        %v3583 = vunpack.c.l.s4 1934713408
        %v3584 = vunpack.c.0.s8 %v3583
        %v3585 = vperm.slane %v3577, %v3584
        %v3586 = vrot.slane %v3581, 4
        %v3587 = vsel %vm1208, %v3586, %v3569
        %v3588 = vrot.slane %v3569, 4
        %v3589 = vsel %vm1208, %v3581, %v3588
        %v3590 = vrot.slane %v3585, 4
        %v3591 = vsel %vm1208, %v3590, %v3573
        %v3592 = vrot.slane %v3573, 4
        %v3593 = vsel %vm1208, %v3585, %v3592
        %v3594 = vsel %vm1208, %v3424, %v3405
        %v3596 = vunpack.c.l.s4 1983009808
        %v3597 = vunpack.c.0.s8 %v3596
        %v3598 = vperm.slane %v3594, %v3597
        %v3599 = vrot.slane %v3425, 4
        %v3600 = vsel %vm1208, %v3599, %v3423
        %v3602 = vunpack.c.l.s4 1983009808
        %v3603 = vunpack.c.0.s8 %v3602
        %v3604 = vperm.slane %v3600, %v3603
        %v3605 = vsel %vm1208, %v3428, %v3417
        %v3607 = vunpack.c.l.s4 1983009808
        %v3608 = vunpack.c.0.s8 %v3607
        %v3609 = vperm.slane %v3605, %v3608
        %v3610 = vrot.slane %v3429, 4
        %v3611 = vsel %vm1208, %v3610, %v3427
        %v3613 = vunpack.c.l.s4 1983009808
        %v3614 = vunpack.c.0.s8 %v3613
        %v3615 = vperm.slane %v3611, %v3614
        %v3616 = vrot.slane %v3604, 4
        %v3617 = vsel %vm1208, %v3616, %v3598
        %v3618 = vrot.slane %v3598, 4
        %v3619 = vsel %vm1208, %v3604, %v3618
        %v3621 = vunpack.c.l.s4 1934713408
        %v3622 = vunpack.c.0.s8 %v3621
        %v3623 = vperm.slane %v3617, %v3622
        %v3625 = vunpack.c.l.s4 1934713408
        %v3626 = vunpack.c.0.s8 %v3625
        %v3627 = vperm.slane %v3619, %v3626
        %v3628 = vrot.slane %v3615, 4
        %v3629 = vsel %vm1208, %v3628, %v3609
        %v3630 = vrot.slane %v3609, 4
        %v3631 = vsel %vm1208, %v3615, %v3630
        %v3633 = vunpack.c.l.s4 1934713408
        %v3634 = vunpack.c.0.s8 %v3633
        %v3635 = vperm.slane %v3629, %v3634
        %v3637 = vunpack.c.l.s4 1934713408
        %v3638 = vunpack.c.0.s8 %v3637
        %v3639 = vperm.slane %v3631, %v3638
        %v3640 = vrot.slane %v3635, 4
        %v3641 = vsel %vm1208, %v3640, %v3623
        %v3642 = vrot.slane %v3623, 4
        %v3643 = vsel %vm1208, %v3635, %v3642
        %v3644 = vrot.slane %v3639, 4
        %v3645 = vsel %vm1208, %v3644, %v3627
        %v3646 = vrot.slane %v3627, 4
        %v3647 = vsel %vm1208, %v3639, %v3646
        %v3648 = vsel %vm1208, %v3480, %v3461
        %v3650 = vunpack.c.l.s4 1983009808
        %v3651 = vunpack.c.0.s8 %v3650
        %v3652 = vperm.slane %v3648, %v3651
        %v3653 = vrot.slane %v3481, 4
        %v3654 = vsel %vm1208, %v3653, %v3479
        %v3656 = vunpack.c.l.s4 1983009808
        %v3657 = vunpack.c.0.s8 %v3656
        %v3658 = vperm.slane %v3654, %v3657
        %v3659 = vsel %vm1208, %v3484, %v3473
        %v3661 = vunpack.c.l.s4 1983009808
        %v3662 = vunpack.c.0.s8 %v3661
        %v3663 = vperm.slane %v3659, %v3662
        %v3664 = vrot.slane %v3485, 4
        %v3665 = vsel %vm1208, %v3664, %v3483
        %v3667 = vunpack.c.l.s4 1983009808
        %v3668 = vunpack.c.0.s8 %v3667
        %v3669 = vperm.slane %v3665, %v3668
        %v3670 = vrot.slane %v3658, 4
        %v3671 = vsel %vm1208, %v3670, %v3652
        %v3672 = vrot.slane %v3652, 4
        %v3673 = vsel %vm1208, %v3658, %v3672
        %v3675 = vunpack.c.l.s4 1934713408
        %v3676 = vunpack.c.0.s8 %v3675
        %v3677 = vperm.slane %v3671, %v3676
        %v3679 = vunpack.c.l.s4 1934713408
        %v3680 = vunpack.c.0.s8 %v3679
        %v3681 = vperm.slane %v3673, %v3680
        %v3682 = vrot.slane %v3669, 4
        %v3683 = vsel %vm1208, %v3682, %v3663
        %v3684 = vrot.slane %v3663, 4
        %v3685 = vsel %vm1208, %v3669, %v3684
        %v3687 = vunpack.c.l.s4 1934713408
        %v3688 = vunpack.c.0.s8 %v3687
        %v3689 = vperm.slane %v3683, %v3688
        %v3691 = vunpack.c.l.s4 1934713408
        %v3692 = vunpack.c.0.s8 %v3691
        %v3693 = vperm.slane %v3685, %v3692
        %v3694 = vrot.slane %v3689, 4
        %v3695 = vsel %vm1208, %v3694, %v3677
        %v3696 = vrot.slane %v3677, 4
        %v3697 = vsel %vm1208, %v3689, %v3696
        %v3698 = vrot.slane %v3693, 4
        %v3699 = vsel %vm1208, %v3698, %v3681
        %v3700 = vrot.slane %v3681, 4
        %v3701 = vsel %vm1208, %v3693, %v3700
        %3706 = vrot.lane.b32.xlu0 %v2973, 96
        %v3707 = vpop.permute.xlu0 %3706
        %3708 = vrot.lane.b32.xlu0 %v2975, 96
        %v3709 = vpop.permute.xlu0 %3708
        %3710 = vrot.lane.b32.xlu0 %v2978, 96
        %v3711 = vpop.permute.xlu0 %3710
        %3712 = vrot.lane.b32.xlu0 %v2980, 96
        %v3713 = vpop.permute.xlu0 %3712
        %3718 = vrot.lane.b32.xlu0 %v2973, 64
        %v3719 = vpop.permute.xlu0 %3718
        %3720 = vrot.lane.b32.xlu0 %v2975, 64
        %v3721 = vpop.permute.xlu0 %3720
        %3722 = vrot.lane.b32.xlu0 %v2978, 64
        %v3723 = vpop.permute.xlu0 %3722
        %3724 = vrot.lane.b32.xlu0 %v2980, 64
        %v3725 = vpop.permute.xlu0 %3724
        %3730 = vrot.lane.b32.xlu0 %v2973, 32
        %v3731 = vpop.permute.xlu0 %3730
        %3732 = vrot.lane.b32.xlu0 %v2975, 32
        %v3733 = vpop.permute.xlu0 %3732
        %3734 = vrot.lane.b32.xlu0 %v2978, 32
        %v3735 = vpop.permute.xlu0 %3734
        %3736 = vrot.lane.b32.xlu0 %v2980, 32
        %v3737 = vpop.permute.xlu0 %3736
        %v3742 = vrot.slane %v3719, 4
        %v3743 = vsel %vm1208, %v3742, %v2973
        %v3744 = vrot.slane %v2973, 4
        %v3745 = vsel %vm1208, %v3719, %v3744
        %v3747 = vunpack.c.l.s4 1983009808
        %v3748 = vunpack.c.0.s8 %v3747
        %v3749 = vperm.slane %v3743, %v3748
        %v3751 = vunpack.c.l.s4 1983009808
        %v3752 = vunpack.c.0.s8 %v3751
        %v3753 = vperm.slane %v3745, %v3752
        %v3754 = vrot.slane %v3731, 4
        %v3755 = vsel %vm1208, %v3754, %v3707
        %v3756 = vrot.slane %v3707, 4
        %v3757 = vsel %vm1208, %v3731, %v3756
        %v3759 = vunpack.c.l.s4 1983009808
        %v3760 = vunpack.c.0.s8 %v3759
        %v3761 = vperm.slane %v3755, %v3760
        %v3763 = vunpack.c.l.s4 1983009808
        %v3764 = vunpack.c.0.s8 %v3763
        %v3765 = vperm.slane %v3757, %v3764
        %v3766 = vrot.slane %v3761, 4
        %v3767 = vsel %vm1208, %v3766, %v3749
        %v3768 = vrot.slane %v3749, 4
        %v3769 = vsel %vm1208, %v3761, %v3768
        %v3771 = vunpack.c.l.s4 1934713408
        %v3772 = vunpack.c.0.s8 %v3771
        %v3773 = vperm.slane %v3767, %v3772
        %v3775 = vunpack.c.l.s4 1934713408
        %v3776 = vunpack.c.0.s8 %v3775
        %v3777 = vperm.slane %v3769, %v3776
        %v3778 = vrot.slane %v3765, 4
        %v3779 = vsel %vm1208, %v3778, %v3753
        %v3780 = vrot.slane %v3753, 4
        %v3781 = vsel %vm1208, %v3765, %v3780
        %v3783 = vunpack.c.l.s4 1934713408
        %v3784 = vunpack.c.0.s8 %v3783
        %v3785 = vperm.slane %v3779, %v3784
        %v3787 = vunpack.c.l.s4 1934713408
        %v3788 = vunpack.c.0.s8 %v3787
        %v3789 = vperm.slane %v3781, %v3788
        %v3790 = vrot.slane %v3773, 4
        %v3791 = vsel %vm1208, 0.0, %v3790
        %v3792 = vrot.slane %v3777, 4
        %v3793 = vsel %vm1208, 0.0, %v3792
        %v3794 = vrot.slane %v3785, 4
        %v3795 = vsel %vm1208, 0.0, %v3794
        %v3796 = vrot.slane %v3789, 4
        %v3797 = vsel %vm1208, 0.0, %v3796
        %v3798 = vrot.slane %v3721, 4
        %v3799 = vsel %vm1208, %v3798, %v2975
        %v3800 = vrot.slane %v2975, 4
        %v3801 = vsel %vm1208, %v3721, %v3800
        %v3803 = vunpack.c.l.s4 1983009808
        %v3804 = vunpack.c.0.s8 %v3803
        %v3805 = vperm.slane %v3799, %v3804
        %v3807 = vunpack.c.l.s4 1983009808
        %v3808 = vunpack.c.0.s8 %v3807
        %v3809 = vperm.slane %v3801, %v3808
        %v3810 = vrot.slane %v3733, 4
        %v3811 = vsel %vm1208, %v3810, %v3709
        %v3812 = vrot.slane %v3709, 4
        %v3813 = vsel %vm1208, %v3733, %v3812
        %v3815 = vunpack.c.l.s4 1983009808
        %v3816 = vunpack.c.0.s8 %v3815
        %v3817 = vperm.slane %v3811, %v3816
        %v3819 = vunpack.c.l.s4 1983009808
        %v3820 = vunpack.c.0.s8 %v3819
        %v3821 = vperm.slane %v3813, %v3820
        %v3822 = vrot.slane %v3817, 4
        %v3823 = vsel %vm1208, %v3822, %v3805
        %v3824 = vrot.slane %v3805, 4
        %v3825 = vsel %vm1208, %v3817, %v3824
        %v3827 = vunpack.c.l.s4 1934713408
        %v3828 = vunpack.c.0.s8 %v3827
        %v3829 = vperm.slane %v3823, %v3828
        %v3831 = vunpack.c.l.s4 1934713408
        %v3832 = vunpack.c.0.s8 %v3831
        %v3833 = vperm.slane %v3825, %v3832
        %v3834 = vrot.slane %v3821, 4
        %v3835 = vsel %vm1208, %v3834, %v3809
        %v3836 = vrot.slane %v3809, 4
        %v3837 = vsel %vm1208, %v3821, %v3836
        %v3839 = vunpack.c.l.s4 1934713408
        %v3840 = vunpack.c.0.s8 %v3839
        %v3841 = vperm.slane %v3835, %v3840
        %v3843 = vunpack.c.l.s4 1934713408
        %v3844 = vunpack.c.0.s8 %v3843
        %v3845 = vperm.slane %v3837, %v3844
        %v3846 = vrot.slane %v3829, 4
        %v3847 = vsel %vm1208, 0.0, %v3846
        %v3848 = vrot.slane %v3833, 4
        %v3849 = vsel %vm1208, 0.0, %v3848
        %v3850 = vrot.slane %v3841, 4
        %v3851 = vsel %vm1208, 0.0, %v3850
        %v3852 = vrot.slane %v3845, 4
        %v3853 = vsel %vm1208, 0.0, %v3852
        %v3854 = vrot.slane %v3723, 4
        %v3855 = vsel %vm1208, %v3854, %v2978
        %v3856 = vrot.slane %v2978, 4
        %v3857 = vsel %vm1208, %v3723, %v3856
        %v3859 = vunpack.c.l.s4 1983009808
        %v3860 = vunpack.c.0.s8 %v3859
        %v3861 = vperm.slane %v3855, %v3860
        %v3863 = vunpack.c.l.s4 1983009808
        %v3864 = vunpack.c.0.s8 %v3863
        %v3865 = vperm.slane %v3857, %v3864
        %v3866 = vrot.slane %v3735, 4
        %v3867 = vsel %vm1208, %v3866, %v3711
        %v3868 = vrot.slane %v3711, 4
        %v3869 = vsel %vm1208, %v3735, %v3868
        %v3871 = vunpack.c.l.s4 1983009808
        %v3872 = vunpack.c.0.s8 %v3871
        %v3873 = vperm.slane %v3867, %v3872
        %v3875 = vunpack.c.l.s4 1983009808
        %v3876 = vunpack.c.0.s8 %v3875
        %v3877 = vperm.slane %v3869, %v3876
        %v3878 = vrot.slane %v3873, 4
        %v3879 = vsel %vm1208, %v3878, %v3861
        %v3880 = vrot.slane %v3861, 4
        %v3881 = vsel %vm1208, %v3873, %v3880
        %v3883 = vunpack.c.l.s4 1934713408
        %v3884 = vunpack.c.0.s8 %v3883
        %v3885 = vperm.slane %v3879, %v3884
        %v3887 = vunpack.c.l.s4 1934713408
        %v3888 = vunpack.c.0.s8 %v3887
        %v3889 = vperm.slane %v3881, %v3888
        %v3890 = vrot.slane %v3877, 4
        %v3891 = vsel %vm1208, %v3890, %v3865
        %v3892 = vrot.slane %v3865, 4
        %v3893 = vsel %vm1208, %v3877, %v3892
        %v3895 = vunpack.c.l.s4 1934713408
        %v3896 = vunpack.c.0.s8 %v3895
        %v3897 = vperm.slane %v3891, %v3896
        %v3899 = vunpack.c.l.s4 1934713408
        %v3900 = vunpack.c.0.s8 %v3899
        %v3901 = vperm.slane %v3893, %v3900
        %v3902 = vrot.slane %v3885, 4
        %v3903 = vsel %vm1208, 0.0, %v3902
        %v3904 = vrot.slane %v3889, 4
        %v3905 = vsel %vm1208, 0.0, %v3904
        %v3906 = vrot.slane %v3897, 4
        %v3907 = vsel %vm1208, 0.0, %v3906
        %v3908 = vrot.slane %v3901, 4
        %v3909 = vsel %vm1208, 0.0, %v3908
        %v3910 = vrot.slane %v3725, 4
        %v3911 = vsel %vm1208, %v3910, %v2980
        %v3912 = vrot.slane %v2980, 4
        %v3913 = vsel %vm1208, %v3725, %v3912
        %v3915 = vunpack.c.l.s4 1983009808
        %v3916 = vunpack.c.0.s8 %v3915
        %v3917 = vperm.slane %v3911, %v3916
        %v3919 = vunpack.c.l.s4 1983009808
        %v3920 = vunpack.c.0.s8 %v3919
        %v3921 = vperm.slane %v3913, %v3920
        %v3922 = vrot.slane %v3737, 4
        %v3923 = vsel %vm1208, %v3922, %v3713
        %v3924 = vrot.slane %v3713, 4
        %v3925 = vsel %vm1208, %v3737, %v3924
        %v3927 = vunpack.c.l.s4 1983009808
        %v3928 = vunpack.c.0.s8 %v3927
        %v3929 = vperm.slane %v3923, %v3928
        %v3931 = vunpack.c.l.s4 1983009808
        %v3932 = vunpack.c.0.s8 %v3931
        %v3933 = vperm.slane %v3925, %v3932
        %v3934 = vrot.slane %v3929, 4
        %v3935 = vsel %vm1208, %v3934, %v3917
        %v3936 = vrot.slane %v3917, 4
        %v3937 = vsel %vm1208, %v3929, %v3936
        %v3939 = vunpack.c.l.s4 1934713408
        %v3940 = vunpack.c.0.s8 %v3939
        %v3941 = vperm.slane %v3935, %v3940
        %v3943 = vunpack.c.l.s4 1934713408
        %v3944 = vunpack.c.0.s8 %v3943
        %v3945 = vperm.slane %v3937, %v3944
        %v3946 = vrot.slane %v3933, 4
        %v3947 = vsel %vm1208, %v3946, %v3921
        %v3948 = vrot.slane %v3921, 4
        %v3949 = vsel %vm1208, %v3933, %v3948
        %v3951 = vunpack.c.l.s4 1934713408
        %v3952 = vunpack.c.0.s8 %v3951
        %v3953 = vperm.slane %v3947, %v3952
        %v3955 = vunpack.c.l.s4 1934713408
        %v3956 = vunpack.c.0.s8 %v3955
        %v3957 = vperm.slane %v3949, %v3956
        %v3958 = vrot.slane %v3941, 4
        %v3959 = vsel %vm1208, 0.0, %v3958
        %v3960 = vrot.slane %v3945, 4
        %v3961 = vsel %vm1208, 0.0, %v3960
        %v3962 = vrot.slane %v3953, 4
        %v3963 = vsel %vm1208, 0.0, %v3962
        %v3964 = vrot.slane %v3957, 4
        %v3965 = vsel %vm1208, 0.0, %v3964
        %v3966 = vsel %vm1208, %v3792, %v3773
        %v3968 = vunpack.c.l.s4 1983009808
        %v3969 = vunpack.c.0.s8 %v3968
        %v3970 = vperm.slane %v3966, %v3969
        %v3971 = vrot.slane %v3793, 4
        %v3972 = vsel %vm1208, %v3971, %v3791
        %v3974 = vunpack.c.l.s4 1983009808
        %v3975 = vunpack.c.0.s8 %v3974
        %v3976 = vperm.slane %v3972, %v3975
        %v3977 = vsel %vm1208, %v3796, %v3785
        %v3979 = vunpack.c.l.s4 1983009808
        %v3980 = vunpack.c.0.s8 %v3979
        %v3981 = vperm.slane %v3977, %v3980
        %v3982 = vrot.slane %v3797, 4
        %v3983 = vsel %vm1208, %v3982, %v3795
        %v3985 = vunpack.c.l.s4 1983009808
        %v3986 = vunpack.c.0.s8 %v3985
        %v3987 = vperm.slane %v3983, %v3986
        %v3988 = vrot.slane %v3976, 4
        %v3989 = vsel %vm1208, %v3988, %v3970
        %v3990 = vrot.slane %v3970, 4
        %v3991 = vsel %vm1208, %v3976, %v3990
        %v3993 = vunpack.c.l.s4 1934713408
        %v3994 = vunpack.c.0.s8 %v3993
        %v3995 = vperm.slane %v3989, %v3994
        %v3997 = vunpack.c.l.s4 1934713408
        %v3998 = vunpack.c.0.s8 %v3997
        %v3999 = vperm.slane %v3991, %v3998
        %v4000 = vrot.slane %v3987, 4
        %v4001 = vsel %vm1208, %v4000, %v3981
        %v4002 = vrot.slane %v3981, 4
        %v4003 = vsel %vm1208, %v3987, %v4002
        %v4005 = vunpack.c.l.s4 1934713408
        %v4006 = vunpack.c.0.s8 %v4005
        %v4007 = vperm.slane %v4001, %v4006
        %v4009 = vunpack.c.l.s4 1934713408
        %v4010 = vunpack.c.0.s8 %v4009
        %v4011 = vperm.slane %v4003, %v4010
        %v4012 = vrot.slane %v4007, 4
        %v4013 = vsel %vm1208, %v4012, %v3995
        %v4014 = vrot.slane %v3995, 4
        %v4015 = vsel %vm1208, %v4007, %v4014
        %v4016 = vrot.slane %v4011, 4
        %v4017 = vsel %vm1208, %v4016, %v3999
        %v4018 = vrot.slane %v3999, 4
        %v4019 = vsel %vm1208, %v4011, %v4018
        %v4020 = vsel %vm1208, %v3848, %v3829
        %v4022 = vunpack.c.l.s4 1983009808
        %v4023 = vunpack.c.0.s8 %v4022
        %v4024 = vperm.slane %v4020, %v4023
        %v4025 = vrot.slane %v3849, 4
        %v4026 = vsel %vm1208, %v4025, %v3847
        %v4028 = vunpack.c.l.s4 1983009808
        %v4029 = vunpack.c.0.s8 %v4028
        %v4030 = vperm.slane %v4026, %v4029
        %v4031 = vsel %vm1208, %v3852, %v3841
        %v4033 = vunpack.c.l.s4 1983009808
        %v4034 = vunpack.c.0.s8 %v4033
        %v4035 = vperm.slane %v4031, %v4034
        %v4036 = vrot.slane %v3853, 4
        %v4037 = vsel %vm1208, %v4036, %v3851
        %v4039 = vunpack.c.l.s4 1983009808
        %v4040 = vunpack.c.0.s8 %v4039
        %v4041 = vperm.slane %v4037, %v4040
        %v4042 = vrot.slane %v4030, 4
        %v4043 = vsel %vm1208, %v4042, %v4024
        %v4044 = vrot.slane %v4024, 4
        %v4045 = vsel %vm1208, %v4030, %v4044
        %v4047 = vunpack.c.l.s4 1934713408
        %v4048 = vunpack.c.0.s8 %v4047
        %v4049 = vperm.slane %v4043, %v4048
        %v4051 = vunpack.c.l.s4 1934713408
        %v4052 = vunpack.c.0.s8 %v4051
        %v4053 = vperm.slane %v4045, %v4052
        %v4054 = vrot.slane %v4041, 4
        %v4055 = vsel %vm1208, %v4054, %v4035
        %v4056 = vrot.slane %v4035, 4
        %v4057 = vsel %vm1208, %v4041, %v4056
        %v4059 = vunpack.c.l.s4 1934713408
        %v4060 = vunpack.c.0.s8 %v4059
        %v4061 = vperm.slane %v4055, %v4060
        %v4063 = vunpack.c.l.s4 1934713408
        %v4064 = vunpack.c.0.s8 %v4063
        %v4065 = vperm.slane %v4057, %v4064
        %v4066 = vrot.slane %v4061, 4
        %v4067 = vsel %vm1208, %v4066, %v4049
        %v4068 = vrot.slane %v4049, 4
        %v4069 = vsel %vm1208, %v4061, %v4068
        %v4070 = vrot.slane %v4065, 4
        %v4071 = vsel %vm1208, %v4070, %v4053
        %v4072 = vrot.slane %v4053, 4
        %v4073 = vsel %vm1208, %v4065, %v4072
        %v4074 = vsel %vm1208, %v3904, %v3885
        %v4076 = vunpack.c.l.s4 1983009808
        %v4077 = vunpack.c.0.s8 %v4076
        %v4078 = vperm.slane %v4074, %v4077
        %v4079 = vrot.slane %v3905, 4
        %v4080 = vsel %vm1208, %v4079, %v3903
        %v4082 = vunpack.c.l.s4 1983009808
        %v4083 = vunpack.c.0.s8 %v4082
        %v4084 = vperm.slane %v4080, %v4083
        %v4085 = vsel %vm1208, %v3908, %v3897
        %v4087 = vunpack.c.l.s4 1983009808
        %v4088 = vunpack.c.0.s8 %v4087
        %v4089 = vperm.slane %v4085, %v4088
        %v4090 = vrot.slane %v3909, 4
        %v4091 = vsel %vm1208, %v4090, %v3907
        %v4093 = vunpack.c.l.s4 1983009808
        %v4094 = vunpack.c.0.s8 %v4093
        %v4095 = vperm.slane %v4091, %v4094
        %v4096 = vrot.slane %v4084, 4
        %v4097 = vsel %vm1208, %v4096, %v4078
        %v4098 = vrot.slane %v4078, 4
        %v4099 = vsel %vm1208, %v4084, %v4098
        %v4101 = vunpack.c.l.s4 1934713408
        %v4102 = vunpack.c.0.s8 %v4101
        %v4103 = vperm.slane %v4097, %v4102
        %v4105 = vunpack.c.l.s4 1934713408
        %v4106 = vunpack.c.0.s8 %v4105
        %v4107 = vperm.slane %v4099, %v4106
        %v4108 = vrot.slane %v4095, 4
        %v4109 = vsel %vm1208, %v4108, %v4089
        %v4110 = vrot.slane %v4089, 4
        %v4111 = vsel %vm1208, %v4095, %v4110
        %v4113 = vunpack.c.l.s4 1934713408
        %v4114 = vunpack.c.0.s8 %v4113
        %v4115 = vperm.slane %v4109, %v4114
        %v4117 = vunpack.c.l.s4 1934713408
        %v4118 = vunpack.c.0.s8 %v4117
        %v4119 = vperm.slane %v4111, %v4118
        %v4120 = vrot.slane %v4115, 4
        %v4121 = vsel %vm1208, %v4120, %v4103
        %v4122 = vrot.slane %v4103, 4
        %v4123 = vsel %vm1208, %v4115, %v4122
        %v4124 = vrot.slane %v4119, 4
        %v4125 = vsel %vm1208, %v4124, %v4107
        %v4126 = vrot.slane %v4107, 4
        %v4127 = vsel %vm1208, %v4119, %v4126
        %v4128 = vsel %vm1208, %v3960, %v3941
        %v4130 = vunpack.c.l.s4 1983009808
        %v4131 = vunpack.c.0.s8 %v4130
        %v4132 = vperm.slane %v4128, %v4131
        %v4133 = vrot.slane %v3961, 4
        %v4134 = vsel %vm1208, %v4133, %v3959
        %v4136 = vunpack.c.l.s4 1983009808
        %v4137 = vunpack.c.0.s8 %v4136
        %v4138 = vperm.slane %v4134, %v4137
        %v4139 = vsel %vm1208, %v3964, %v3953
        %v4141 = vunpack.c.l.s4 1983009808
        %v4142 = vunpack.c.0.s8 %v4141
        %v4143 = vperm.slane %v4139, %v4142
        %v4144 = vrot.slane %v3965, 4
        %v4145 = vsel %vm1208, %v4144, %v3963
        %v4147 = vunpack.c.l.s4 1983009808
        %v4148 = vunpack.c.0.s8 %v4147
        %v4149 = vperm.slane %v4145, %v4148
        %v4150 = vrot.slane %v4138, 4
        %v4151 = vsel %vm1208, %v4150, %v4132
        %v4152 = vrot.slane %v4132, 4
        %v4153 = vsel %vm1208, %v4138, %v4152
        %v4155 = vunpack.c.l.s4 1934713408
        %v4156 = vunpack.c.0.s8 %v4155
        %v4157 = vperm.slane %v4151, %v4156
        %v4159 = vunpack.c.l.s4 1934713408
        %v4160 = vunpack.c.0.s8 %v4159
        %v4161 = vperm.slane %v4153, %v4160
        %v4162 = vrot.slane %v4149, 4
        %v4163 = vsel %vm1208, %v4162, %v4143
        %v4164 = vrot.slane %v4143, 4
        %v4165 = vsel %vm1208, %v4149, %v4164
        %v4167 = vunpack.c.l.s4 1934713408
        %v4168 = vunpack.c.0.s8 %v4167
        %v4169 = vperm.slane %v4163, %v4168
        %v4171 = vunpack.c.l.s4 1934713408
        %v4172 = vunpack.c.0.s8 %v4171
        %v4173 = vperm.slane %v4165, %v4172
        %v4174 = vrot.slane %v4169, 4
        %v4175 = vsel %vm1208, %v4174, %v4157
        %v4176 = vrot.slane %v4157, 4
        %v4177 = vsel %vm1208, %v4169, %v4176
        %v4178 = vrot.slane %v4173, 4
        %v4179 = vsel %vm1208, %v4178, %v4161
        %v4180 = vrot.slane %v4161, 4
        %v4181 = vsel %vm1208, %v4173, %v4180
        %v4182 = vpack.c.bf16 %v3161, %v3161
        %v4183 = vpack.c.bf16 %v3163, %v3163
        %v4184 = vpack.c.bf16 %v3165, %v3165
        %v4185 = vpack.c.bf16 %v3167, %v3167
        %v4186 = vpack.c.bf16 %v3215, %v3215
        %v4187 = vpack.c.bf16 %v3217, %v3217
        %v4188 = vpack.c.bf16 %v3219, %v3219
        %v4189 = vpack.c.bf16 %v3221, %v3221
        %v4190 = vpack.c.bf16 %v3533, %v3533
        %v4191 = vpack.c.bf16 %v3587, %v3587
        %v4192 = vpack.c.bf16 %v3535, %v3535
        %v4193 = vpack.c.bf16 %v3589, %v3589
        %v4194 = vpack.c.bf16 %v3537, %v3537
        %v4195 = vpack.c.bf16 %v3591, %v3591
        %v4196 = vpack.c.bf16 %v3539, %v3539
        %v4197 = vpack.c.bf16 %v3593, %v3593
        %v4198 = vpack.c.bf16 %v3641, %v3641
        %v4199 = vpack.c.bf16 %v3695, %v3695
        %v4200 = vpack.c.bf16 %v3643, %v3643
        %v4201 = vpack.c.bf16 %v3697, %v3697
        %v4202 = vpack.c.bf16 %v3645, %v3645
        %v4203 = vpack.c.bf16 %v3699, %v3699
        %v4204 = vpack.c.bf16 %v3647, %v3647
        %v4205 = vpack.c.bf16 %v3701, %v3701
        %v4208 = vunpack.c.l.b16 %v4190
        %v4209 = vunpack.c.l.b16 %v4191
        %v4210 = vpack.c.b16 %v4209, %v4208
        %v4212 = vsel %vm1924, %v4182, 0
        %v4215 = vsel %vm1924, %v4210, 0
        %4217 = vmatpush.bf16.xpose.msra.mxu0 0
        %4218 = vmatpush.bf16.xpose.msra.mxu0 0
        %4219 = vmatpush.bf16.xpose.msra.mxu0 0
        %4220 = vmatpush.bf16.xpose.msra.mxu0 0
        %4221 = vmatpush.bf16.xpose.msra.mxu0 0
        %4222 = vmatpush.bf16.xpose.msra.mxu0 0
        %4223 = vmatpush.bf16.xpose.msra.mxu0 0
        %4224 = vmatpush.bf16.xpose.msra.mxu0 %v4215
        %4225 = vmatmul.bf16.gmra.mxu0 %v4212
        %v4226 = vpop.f32.mrf.mxu0
        %v4227 = vadd.f32 0.0, %v4226
        %v4228 = vpop.f32.mrf.mxu0
        %4229 = vdwg.mxu0
        %v4232 = vunpack.c.l.b16 %v4192
        %v4233 = vunpack.c.l.b16 %v4193
        %v4234 = vpack.c.b16 %v4233, %v4232
        %v4236 = vsel %vm1924, %v4183, 0
        %v4239 = vsel %vm1924, %v4234, 0
        %4241 = vmatpush.bf16.xpose.msra.mxu0 0
        %4242 = vmatpush.bf16.xpose.msra.mxu0 0
        %4243 = vmatpush.bf16.xpose.msra.mxu0 0
        %4244 = vmatpush.bf16.xpose.msra.mxu0 0
        %4245 = vmatpush.bf16.xpose.msra.mxu0 0
        %4246 = vmatpush.bf16.xpose.msra.mxu0 0
        %4247 = vmatpush.bf16.xpose.msra.mxu0 0
        %4248 = vmatpush.bf16.xpose.msra.mxu0 %v4239
        %4249 = vmatmul.bf16.gmra.mxu0 %v4236
        %v4250 = vpop.f32.mrf.mxu0
        %v4251 = vadd.f32 0.0, %v4250
        %v4252 = vpop.f32.mrf.mxu0
        %4253 = vdwg.mxu0
        %v4256 = vunpack.c.l.b16 %v4194
        %v4257 = vunpack.c.l.b16 %v4195
        %v4258 = vpack.c.b16 %v4257, %v4256
        %v4260 = vsel %vm1924, %v4184, 0
        %v4263 = vsel %vm1924, %v4258, 0
        %4265 = vmatpush.bf16.xpose.msra.mxu0 0
        %4266 = vmatpush.bf16.xpose.msra.mxu0 0
        %4267 = vmatpush.bf16.xpose.msra.mxu0 0
        %4268 = vmatpush.bf16.xpose.msra.mxu0 0
        %4269 = vmatpush.bf16.xpose.msra.mxu0 0
        %4270 = vmatpush.bf16.xpose.msra.mxu0 0
        %4271 = vmatpush.bf16.xpose.msra.mxu0 0
        %4272 = vmatpush.bf16.xpose.msra.mxu0 %v4263
        %4273 = vmatmul.bf16.gmra.mxu0 %v4260
        %v4274 = vpop.f32.mrf.mxu0
        %v4275 = vadd.f32 0.0, %v4274
        %v4276 = vpop.f32.mrf.mxu0
        %4277 = vdwg.mxu0
        %v4280 = vunpack.c.l.b16 %v4196
        %v4281 = vunpack.c.l.b16 %v4197
        %v4282 = vpack.c.b16 %v4281, %v4280
        %v4284 = vsel %vm1924, %v4185, 0
        %v4287 = vsel %vm1924, %v4282, 0
        %4289 = vmatpush.bf16.xpose.msra.mxu0 0
        %4290 = vmatpush.bf16.xpose.msra.mxu0 0
        %4291 = vmatpush.bf16.xpose.msra.mxu0 0
        %4292 = vmatpush.bf16.xpose.msra.mxu0 0
        %4293 = vmatpush.bf16.xpose.msra.mxu0 0
        %4294 = vmatpush.bf16.xpose.msra.mxu0 0
        %4295 = vmatpush.bf16.xpose.msra.mxu0 0
        %4296 = vmatpush.bf16.xpose.msra.mxu0 %v4287
        %4297 = vmatmul.bf16.gmra.mxu0 %v4284
        %v4298 = vpop.f32.mrf.mxu0
        %v4299 = vadd.f32 0.0, %v4298
        %v4300 = vpop.f32.mrf.mxu0
        %4301 = vdwg.mxu0
        %v4304 = vunpack.c.l.b16 %v4198
        %v4305 = vunpack.c.l.b16 %v4199
        %v4306 = vpack.c.b16 %v4305, %v4304
        %v4308 = vsel %vm1924, %v4186, 0
        %v4311 = vsel %vm1924, %v4306, 0
        %4313 = vmatpush.bf16.xpose.msra.mxu0 0
        %4314 = vmatpush.bf16.xpose.msra.mxu0 0
        %4315 = vmatpush.bf16.xpose.msra.mxu0 0
        %4316 = vmatpush.bf16.xpose.msra.mxu0 0
        %4317 = vmatpush.bf16.xpose.msra.mxu0 0
        %4318 = vmatpush.bf16.xpose.msra.mxu0 0
        %4319 = vmatpush.bf16.xpose.msra.mxu0 0
        %4320 = vmatpush.bf16.xpose.msra.mxu0 %v4311
        %4321 = vmatmul.bf16.gmra.mxu0 %v4308
        %v4322 = vpop.f32.mrf.mxu0
        %v4323 = vadd.f32 0.0, %v4322
        %v4324 = vpop.f32.mrf.mxu0
        %4325 = vdwg.mxu0
        %v4328 = vunpack.c.l.b16 %v4200
        %v4329 = vunpack.c.l.b16 %v4201
        %v4330 = vpack.c.b16 %v4329, %v4328
        %v4332 = vsel %vm1924, %v4187, 0
        %v4335 = vsel %vm1924, %v4330, 0
        %4337 = vmatpush.bf16.xpose.msra.mxu0 0
        %4338 = vmatpush.bf16.xpose.msra.mxu0 0
        %4339 = vmatpush.bf16.xpose.msra.mxu0 0
        %4340 = vmatpush.bf16.xpose.msra.mxu0 0
        %4341 = vmatpush.bf16.xpose.msra.mxu0 0
        %4342 = vmatpush.bf16.xpose.msra.mxu0 0
        %4343 = vmatpush.bf16.xpose.msra.mxu0 0
        %4344 = vmatpush.bf16.xpose.msra.mxu0 %v4335
        %4345 = vmatmul.bf16.gmra.mxu0 %v4332
        %v4346 = vpop.f32.mrf.mxu0
        %v4347 = vadd.f32 0.0, %v4346
        %v4348 = vpop.f32.mrf.mxu0
        %4349 = vdwg.mxu0
        %v4352 = vunpack.c.l.b16 %v4202
        %v4353 = vunpack.c.l.b16 %v4203
        %v4354 = vpack.c.b16 %v4353, %v4352
        %v4356 = vsel %vm1924, %v4188, 0
        %v4359 = vsel %vm1924, %v4354, 0
        %4361 = vmatpush.bf16.xpose.msra.mxu0 0
        %4362 = vmatpush.bf16.xpose.msra.mxu0 0
        %4363 = vmatpush.bf16.xpose.msra.mxu0 0
        %4364 = vmatpush.bf16.xpose.msra.mxu0 0
        %4365 = vmatpush.bf16.xpose.msra.mxu0 0
        %4366 = vmatpush.bf16.xpose.msra.mxu0 0
        %4367 = vmatpush.bf16.xpose.msra.mxu0 0
        %4368 = vmatpush.bf16.xpose.msra.mxu0 %v4359
        %4369 = vmatmul.bf16.gmra.mxu0 %v4356
        %v4370 = vpop.f32.mrf.mxu0
        %v4371 = vadd.f32 0.0, %v4370
        %v4372 = vpop.f32.mrf.mxu0
        %4373 = vdwg.mxu0
        %v4376 = vunpack.c.l.b16 %v4204
        %v4377 = vunpack.c.l.b16 %v4205
        %v4378 = vpack.c.b16 %v4377, %v4376
        %v4380 = vsel %vm1924, %v4189, 0
        %v4383 = vsel %vm1924, %v4378, 0
        %4385 = vmatpush.bf16.xpose.msra.mxu0 0
        %4386 = vmatpush.bf16.xpose.msra.mxu0 0
        %4387 = vmatpush.bf16.xpose.msra.mxu0 0
        %4388 = vmatpush.bf16.xpose.msra.mxu0 0
        %4389 = vmatpush.bf16.xpose.msra.mxu0 0
        %4390 = vmatpush.bf16.xpose.msra.mxu0 0
        %4391 = vmatpush.bf16.xpose.msra.mxu0 0
        %4392 = vmatpush.bf16.xpose.msra.mxu0 %v4383
        %4393 = vmatmul.bf16.gmra.mxu0 %v4380
        %v4394 = vpop.f32.mrf.mxu0
        %v4395 = vadd.f32 0.0, %v4394
        %v4396 = vpop.f32.mrf.mxu0
        %4397 = vdwg.mxu0
        %vm4398 = vcmask 130048
        %v4399 = vsel %vm4398, %v4227, -inf
        %4400 = vmax.xlane.f32.xlu0 %v4399
        %v4401 = vpop.xlane.xlu0 %4400
        %v4402 = vsel %vm4398, %v4251, -inf
        %4403 = vmax.xlane.f32.xlu0 %v4402
        %v4404 = vpop.xlane.xlu0 %4403
        %v4405 = vsel %vm4398, %v4275, -inf
        %4406 = vmax.xlane.f32.xlu0 %v4405
        %v4407 = vpop.xlane.xlu0 %4406
        %v4408 = vsel %vm4398, %v4299, -inf
        %4409 = vmax.xlane.f32.xlu0 %v4408
        %v4410 = vpop.xlane.xlu0 %4409
        %v4411 = vsel %vm4398, %v4323, -inf
        %4412 = vmax.xlane.f32.xlu0 %v4411
        %v4413 = vpop.xlane.xlu0 %4412
        %v4414 = vsel %vm4398, %v4347, -inf
        %4415 = vmax.xlane.f32.xlu0 %v4414
        %v4416 = vpop.xlane.xlu0 %4415
        %v4417 = vsel %vm4398, %v4371, -inf
        %4418 = vmax.xlane.f32.xlu0 %v4417
        %v4419 = vpop.xlane.xlu0 %4418
        %v4420 = vsel %vm4398, %v4395, -inf
        %4421 = vmax.xlane.f32.xlu0 %v4420
        %v4422 = vpop.xlane.xlu0 %4421
        %v4423 = vsub.f32 %v4227, %v4401
        %v4424 = vsub.f32 %v4251, %v4404
        %v4425 = vsub.f32 %v4275, %v4407
        %v4426 = vsub.f32 %v4299, %v4410
        %v4427 = vsub.f32 %v4323, %v4413
        %v4428 = vsub.f32 %v4347, %v4416
        %v4429 = vsub.f32 %v4371, %v4419
        %v4430 = vsub.f32 %v4395, %v4422
        %v4431 = vmul.f32 %v4423, 1.442695
        %v4432 = vpow.pop %v4431
        %v4433 = vmul.f32 %v4424, 1.442695
        %v4434 = vpow.pop %v4433
        %v4435 = vmul.f32 %v4425, 1.442695
        %v4436 = vpow.pop %v4435
        %v4437 = vmul.f32 %v4426, 1.442695
        %v4438 = vpow.pop %v4437
        %v4439 = vmul.f32 %v4427, 1.442695
        %v4440 = vpow.pop %v4439
        %v4441 = vmul.f32 %v4428, 1.442695
        %v4442 = vpow.pop %v4441
        %v4443 = vmul.f32 %v4429, 1.442695
        %v4444 = vpow.pop %v4443
        %v4445 = vmul.f32 %v4430, 1.442695
        %v4446 = vpow.pop %v4445
        %v4447 = vsel %vm4398, %v4432, 0.0
        %4448 = vadd.xlane.f32.xlu0 %v4447
        %v4449 = vpop.xlane.xlu0 %4448
        %v4450 = vsel %vm4398, %v4434, 0.0
        %4451 = vadd.xlane.f32.xlu0 %v4450
        %v4452 = vpop.xlane.xlu0 %4451
        %v4453 = vsel %vm4398, %v4436, 0.0
        %4454 = vadd.xlane.f32.xlu0 %v4453
        %v4455 = vpop.xlane.xlu0 %4454
        %v4456 = vsel %vm4398, %v4438, 0.0
        %4457 = vadd.xlane.f32.xlu0 %v4456
        %v4458 = vpop.xlane.xlu0 %4457
        %v4459 = vsel %vm4398, %v4440, 0.0
        %4460 = vadd.xlane.f32.xlu0 %v4459
        %v4461 = vpop.xlane.xlu0 %4460
        %v4462 = vsel %vm4398, %v4442, 0.0
        %4463 = vadd.xlane.f32.xlu0 %v4462
        %v4464 = vpop.xlane.xlu0 %4463
        %v4465 = vsel %vm4398, %v4444, 0.0
        %4466 = vadd.xlane.f32.xlu0 %v4465
        %v4467 = vpop.xlane.xlu0 %4466
        %v4468 = vsel %vm4398, %v4446, 0.0
        %4469 = vadd.xlane.f32.xlu0 %v4468
        %v4470 = vpop.xlane.xlu0 %4469
        %v4471 = vrcp.pop %v4449
        %v4472 = vrcp.pop %v4452
        %v4473 = vrcp.pop %v4455
        %v4474 = vrcp.pop %v4458
        %v4475 = vrcp.pop %v4461
        %v4476 = vrcp.pop %v4464
        %v4477 = vrcp.pop %v4467
        %v4478 = vrcp.pop %v4470
        %v4479 = vmul.f32 %v4432, %v4471
        %v4480 = vmul.f32 %v4434, %v4472
        %v4481 = vmul.f32 %v4436, %v4473
        %v4482 = vmul.f32 %v4438, %v4474
        %v4483 = vmul.f32 %v4440, %v4475
        %v4484 = vmul.f32 %v4442, %v4476
        %v4485 = vmul.f32 %v4444, %v4477
        %v4486 = vmul.f32 %v4446, %v4478
        %v4487 = vpack.c.bf16 %v4479, %v4479
        %v4488 = vpack.c.bf16 %v4480, %v4480
        %v4489 = vpack.c.bf16 %v4481, %v4481
        %v4490 = vpack.c.bf16 %v4482, %v4482
        %v4491 = vpack.c.bf16 %v4483, %v4483
        %v4492 = vpack.c.bf16 %v4484, %v4484
        %v4493 = vpack.c.bf16 %v4485, %v4485
        %v4494 = vpack.c.bf16 %v4486, %v4486
        %v4495 = vpack.c.bf16 %v4013, %v4013
        %v4496 = vpack.c.bf16 %v4067, %v4067
        %v4497 = vpack.c.bf16 %v4015, %v4015
        %v4498 = vpack.c.bf16 %v4069, %v4069
        %v4499 = vpack.c.bf16 %v4017, %v4017
        %v4500 = vpack.c.bf16 %v4071, %v4071
        %v4501 = vpack.c.bf16 %v4019, %v4019
        %v4502 = vpack.c.bf16 %v4073, %v4073
        %v4503 = vpack.c.bf16 %v4121, %v4121
        %v4504 = vpack.c.bf16 %v4175, %v4175
        %v4505 = vpack.c.bf16 %v4123, %v4123
        %v4506 = vpack.c.bf16 %v4177, %v4177
        %v4507 = vpack.c.bf16 %v4125, %v4125
        %v4508 = vpack.c.bf16 %v4179, %v4179
        %v4509 = vpack.c.bf16 %v4127, %v4127
        %v4510 = vpack.c.bf16 %v4181, %v4181
        %v4513 = vunpack.c.l.b16 %v4495
        %v4514 = vunpack.c.l.b16 %v4496
        %v4515 = vpack.c.b16 %v4514, %v4513
        %v4518 = vsel %vm4398, %v4487, 0
        %4520 = vmatpush.bf16.msra.mxu0 0
        %4521 = vmatpush.bf16.msra.mxu0 0
        %4522 = vmatpush.bf16.msra.mxu0 0
        %4523 = vmatpush.bf16.msra.mxu0 0
        %4524 = vmatpush.bf16.msra.mxu0 0
        %4525 = vmatpush.bf16.msra.mxu0 0
        %4526 = vmatpush.bf16.msra.mxu0 0
        %4527 = vmatpush.bf16.msra.mxu0 %v4515
        %4528 = vmatmul.bf16.gmra.mxu0 %v4518
        %v4529 = vpop.f32.mrf.mxu0
        %v4530 = vadd.f32 0.0, %v4529
        %v4531 = vpop.f32.mrf.mxu0
        %4532 = vdwg.mxu0
        %v4535 = vunpack.c.l.b16 %v4497
        %v4536 = vunpack.c.l.b16 %v4498
        %v4537 = vpack.c.b16 %v4536, %v4535
        %v4540 = vsel %vm4398, %v4488, 0
        %4542 = vmatpush.bf16.msra.mxu0 0
        %4543 = vmatpush.bf16.msra.mxu0 0
        %4544 = vmatpush.bf16.msra.mxu0 0
        %4545 = vmatpush.bf16.msra.mxu0 0
        %4546 = vmatpush.bf16.msra.mxu0 0
        %4547 = vmatpush.bf16.msra.mxu0 0
        %4548 = vmatpush.bf16.msra.mxu0 0
        %4549 = vmatpush.bf16.msra.mxu0 %v4537
        %4550 = vmatmul.bf16.gmra.mxu0 %v4540
        %v4551 = vpop.f32.mrf.mxu0
        %v4552 = vadd.f32 0.0, %v4551
        %v4553 = vpop.f32.mrf.mxu0
        %4554 = vdwg.mxu0
        %v4557 = vunpack.c.l.b16 %v4499
        %v4558 = vunpack.c.l.b16 %v4500
        %v4559 = vpack.c.b16 %v4558, %v4557
        %v4562 = vsel %vm4398, %v4489, 0
        %4564 = vmatpush.bf16.msra.mxu0 0
        %4565 = vmatpush.bf16.msra.mxu0 0
        %4566 = vmatpush.bf16.msra.mxu0 0
        %4567 = vmatpush.bf16.msra.mxu0 0
        %4568 = vmatpush.bf16.msra.mxu0 0
        %4569 = vmatpush.bf16.msra.mxu0 0
        %4570 = vmatpush.bf16.msra.mxu0 0
        %4571 = vmatpush.bf16.msra.mxu0 %v4559
        %4572 = vmatmul.bf16.gmra.mxu0 %v4562
        %v4573 = vpop.f32.mrf.mxu0
        %v4574 = vadd.f32 0.0, %v4573
        %v4575 = vpop.f32.mrf.mxu0
        %4576 = vdwg.mxu0
        %v4579 = vunpack.c.l.b16 %v4501
        %v4580 = vunpack.c.l.b16 %v4502
        %v4581 = vpack.c.b16 %v4580, %v4579
        %v4584 = vsel %vm4398, %v4490, 0
        %4586 = vmatpush.bf16.msra.mxu0 0
        %4587 = vmatpush.bf16.msra.mxu0 0
        %4588 = vmatpush.bf16.msra.mxu0 0
        %4589 = vmatpush.bf16.msra.mxu0 0
        %4590 = vmatpush.bf16.msra.mxu0 0
        %4591 = vmatpush.bf16.msra.mxu0 0
        %4592 = vmatpush.bf16.msra.mxu0 0
        %4593 = vmatpush.bf16.msra.mxu0 %v4581
        %4594 = vmatmul.bf16.gmra.mxu0 %v4584
        %v4595 = vpop.f32.mrf.mxu0
        %v4596 = vadd.f32 0.0, %v4595
        %v4597 = vpop.f32.mrf.mxu0
        %4598 = vdwg.mxu0
        %v4601 = vunpack.c.l.b16 %v4503
        %v4602 = vunpack.c.l.b16 %v4504
        %v4603 = vpack.c.b16 %v4602, %v4601
        %v4606 = vsel %vm4398, %v4491, 0
        %4608 = vmatpush.bf16.msra.mxu0 0
        %4609 = vmatpush.bf16.msra.mxu0 0
        %4610 = vmatpush.bf16.msra.mxu0 0
        %4611 = vmatpush.bf16.msra.mxu0 0
        %4612 = vmatpush.bf16.msra.mxu0 0
        %4613 = vmatpush.bf16.msra.mxu0 0
        %4614 = vmatpush.bf16.msra.mxu0 0
        %4615 = vmatpush.bf16.msra.mxu0 %v4603
        %4616 = vmatmul.bf16.gmra.mxu0 %v4606
        %v4617 = vpop.f32.mrf.mxu0
        %v4618 = vadd.f32 0.0, %v4617
        %v4619 = vpop.f32.mrf.mxu0
        %4620 = vdwg.mxu0
        %v4623 = vunpack.c.l.b16 %v4505
        %v4624 = vunpack.c.l.b16 %v4506
        %v4625 = vpack.c.b16 %v4624, %v4623
        %v4628 = vsel %vm4398, %v4492, 0
        %4630 = vmatpush.bf16.msra.mxu0 0
        %4631 = vmatpush.bf16.msra.mxu0 0
        %4632 = vmatpush.bf16.msra.mxu0 0
        %4633 = vmatpush.bf16.msra.mxu0 0
        %4634 = vmatpush.bf16.msra.mxu0 0
        %4635 = vmatpush.bf16.msra.mxu0 0
        %4636 = vmatpush.bf16.msra.mxu0 0
        %4637 = vmatpush.bf16.msra.mxu0 %v4625
        %4638 = vmatmul.bf16.gmra.mxu0 %v4628
        %v4639 = vpop.f32.mrf.mxu0
        %v4640 = vadd.f32 0.0, %v4639
        %v4641 = vpop.f32.mrf.mxu0
        %4642 = vdwg.mxu0
        %v4645 = vunpack.c.l.b16 %v4507
        %v4646 = vunpack.c.l.b16 %v4508
        %v4647 = vpack.c.b16 %v4646, %v4645
        %v4650 = vsel %vm4398, %v4493, 0
        %4652 = vmatpush.bf16.msra.mxu0 0
        %4653 = vmatpush.bf16.msra.mxu0 0
        %4654 = vmatpush.bf16.msra.mxu0 0
        %4655 = vmatpush.bf16.msra.mxu0 0
        %4656 = vmatpush.bf16.msra.mxu0 0
        %4657 = vmatpush.bf16.msra.mxu0 0
        %4658 = vmatpush.bf16.msra.mxu0 0
        %4659 = vmatpush.bf16.msra.mxu0 %v4647
        %4660 = vmatmul.bf16.gmra.mxu0 %v4650
        %v4661 = vpop.f32.mrf.mxu0
        %v4662 = vadd.f32 0.0, %v4661
        %v4663 = vpop.f32.mrf.mxu0
        %4664 = vdwg.mxu0
        %v4667 = vunpack.c.l.b16 %v4509
        %v4668 = vunpack.c.l.b16 %v4510
        %v4669 = vpack.c.b16 %v4668, %v4667
        %v4672 = vsel %vm4398, %v4494, 0
        %4674 = vmatpush.bf16.msra.mxu0 0
        %4675 = vmatpush.bf16.msra.mxu0 0
        %4676 = vmatpush.bf16.msra.mxu0 0
        %4677 = vmatpush.bf16.msra.mxu0 0
        %4678 = vmatpush.bf16.msra.mxu0 0
        %4679 = vmatpush.bf16.msra.mxu0 0
        %4680 = vmatpush.bf16.msra.mxu0 0
        %4681 = vmatpush.bf16.msra.mxu0 %v4669
        %4682 = vmatmul.bf16.gmra.mxu0 %v4672
        %v4683 = vpop.f32.mrf.mxu0
        %v4684 = vadd.f32 0.0, %v4683
        %v4685 = vpop.f32.mrf.mxu0
        %4686 = vdwg.mxu0
        %v4687 = vrot.slane %v4574, 4
        %v4688 = vsel %vm1208, %v4687, %v4530
        %v4689 = vrot.slane %v4530, 4
        %v4690 = vsel %vm1208, %v4574, %v4689
        %v4692 = vunpack.c.l.s4 1983009808
        %v4693 = vunpack.c.0.s8 %v4692
        %v4694 = vperm.slane %v4688, %v4693
        %v4696 = vunpack.c.l.s4 1983009808
        %v4697 = vunpack.c.0.s8 %v4696
        %v4698 = vperm.slane %v4690, %v4697
        %v4699 = vrot.slane %v4596, 4
        %v4700 = vsel %vm1208, %v4699, %v4552
        %v4701 = vrot.slane %v4552, 4
        %v4702 = vsel %vm1208, %v4596, %v4701
        %v4704 = vunpack.c.l.s4 1983009808
        %v4705 = vunpack.c.0.s8 %v4704
        %v4706 = vperm.slane %v4700, %v4705
        %v4708 = vunpack.c.l.s4 1983009808
        %v4709 = vunpack.c.0.s8 %v4708
        %v4710 = vperm.slane %v4702, %v4709
        %v4711 = vrot.slane %v4706, 4
        %v4712 = vsel %vm1208, %v4711, %v4694
        %v4713 = vrot.slane %v4694, 4
        %v4714 = vsel %vm1208, %v4706, %v4713
        %v4716 = vunpack.c.l.s4 1934713408
        %v4717 = vunpack.c.0.s8 %v4716
        %v4718 = vperm.slane %v4712, %v4717
        %v4720 = vunpack.c.l.s4 1934713408
        %v4721 = vunpack.c.0.s8 %v4720
        %v4722 = vperm.slane %v4714, %v4721
        %v4723 = vrot.slane %v4710, 4
        %v4724 = vsel %vm1208, %v4723, %v4698
        %v4725 = vrot.slane %v4698, 4
        %v4726 = vsel %vm1208, %v4710, %v4725
        %v4728 = vunpack.c.l.s4 1934713408
        %v4729 = vunpack.c.0.s8 %v4728
        %v4730 = vperm.slane %v4724, %v4729
        %v4732 = vunpack.c.l.s4 1934713408
        %v4733 = vunpack.c.0.s8 %v4732
        %v4734 = vperm.slane %v4726, %v4733
        %v4735 = vrot.slane %v4718, 4
        %v4736 = vsel %vm1208, 0.0, %v4735
        %v4737 = vrot.slane %v4722, 4
        %v4738 = vsel %vm1208, 0.0, %v4737
        %v4739 = vrot.slane %v4730, 4
        %v4740 = vsel %vm1208, 0.0, %v4739
        %v4741 = vrot.slane %v4734, 4
        %v4742 = vsel %vm1208, 0.0, %v4741
        %v4743 = vrot.slane %v4662, 4
        %v4744 = vsel %vm1208, %v4743, %v4618
        %v4745 = vrot.slane %v4618, 4
        %v4746 = vsel %vm1208, %v4662, %v4745
        %v4748 = vunpack.c.l.s4 1983009808
        %v4749 = vunpack.c.0.s8 %v4748
        %v4750 = vperm.slane %v4744, %v4749
        %v4752 = vunpack.c.l.s4 1983009808
        %v4753 = vunpack.c.0.s8 %v4752
        %v4754 = vperm.slane %v4746, %v4753
        %v4755 = vrot.slane %v4684, 4
        %v4756 = vsel %vm1208, %v4755, %v4640
        %v4757 = vrot.slane %v4640, 4
        %v4758 = vsel %vm1208, %v4684, %v4757
        %v4760 = vunpack.c.l.s4 1983009808
        %v4761 = vunpack.c.0.s8 %v4760
        %v4762 = vperm.slane %v4756, %v4761
        %v4764 = vunpack.c.l.s4 1983009808
        %v4765 = vunpack.c.0.s8 %v4764
        %v4766 = vperm.slane %v4758, %v4765
        %v4767 = vrot.slane %v4762, 4
        %v4768 = vsel %vm1208, %v4767, %v4750
        %v4769 = vrot.slane %v4750, 4
        %v4770 = vsel %vm1208, %v4762, %v4769
        %v4772 = vunpack.c.l.s4 1934713408
        %v4773 = vunpack.c.0.s8 %v4772
        %v4774 = vperm.slane %v4768, %v4773
        %v4776 = vunpack.c.l.s4 1934713408
        %v4777 = vunpack.c.0.s8 %v4776
        %v4778 = vperm.slane %v4770, %v4777
        %v4779 = vrot.slane %v4766, 4
        %v4780 = vsel %vm1208, %v4779, %v4754
        %v4781 = vrot.slane %v4754, 4
        %v4782 = vsel %vm1208, %v4766, %v4781
        %v4784 = vunpack.c.l.s4 1934713408
        %v4785 = vunpack.c.0.s8 %v4784
        %v4786 = vperm.slane %v4780, %v4785
        %v4788 = vunpack.c.l.s4 1934713408
        %v4789 = vunpack.c.0.s8 %v4788
        %v4790 = vperm.slane %v4782, %v4789
        %v4791 = vrot.slane %v4774, 4
        %v4792 = vsel %vm1208, 0.0, %v4791
        %v4793 = vrot.slane %v4778, 4
        %v4794 = vsel %vm1208, 0.0, %v4793
        %v4795 = vrot.slane %v4786, 4
        %v4796 = vsel %vm1208, 0.0, %v4795
        %v4797 = vrot.slane %v4790, 4
        %v4798 = vsel %vm1208, 0.0, %v4797
        %v4799 = vsel %vm1208, %v4737, %v4718
        %v4801 = vunpack.c.l.s4 1983009808
        %v4802 = vunpack.c.0.s8 %v4801
        %v4803 = vperm.slane %v4799, %v4802
        %v4804 = vrot.slane %v4738, 4
        %v4805 = vsel %vm1208, %v4804, %v4736
        %v4807 = vunpack.c.l.s4 1983009808
        %v4808 = vunpack.c.0.s8 %v4807
        %v4809 = vperm.slane %v4805, %v4808
        %v4810 = vsel %vm1208, %v4741, %v4730
        %v4812 = vunpack.c.l.s4 1983009808
        %v4813 = vunpack.c.0.s8 %v4812
        %v4814 = vperm.slane %v4810, %v4813
        %v4815 = vrot.slane %v4742, 4
        %v4816 = vsel %vm1208, %v4815, %v4740
        %v4818 = vunpack.c.l.s4 1983009808
        %v4819 = vunpack.c.0.s8 %v4818
        %v4820 = vperm.slane %v4816, %v4819
        %v4821 = vrot.slane %v4809, 4
        %v4822 = vsel %vm1208, %v4821, %v4803
        %v4823 = vrot.slane %v4803, 4
        %v4824 = vsel %vm1208, %v4809, %v4823
        %v4826 = vunpack.c.l.s4 1934713408
        %v4827 = vunpack.c.0.s8 %v4826
        %v4828 = vperm.slane %v4822, %v4827
        %v4830 = vunpack.c.l.s4 1934713408
        %v4831 = vunpack.c.0.s8 %v4830
        %v4832 = vperm.slane %v4824, %v4831
        %v4833 = vrot.slane %v4820, 4
        %v4834 = vsel %vm1208, %v4833, %v4814
        %v4835 = vrot.slane %v4814, 4
        %v4836 = vsel %vm1208, %v4820, %v4835
        %v4838 = vunpack.c.l.s4 1934713408
        %v4839 = vunpack.c.0.s8 %v4838
        %v4840 = vperm.slane %v4834, %v4839
        %v4842 = vunpack.c.l.s4 1934713408
        %v4843 = vunpack.c.0.s8 %v4842
        %v4844 = vperm.slane %v4836, %v4843
        %v4845 = vrot.slane %v4840, 4
        %v4846 = vsel %vm1208, %v4845, %v4828
        %v4847 = vrot.slane %v4828, 4
        %v4848 = vsel %vm1208, %v4840, %v4847
        %v4849 = vrot.slane %v4844, 4
        %v4850 = vsel %vm1208, %v4849, %v4832
        %v4851 = vrot.slane %v4832, 4
        %v4852 = vsel %vm1208, %v4844, %v4851
        %v4853 = vsel %vm1208, %v4793, %v4774
        %v4855 = vunpack.c.l.s4 1983009808
        %v4856 = vunpack.c.0.s8 %v4855
        %v4857 = vperm.slane %v4853, %v4856
        %v4858 = vrot.slane %v4794, 4
        %v4859 = vsel %vm1208, %v4858, %v4792
        %v4861 = vunpack.c.l.s4 1983009808
        %v4862 = vunpack.c.0.s8 %v4861
        %v4863 = vperm.slane %v4859, %v4862
        %v4864 = vsel %vm1208, %v4797, %v4786
        %v4866 = vunpack.c.l.s4 1983009808
        %v4867 = vunpack.c.0.s8 %v4866
        %v4868 = vperm.slane %v4864, %v4867
        %v4869 = vrot.slane %v4798, 4
        %v4870 = vsel %vm1208, %v4869, %v4796
        %v4872 = vunpack.c.l.s4 1983009808
        %v4873 = vunpack.c.0.s8 %v4872
        %v4874 = vperm.slane %v4870, %v4873
        %v4875 = vrot.slane %v4863, 4
        %v4876 = vsel %vm1208, %v4875, %v4857
        %v4877 = vrot.slane %v4857, 4
        %v4878 = vsel %vm1208, %v4863, %v4877
        %v4880 = vunpack.c.l.s4 1934713408
        %v4881 = vunpack.c.0.s8 %v4880
        %v4882 = vperm.slane %v4876, %v4881
        %v4884 = vunpack.c.l.s4 1934713408
        %v4885 = vunpack.c.0.s8 %v4884
        %v4886 = vperm.slane %v4878, %v4885
        %v4887 = vrot.slane %v4874, 4
        %v4888 = vsel %vm1208, %v4887, %v4868
        %v4889 = vrot.slane %v4868, 4
        %v4890 = vsel %vm1208, %v4874, %v4889
        %v4892 = vunpack.c.l.s4 1934713408
        %v4893 = vunpack.c.0.s8 %v4892
        %v4894 = vperm.slane %v4888, %v4893
        %v4896 = vunpack.c.l.s4 1934713408
        %v4897 = vunpack.c.0.s8 %v4896
        %v4898 = vperm.slane %v4890, %v4897
        %v4899 = vrot.slane %v4894, 4
        %v4900 = vsel %vm1208, %v4899, %v4882
        %v4901 = vrot.slane %v4882, 4
        %v4902 = vsel %vm1208, %v4894, %v4901
        %v4903 = vrot.slane %v4898, 4
        %v4904 = vsel %vm1208, %v4903, %v4886
        %v4905 = vrot.slane %v4886, 4
        %v4906 = vsel %vm1208, %v4898, %v4905
        %4909 = vrot.lane.b32.xlu0 %v4848, 32
        %v4910 = vpop.permute.xlu0 %4909
        %4911 = vrot.lane.b32.xlu0 %v4902, 32
        %v4912 = vpop.permute.xlu0 %4911
        %4917 = vrot.lane.b32.xlu0 %v4850, 64
        %v4918 = vpop.permute.xlu0 %4917
        %4919 = vrot.lane.b32.xlu0 %v4904, 64
        %v4920 = vpop.permute.xlu0 %4919
        %4925 = vrot.lane.b32.xlu0 %v4852, 96
        %v4926 = vpop.permute.xlu0 %4925
        %4927 = vrot.lane.b32.xlu0 %v4906, 96
        %v4928 = vpop.permute.xlu0 %4927
        %v4931 = vsel %vm1924, %v4846, %v4910
        %v4932 = vsel %vm1924, %v4900, %v4912
        %v4933 = vsel %vm2581, %v4931, %v4918
        %v4934 = vsel %vm2581, %v4932, %v4920
        %v4935 = vsel %vm2584, %v4933, %v4926
        %v4936 = vsel %vm2584, %v4934, %v4928
        %v4937 = vpack.c.bf16 %v4936, %v4935
        %v4938 = vld [vmem:[%s805] sm:$0xf]
        %v4939 = vld [vmem:[%s805 + $0x4] sm:$0xf]
        %v4940 = vld [vmem:[%s805 + $0x8] sm:$0xf]
        %v4941 = vld [vmem:[%s805 + $0xc] sm:$0xf]
        %v4942 = vld [vmem:[%s805 + $0x10] sm:$0xf]
        %v4943 = vld [vmem:[%s805 + $0x14] sm:$0xf]
        %v4944 = vld [vmem:[%s805 + $0x18] sm:$0xf]
        %v4945 = vld [vmem:[%s805 + $0x1c] sm:$0xf]
        %v4946 = vld [vmem:[%s805 + $0x20] sm:$0xf]
        %v4947 = vld [vmem:[%s805 + $0x24] sm:$0xf]
        %v4948 = vld [vmem:[%s805 + $0x28] sm:$0xf]
        %v4949 = vld [vmem:[%s805 + $0x2c] sm:$0xf]
        %v4950 = vld [vmem:[%s805 + $0x30] sm:$0xf]
        %v4951 = vld [vmem:[%s805 + $0x34] sm:$0xf]
        %v4952 = vld [vmem:[%s805 + $0x38] sm:$0xf]
        %v4953 = vld [vmem:[%s805 + $0x3c] sm:$0xf]
        %v4954 = vperm.slane %v947, 7
        %v4971 = vunpack.c.l.b16 %v4938
        %v4972 = vunpack.c.l.b16 %v4939
        %v4973 = vunpack.c.l.b16 %v4940
        %v4974 = vunpack.c.l.b16 %v4941
        %v4975 = vunpack.c.l.b16 %v4942
        %v4976 = vunpack.c.l.b16 %v4943
        %v4977 = vunpack.c.l.b16 %v4944
        %v4978 = vunpack.c.l.b16 %v4945
        %v4979 = vunpack.c.l.b16 %v4946
        %v4980 = vunpack.c.l.b16 %v4947
        %v4981 = vunpack.c.l.b16 %v4948
        %v4982 = vunpack.c.l.b16 %v4949
        %v4983 = vunpack.c.l.b16 %v4950
        %v4984 = vunpack.c.l.b16 %v4951
        %v4985 = vunpack.c.l.b16 %v4952
        %v4986 = vunpack.c.l.b16 %v4953
        %v4987 = vpack.c.b16 %v4972, %v4971
        %v4988 = vpack.c.b16 %v4974, %v4973
        %v4989 = vpack.c.b16 %v4976, %v4975
        %v4990 = vpack.c.b16 %v4978, %v4977
        %v4991 = vpack.c.b16 %v4980, %v4979
        %v4992 = vpack.c.b16 %v4982, %v4981
        %v4993 = vpack.c.b16 %v4984, %v4983
        %v4994 = vpack.c.b16 %v4986, %v4985
        %5003 = vmatpush.bf16.msra.mxu0 %v4994
        %5004 = vmatpush.bf16.msra.mxu0 %v4993
        %5005 = vmatpush.bf16.msra.mxu0 %v4992
        %5006 = vmatpush.bf16.msra.mxu0 %v4991
        %5007 = vmatpush.bf16.msra.mxu0 %v4990
        %5008 = vmatpush.bf16.msra.mxu0 %v4989
        %5009 = vmatpush.bf16.msra.mxu0 %v4988
        %5010 = vmatpush.bf16.msra.mxu0 %v4987
        %5011 = vmatmul.bf16.gmra.mxu0 %v4937
        %v5012 = vpop.f32.mrf.mxu0
        %v5013 = vadd.f32 %v4954, %v5012
        %v5014 = vpop.f32.mrf.mxu0
        %v5015 = vadd.f32 %v4954, %v5014
        %5016 = vdwg.mxu0
        %v5017 = vadd.f32 %v2720, %v5013
        %v5018 = vadd.f32 %v2721, %v5015
        %5019 = vadd.xlane.f32.xlu0 %v5017
        %v5020 = vpop.xlane.xlu0 %5019
        %5021 = vadd.xlane.f32.xlu0 %v5018
        %v5022 = vpop.xlane.xlu0 %5021
        %v5023 = vmul.f32 %v5020, %v2679
        %v5024 = vmul.f32 %v5022, %v2679
        %v5025 = vsub.f32 %v5017, %v5023
        %v5026 = vsub.f32 %v5018, %v5024
        %v5027 = vmul.f32 %v5025, %v5025
        %v5028 = vmul.f32 %v5026, %v5026
        %5029 = vadd.xlane.f32.xlu0 %v5027
        %v5030 = vpop.xlane.xlu0 %5029
        %5031 = vadd.xlane.f32.xlu0 %v5028
        %v5032 = vpop.xlane.xlu0 %5031
        %v5033 = vmul.f32 %v5030, %v2679
        %v5034 = vmul.f32 %v5032, %v2679
        %v5035 = vadd.f32 %v5033, 1e-05
        %v5036 = vadd.f32 %v5034, 1e-05
        %v5037 = vrsqrt.pop %v5035
        %v5038 = vmul.f32 %v5037, %v5035
        %v5039 = vmul.f32 %v5038, %v5037
        %v5040 = vmul.f32 0.5, %v5039
        %v5041 = vsub.f32 1.5, %v5040
        %v5042 = vmul.f32 %v5037, %v5041
        %vm5043 = vweird.f32 %v5035
        %vm5044 = vweird.f32 %v5037
        %vm5045 = vmor %vm5043, %vm5044
        %v5046 = vsel %vm5045, %v5037, %v5042
        %v5047 = vrsqrt.pop %v5036
        %v5048 = vmul.f32 %v5047, %v5036
        %v5049 = vmul.f32 %v5048, %v5047
        %v5050 = vmul.f32 0.5, %v5049
        %v5051 = vsub.f32 1.5, %v5050
        %v5052 = vmul.f32 %v5047, %v5051
        %vm5053 = vweird.f32 %v5036
        %vm5054 = vweird.f32 %v5047
        %vm5055 = vmor %vm5053, %vm5054
        %v5056 = vsel %vm5055, %v5047, %v5052
        %v5057 = vmul.f32 %v5025, %v5046
        %v5058 = vmul.f32 %v5026, %v5056
        %v5059 = vperm.slane %v948, 3
        %v5060 = vmul.f32 %v5057, %v5059
        %v5061 = vmul.f32 %v5058, %v5059
        %v5062 = vperm.slane %v948, 4
        %v5063 = vadd.f32 %v5060, %v5062
        %v5064 = vadd.f32 %v5061, %v5062
        %v5065 = vpack.c.bf16 %v5064, %v5063
        %v5066 = vld [vmem:[%s815] sm:$0xff]
        %v5067 = vld [vmem:[%s815 + $0x8] sm:$0xff]
        %v5068 = vld [vmem:[%s815 + $0x10] sm:$0xff]
        %v5069 = vld [vmem:[%s815 + $0x18] sm:$0xff]
        %v5070 = vld [vmem:[%s815 + $0x20] sm:$0xff]
        %v5071 = vld [vmem:[%s815 + $0x28] sm:$0xff]
        %v5072 = vld [vmem:[%s815 + $0x30] sm:$0xff]
        %v5073 = vld [vmem:[%s815 + $0x38] sm:$0xff]
        %v5074 = vld [vmem:[%s815 + $0x40] sm:$0xff]
        %v5075 = vld [vmem:[%s815 + $0x48] sm:$0xff]
        %v5076 = vld [vmem:[%s815 + $0x50] sm:$0xff]
        %v5077 = vld [vmem:[%s815 + $0x58] sm:$0xff]
        %v5078 = vld [vmem:[%s815 + $0x60] sm:$0xff]
        %v5079 = vld [vmem:[%s815 + $0x68] sm:$0xff]
        %v5080 = vld [vmem:[%s815 + $0x70] sm:$0xff]
        %v5081 = vld [vmem:[%s815 + $0x78] sm:$0xff]
        %v5082 = vld [vmem:[%s925] sm:$0x3]
        %v5084 = vperm.slane %v5082, 0
        %v5085 = vperm.slane %v5082, 1
        %v5104 = vunpack.c.l.b16 %v5066
        %v5105 = vunpack.c.h.b16 %v5066
        %v5106 = vunpack.c.l.b16 %v5067
        %v5107 = vunpack.c.h.b16 %v5067
        %v5108 = vunpack.c.l.b16 %v5068
        %v5109 = vunpack.c.h.b16 %v5068
        %v5110 = vunpack.c.l.b16 %v5069
        %v5111 = vunpack.c.h.b16 %v5069
        %v5112 = vunpack.c.l.b16 %v5070
        %v5113 = vunpack.c.h.b16 %v5070
        %v5114 = vunpack.c.l.b16 %v5071
        %v5115 = vunpack.c.h.b16 %v5071
        %v5116 = vunpack.c.l.b16 %v5072
        %v5117 = vunpack.c.h.b16 %v5072
        %v5118 = vunpack.c.l.b16 %v5073
        %v5119 = vunpack.c.h.b16 %v5073
        %v5120 = vunpack.c.l.b16 %v5074
        %v5121 = vunpack.c.h.b16 %v5074
        %v5122 = vunpack.c.l.b16 %v5075
        %v5123 = vunpack.c.h.b16 %v5075
        %v5124 = vunpack.c.l.b16 %v5076
        %v5125 = vunpack.c.h.b16 %v5076
        %v5126 = vunpack.c.l.b16 %v5077
        %v5127 = vunpack.c.h.b16 %v5077
        %v5128 = vunpack.c.l.b16 %v5078
        %v5129 = vunpack.c.h.b16 %v5078
        %v5130 = vunpack.c.l.b16 %v5079
        %v5131 = vunpack.c.h.b16 %v5079
        %v5132 = vunpack.c.l.b16 %v5080
        %v5133 = vunpack.c.h.b16 %v5080
        %v5134 = vunpack.c.l.b16 %v5081
        %v5135 = vunpack.c.h.b16 %v5081
        %v5136 = vpack.c.b16 %v5106, %v5104
        %v5137 = vpack.c.b16 %v5107, %v5105
        %v5138 = vpack.c.b16 %v5110, %v5108
        %v5139 = vpack.c.b16 %v5111, %v5109
        %v5140 = vpack.c.b16 %v5114, %v5112
        %v5141 = vpack.c.b16 %v5115, %v5113
        %v5142 = vpack.c.b16 %v5118, %v5116
        %v5143 = vpack.c.b16 %v5119, %v5117
        %v5144 = vpack.c.b16 %v5122, %v5120
        %v5145 = vpack.c.b16 %v5123, %v5121
        %v5146 = vpack.c.b16 %v5126, %v5124
        %v5147 = vpack.c.b16 %v5127, %v5125
        %v5148 = vpack.c.b16 %v5130, %v5128
        %v5149 = vpack.c.b16 %v5131, %v5129
        %v5150 = vpack.c.b16 %v5134, %v5132
        %v5151 = vpack.c.b16 %v5135, %v5133
        %5168 = vmatpush.bf16.msra.mxu0 %v5150
        %5169 = vmatpush.bf16.msra.mxu0 %v5148
        %5170 = vmatpush.bf16.msra.mxu0 %v5146
        %5171 = vmatpush.bf16.msra.mxu0 %v5144
        %5172 = vmatpush.bf16.msra.mxu0 %v5142
        %5173 = vmatpush.bf16.msra.mxu0 %v5140
        %5174 = vmatpush.bf16.msra.mxu0 %v5138
        %5175 = vmatpush.bf16.msra.mxu0 %v5136
        %5176 = vmatmul.bf16.gmra.mxu0 %v5065
        %v5177 = vpop.f32.mrf.mxu0
        %v5178 = vadd.f32 %v5084, %v5177
        %v5179 = vpop.f32.mrf.mxu0
        %v5180 = vadd.f32 %v5084, %v5179
        %5181 = vdwg.mxu0
        %5182 = vmatpush.bf16.msra.mxu0 %v5151
        %5183 = vmatpush.bf16.msra.mxu0 %v5149
        %5184 = vmatpush.bf16.msra.mxu0 %v5147
        %5185 = vmatpush.bf16.msra.mxu0 %v5145
        %5186 = vmatpush.bf16.msra.mxu0 %v5143
        %5187 = vmatpush.bf16.msra.mxu0 %v5141
        %5188 = vmatpush.bf16.msra.mxu0 %v5139
        %5189 = vmatpush.bf16.msra.mxu0 %v5137
        %5190 = vmatmul.bf16.gmra.mxu0 %v5065
        %v5191 = vpop.f32.mrf.mxu0
        %v5192 = vadd.f32 %v5085, %v5191
        %v5193 = vpop.f32.mrf.mxu0
        %v5194 = vadd.f32 %v5085, %v5193
        %5195 = vdwg.mxu0
        %v5196 = vmax.f32 %v5178, 0.0
        %v5197 = vmax.f32 %v5192, 0.0
        %v5198 = vmax.f32 %v5180, 0.0
        %v5199 = vmax.f32 %v5194, 0.0
        %v5200 = vpack.c.bf16 %v5198, %v5196
        %v5201 = vpack.c.bf16 %v5199, %v5197
        %v5202 = vld [vmem:[%s825] sm:$0xf]
        %v5203 = vld [vmem:[%s825 + $0x4] sm:$0xf]
        %v5204 = vld [vmem:[%s825 + $0x8] sm:$0xf]
        %v5205 = vld [vmem:[%s825 + $0xc] sm:$0xf]
        %v5206 = vld [vmem:[%s825 + $0x10] sm:$0xf]
        %v5207 = vld [vmem:[%s825 + $0x14] sm:$0xf]
        %v5208 = vld [vmem:[%s825 + $0x18] sm:$0xf]
        %v5209 = vld [vmem:[%s825 + $0x1c] sm:$0xf]
        %v5210 = vld [vmem:[%s825 + $0x20] sm:$0xf]
        %v5211 = vld [vmem:[%s825 + $0x24] sm:$0xf]
        %v5212 = vld [vmem:[%s825 + $0x28] sm:$0xf]
        %v5213 = vld [vmem:[%s825 + $0x2c] sm:$0xf]
        %v5214 = vld [vmem:[%s825 + $0x30] sm:$0xf]
        %v5215 = vld [vmem:[%s825 + $0x34] sm:$0xf]
        %v5216 = vld [vmem:[%s825 + $0x38] sm:$0xf]
        %v5217 = vld [vmem:[%s825 + $0x3c] sm:$0xf]
        %v5218 = vld [vmem:[%s825 + $0x40] sm:$0xf]
        %v5219 = vld [vmem:[%s825 + $0x44] sm:$0xf]
        %v5220 = vld [vmem:[%s825 + $0x48] sm:$0xf]
        %v5221 = vld [vmem:[%s825 + $0x4c] sm:$0xf]
        %v5222 = vld [vmem:[%s825 + $0x50] sm:$0xf]
        %v5223 = vld [vmem:[%s825 + $0x54] sm:$0xf]
        %v5224 = vld [vmem:[%s825 + $0x58] sm:$0xf]
        %v5225 = vld [vmem:[%s825 + $0x5c] sm:$0xf]
        %v5226 = vld [vmem:[%s825 + $0x60] sm:$0xf]
        %v5227 = vld [vmem:[%s825 + $0x64] sm:$0xf]
        %v5228 = vld [vmem:[%s825 + $0x68] sm:$0xf]
        %v5229 = vld [vmem:[%s825 + $0x6c] sm:$0xf]
        %v5230 = vld [vmem:[%s825 + $0x70] sm:$0xf]
        %v5231 = vld [vmem:[%s825 + $0x74] sm:$0xf]
        %v5232 = vld [vmem:[%s825 + $0x78] sm:$0xf]
        %v5233 = vld [vmem:[%s825 + $0x7c] sm:$0xf]
        %v5234 = vperm.slane %v948, 0
        %v5267 = vunpack.c.l.b16 %v5202
        %v5268 = vunpack.c.l.b16 %v5203
        %v5269 = vunpack.c.l.b16 %v5204
        %v5270 = vunpack.c.l.b16 %v5205
        %v5271 = vunpack.c.l.b16 %v5206
        %v5272 = vunpack.c.l.b16 %v5207
        %v5273 = vunpack.c.l.b16 %v5208
        %v5274 = vunpack.c.l.b16 %v5209
        %v5275 = vunpack.c.l.b16 %v5210
        %v5276 = vunpack.c.l.b16 %v5211
        %v5277 = vunpack.c.l.b16 %v5212
        %v5278 = vunpack.c.l.b16 %v5213
        %v5279 = vunpack.c.l.b16 %v5214
        %v5280 = vunpack.c.l.b16 %v5215
        %v5281 = vunpack.c.l.b16 %v5216
        %v5282 = vunpack.c.l.b16 %v5217
        %v5283 = vunpack.c.l.b16 %v5218
        %v5284 = vunpack.c.l.b16 %v5219
        %v5285 = vunpack.c.l.b16 %v5220
        %v5286 = vunpack.c.l.b16 %v5221
        %v5287 = vunpack.c.l.b16 %v5222
        %v5288 = vunpack.c.l.b16 %v5223
        %v5289 = vunpack.c.l.b16 %v5224
        %v5290 = vunpack.c.l.b16 %v5225
        %v5291 = vunpack.c.l.b16 %v5226
        %v5292 = vunpack.c.l.b16 %v5227
        %v5293 = vunpack.c.l.b16 %v5228
        %v5294 = vunpack.c.l.b16 %v5229
        %v5295 = vunpack.c.l.b16 %v5230
        %v5296 = vunpack.c.l.b16 %v5231
        %v5297 = vunpack.c.l.b16 %v5232
        %v5298 = vunpack.c.l.b16 %v5233
        %v5299 = vpack.c.b16 %v5268, %v5267
        %v5300 = vpack.c.b16 %v5270, %v5269
        %v5301 = vpack.c.b16 %v5272, %v5271
        %v5302 = vpack.c.b16 %v5274, %v5273
        %v5303 = vpack.c.b16 %v5276, %v5275
        %v5304 = vpack.c.b16 %v5278, %v5277
        %v5305 = vpack.c.b16 %v5280, %v5279
        %v5306 = vpack.c.b16 %v5282, %v5281
        %v5307 = vpack.c.b16 %v5284, %v5283
        %v5308 = vpack.c.b16 %v5286, %v5285
        %v5309 = vpack.c.b16 %v5288, %v5287
        %v5310 = vpack.c.b16 %v5290, %v5289
        %v5311 = vpack.c.b16 %v5292, %v5291
        %v5312 = vpack.c.b16 %v5294, %v5293
        %v5313 = vpack.c.b16 %v5296, %v5295
        %v5314 = vpack.c.b16 %v5298, %v5297
        %5331 = vmatpush.bf16.msra.mxu0 %v5306
        %5332 = vmatpush.bf16.msra.mxu0 %v5305
        %5333 = vmatpush.bf16.msra.mxu0 %v5304
        %5334 = vmatpush.bf16.msra.mxu0 %v5303
        %5335 = vmatpush.bf16.msra.mxu0 %v5302
        %5336 = vmatpush.bf16.msra.mxu0 %v5301
        %5337 = vmatpush.bf16.msra.mxu0 %v5300
        %5338 = vmatpush.bf16.msra.mxu0 %v5299
        %5339 = vmatmul.bf16.gmra.mxu0 %v5200
        %v5340 = vpop.f32.mrf.mxu0
        %v5341 = vadd.f32 %v5234, %v5340
        %v5342 = vpop.f32.mrf.mxu0
        %v5343 = vadd.f32 %v5234, %v5342
        %5344 = vdwg.mxu0
        %5345 = vmatpush.bf16.msra.mxu0 %v5314
        %5346 = vmatpush.bf16.msra.mxu0 %v5313
        %5347 = vmatpush.bf16.msra.mxu0 %v5312
        %5348 = vmatpush.bf16.msra.mxu0 %v5311
        %5349 = vmatpush.bf16.msra.mxu0 %v5310
        %5350 = vmatpush.bf16.msra.mxu0 %v5309
        %5351 = vmatpush.bf16.msra.mxu0 %v5308
        %5352 = vmatpush.bf16.msra.mxu0 %v5307
        %5353 = vmatmul.bf16.gmra.mxu0 %v5201
        %v5354 = vpop.f32.mrf.mxu0
        %v5355 = vadd.f32 %v5341, %v5354
        %v5356 = vpop.f32.mrf.mxu0
        %v5357 = vadd.f32 %v5343, %v5356
        %5358 = vdwg.mxu0
        %v5359 = vadd.f32 %v5063, %v5355
        %v5360 = vadd.f32 %v5064, %v5357
        %5361 = vadd.xlane.f32.xlu0 %v5359
        %v5362 = vpop.xlane.xlu0 %5361
        %5363 = vadd.xlane.f32.xlu0 %v5360
        %v5364 = vpop.xlane.xlu0 %5363
        %v5365 = vmul.f32 %v5362, %v2679
        %v5366 = vmul.f32 %v5364, %v2679
        %v5367 = vsub.f32 %v5359, %v5365
        %v5368 = vsub.f32 %v5360, %v5366
        %v5369 = vmul.f32 %v5367, %v5367
        %v5370 = vmul.f32 %v5368, %v5368
        %5371 = vadd.xlane.f32.xlu0 %v5369
        %v5372 = vpop.xlane.xlu0 %5371
        %5373 = vadd.xlane.f32.xlu0 %v5370
        %v5374 = vpop.xlane.xlu0 %5373
        %v5375 = vmul.f32 %v5372, %v2679
        %v5376 = vmul.f32 %v5374, %v2679
        %v5377 = vadd.f32 %v5375, 1e-05
        %v5378 = vadd.f32 %v5376, 1e-05
        %v5379 = vrsqrt.pop %v5377
        %v5380 = vmul.f32 %v5379, %v5377
        %v5381 = vmul.f32 %v5380, %v5379
        %v5382 = vmul.f32 0.5, %v5381
        %v5383 = vsub.f32 1.5, %v5382
        %v5384 = vmul.f32 %v5379, %v5383
        %vm5385 = vweird.f32 %v5377
        %vm5386 = vweird.f32 %v5379
        %vm5387 = vmor %vm5385, %vm5386
        %v5388 = vsel %vm5387, %v5379, %v5384
        %v5389 = vrsqrt.pop %v5378
        %v5390 = vmul.f32 %v5389, %v5378
        %v5391 = vmul.f32 %v5390, %v5389
        %v5392 = vmul.f32 0.5, %v5391
        %v5393 = vsub.f32 1.5, %v5392
        %v5394 = vmul.f32 %v5389, %v5393
        %vm5395 = vweird.f32 %v5378
        %vm5396 = vweird.f32 %v5389
        %vm5397 = vmor %vm5395, %vm5396
        %v5398 = vsel %vm5397, %v5389, %v5394
        %v5399 = vmul.f32 %v5367, %v5388
        %v5400 = vmul.f32 %v5368, %v5398
        %v5401 = vperm.slane %v948, 5
        %v5402 = vmul.f32 %v5399, %v5401
        %v5403 = vmul.f32 %v5400, %v5401
        %v5404 = vperm.slane %v948, 6
        %v5405 = vadd.f32 %v5402, %v5404
        %v5406 = vadd.f32 %v5403, %v5404
        %5407 = vst [vmem:[#allocation17] sm:$0xff] %v5405
        %5408 = vst [vmem:[#allocation17 + $0x8] sm:$0xff] %v5406
        // Predicated region
        $region129: #{tpu_custom_call.1} parent=75 // pred_check
          %p5409 = pneg %p422
        $region130: #{tpu_custom_call.1} parent=75 // pred_check_branch
          %5411 = sbr.rel (%p5409) target = $region132
        $region131: #{tpu_custom_call.1} parent=75 // pred_region
          %s5412 = smul.u32 2, %s32
          %5414 = vsyncadd [#allocation4], 0
          %s5415 = smul.addr %s5412, 8
          %s5416 = scalar_lea.hbm %s14, %s5415
          %s5417 = sshll.u32 [#allocation17], 4
          %s5418 = int_to_ptr.vmem [resolvable:$true] %s5417
          %s5419 = sshll.u32 %s5416, 4
          %s5420 = int_to_ptr.hbm [resolvable:$true] %s5419
          %5425 = dma.vmem_to_hbm [thread:$0]  %s5418, 256, %s5420, [#allocation4], 128, 128, 8
        $region132: #{tpu_custom_call.1} parent=75 // pred_fallthru
          _
        // Predicated region
        $region133: #{tpu_custom_call.1} parent=75 // pred_check
          %p5426 = pneg %p422
        $region134: #{tpu_custom_call.1} parent=75 // pred_check_branch
          %5428 = sbr.rel (%p5426) target = $region136
        $region135: #{tpu_custom_call.1} parent=75 // pred_region
          %5430 = dma.done [#allocation4], 256
        $region136: #{tpu_custom_call.1} parent=75 // pred_fallthru
          _
      $region76: #{tpu_custom_call.1} parent=5 // pred_fallthru
        _
      %p5431 = scmp.le.s32.totalorder 2, %s23
      // Predicated region
      $region137: #{tpu_custom_call.1} parent=5 // pred_check
        %p5432 = pneg %p5431
      $region138: #{tpu_custom_call.1} parent=5 // pred_check_branch
        %5434 = sbr.rel (%p5432) target = $region140
      $region139: #{tpu_custom_call.1} parent=5 // pred_region
        %s5435 = ssub.s32 %s23, 2
      $region140: #{tpu_custom_call.1} parent=5 // pred_fallthru
        _
    $region6: #{tpu_custom_call.1} parent=1 // loop_footer
      %s27 = sadd.s32 1, %s23
    $region7: #{tpu_custom_call.1} parent=1 // loop_footer_branch
      %22 = sbr.rel target = $region3
    $region8: #{tpu_custom_call.1} parent=1 // loop_exit
      _
    %5436 = vsyncpa [#allocation3], 1
    %s5437 = scalar_lea.sflag [#allocation3], 1
    %5438 = vsyncpa %s5437, 1
    %5439 = vsyncpa [#allocation6], 1
    %5440 = vsyncpa [#allocation4], 1
    %s5441 = scalar_lea.sflag [#allocation4], 1
    %5442 = vsyncpa %s5441, 1

</llo_original>
